<compile_context>
chip_gen: v7x
topology: tpu7x:2x2x1
jax: 0.10.0
libtpu: 0.0.40
codegen_flags: <defaults>
</compile_context>

<pallas_src>
import jax
import jax.numpy as jnp
from jax.experimental import pallas as pl
from jax.experimental.pallas import tpu as pltpu


_PACK = 4  # 4 spatial rows per GEMM output row -> lane width 4*32 = 128


def _round_up(x, m):
    return (x + m - 1) // m * m


# ---------------------------------------------------------------------------
# Pallas kernels
# ---------------------------------------------------------------------------

def _gemm_bias_relu_kernel(x_ref, w_ref, b_ref, o_ref):
    # x: [TM/4, 4K] bf16, w: [4K, 128] bf16 (block-diagonal), b: [1, 128] f32
    # o = relu(x @ w + b), f32 accumulation, bf16 lane-dense store.
    y = jnp.dot(x_ref[...], w_ref[...], preferred_element_type=jnp.float32)
    o_ref[...] = jnp.maximum(y + b_ref[...], 0.0).astype(o_ref.dtype)


def _head_kernel(p3_ref, w3_ref, b3_ref, wl_ref, bl_ref, g_ref, beta_ref, o_ref):
    # Fused conv3 + flatten + Linear + ReLU + LayerNorm for one batch element.
    #   p3_ref : [1, 1, P3*K3] bf16   all conv3 patches of this image (lane-packed)
    #   w3_ref : [P3*K3, P3*32] bf16  block-diagonal conv3 weight
    #   b3_ref : [1, P3*32] f32
    #   wl_ref : [P3*32, F] bf16      Linear weight (columns permuted for NHWC flat)
    #   bl/g/beta : [1, F] f32
    #   o_ref  : [1, 1, F] f32
    a3 = jnp.dot(p3_ref[0], w3_ref[...], preferred_element_type=jnp.float32)
    a3 = jnp.maximum(a3 + b3_ref[...], 0.0).astype(jnp.bfloat16)       # [1, P3*32]
    y = jnp.dot(a3, wl_ref[...], preferred_element_type=jnp.float32)   # [1, F]
    y = jnp.maximum(y + bl_ref[...], 0.0)
    mu = jnp.mean(y, axis=-1, keepdims=True)
    var = jnp.mean((y - mu) ** 2, axis=-1, keepdims=True)              # biased, like nn.LayerNorm
    y = (y - mu) * jax.lax.rsqrt(var + 1e-5)
    o_ref[0] = (y * g_ref[...] + beta_ref[...]).astype(o_ref.dtype)


# ---------------------------------------------------------------------------
# Pallas wrappers
# ---------------------------------------------------------------------------

def _conv_gemm_relu(patches, w_bd, b_packed, *, tile_rows=512):
    """relu(patches @ W + b), W supplied block-diagonally packed.

    patches: [M, K] bf16, w_bd: [4K, 128] bf16, b_packed: [1, 128] f32.
    Returns [M, 32] bf16.  Rows are processed 4 at a time so every output
    store is a full 128-lane vst; the row grid is pipelined and "parallel".
    """
    M, K = patches.shape
    KP, CP = w_bd.shape
    C = CP // _PACK

    # TM multiple of PACK*8 keeps the packed sublane dim a multiple of 8.
    # tile_rows=512 -> ~1.5 MiB of double-buffered block traffic: fits the
    # default scoped VMEM on v5e/v6e and v7x's smaller 64 MiB physical VMEM.
    mp = _round_up(M, _PACK * 8)
    tm = min(tile_rows, mp)
    mp = _round_up(mp, tm)
    if mp != M:
        patches = jnp.pad(patches, ((0, mp - M), (0, 0)))
    xp = patches.reshape(mp // _PACK, _PACK * K)          # free (row-major)

    out = pl.pallas_call(
        _gemm_bias_relu_kernel,
        out_shape=jax.ShapeDtypeStruct((mp // _PACK, CP), jnp.bfloat16),
        grid=(mp // tm,),
        in_specs=[
            pl.BlockSpec((tm // _PACK, _PACK * K), lambda i: (i, 0)),
            pl.BlockSpec((KP, CP), lambda i: (0, 0)),     # weight stays resident
            pl.BlockSpec((1, CP), lambda i: (0, 0)),      # bias stays resident
        ],
        out_specs=pl.BlockSpec((tm // _PACK, CP), lambda i: (i, 0)),
        compiler_params=pltpu.CompilerParams(
            dimension_semantics=("parallel",)),
    )(xp, w_bd, b_packed)

    return out.reshape(mp, C)[:M]                         # free un-pack + crop


def _head_call(p3_packed, w3_bd, b3_packed, wl_flat, bl, gamma, beta):
    n, _, kp = p3_packed.shape
    cp = w3_bd.shape[1]
    f = wl_flat.shape[1]
    out = pl.pallas_call(
        _head_kernel,
        out_shape=jax.ShapeDtypeStruct((n, 1, f), jnp.float32),
        grid=(n,),
        in_specs=[
            pl.BlockSpec((1, 1, kp), lambda i: (i, 0, 0)),
            pl.BlockSpec((kp, cp), lambda i: (0, 0)),
            pl.BlockSpec((1, cp), lambda i: (0, 0)),
            pl.BlockSpec((cp, f), lambda i: (0, 0)),
            pl.BlockSpec((1, f), lambda i: (0, 0)),
            pl.BlockSpec((1, f), lambda i: (0, 0)),
            pl.BlockSpec((1, f), lambda i: (0, 0)),
        ],
        out_specs=pl.BlockSpec((1, 1, f), lambda i: (i, 0, 0)),
        compiler_params=pltpu.CompilerParams(
            dimension_semantics=("parallel",)),           # batch across TCs (v7x)
    )(p3_packed, w3_bd, b3_packed, wl_flat, bl, gamma, beta)
    return out.reshape(n, f)


# ---------------------------------------------------------------------------
# Trace-time JAX glue (NHWC im2col)
# ---------------------------------------------------------------------------

def _im2col_nhwc(x, kh, kw, stride):
    """x: [N, H, W, C] -> patches [N*OH*OW, KH*KW*C] (feature order kh, kw, c)."""
    # TODO(synk): for large batches, move conv1's patch extraction inside the
    # kernel (DMA the NHWC tile and slice with pl.ds) to avoid the 4x HBM
    # expansion of overlapping 8x8/stride-4 windows.
    n, h, w, c = x.shape
    oh = (h - kh) // stride + 1
    ow = (w - kw) // stride + 1
    cols = []
    for i in range(kh):
        for j in range(kw):
            cols.append(x[:, i:i + stride * oh:stride, j:j + stride * ow:stride, :])
    p = jnp.concatenate(cols, axis=-1)                    # [N, OH, OW, KH*KW*C]
    return p.reshape(n * oh * ow, kh * kw * c), oh, ow


def light_cnn_forward(x_nchw, prep):
    """x_nchw: [N, C, H, W] f32 (torch layout) -> [N, features_dim] f32."""
    n = x_nchw.shape[0]
    # Single layout change at the boundary; everything downstream is NHWC-flat.
    x = jnp.transpose(x_nchw, (0, 2, 3, 1)).astype(jnp.bfloat16)

    p1, oh1, ow1 = _im2col_nhwc(x, 8, 8, 4)
    a1 = _conv_gemm_relu(p1, prep["w1"], prep["b1"]).reshape(n, oh1, ow1, -1)

    p2, oh2, ow2 = _im2col_nhwc(a1, 4, 4, 2)
    a2 = _conv_gemm_relu(p2, prep["w2"], prep["b2"]).reshape(n, oh2, ow2, -1)

    p3, _, _ = _im2col_nhwc(a2, 3, 3, 1)                  # [N*P3, 288]
    p3 = p3.reshape(n, 1, -1)                             # [N, 1, P3*288] (free)

    return _head_call(p3, prep["w3"], prep["b3"], prep["wl"],
                      prep["bl"], prep["gamma"], prep["beta"])


# ---------------------------------------------------------------------------
# Parameter handling
# ---------------------------------------------------------------------------

def prepare_params(params):
    """One-time repack of torch-layout params into kernel-ready layouts.

    NOTE: the block-diagonal conv3/linear packing in the head kernel assumes a
    small conv3 spatial extent (P3*32 <= a few hundred lanes); for large inputs
    fall back to _conv_gemm_relu for conv3 + a separate linear/LN kernel.
    """
    def conv_w2d(w):
        # torch [Cout, Cin, KH, KW] -> [KH*KW*Cin, Cout]  (matches _im2col_nhwc)
        cout = w.shape[0]
        return jnp.transpose(w, (2, 3, 1, 0)).reshape(-1, cout)

    def block_diag(w2d, p):
        return jnp.kron(jnp.eye(p, dtype=w2d.dtype), w2d)

    wl = params["wl"]                                     # [F, n_flatten]
    f, n_flatten = wl.shape
    cout = params["w3"].shape[0]                          # 32
    p3 = n_flatten // cout                                # OH3*OW3

    # torch Flatten is NCHW (column index c*P3 + p); our conv3 output is packed
    # as column p*Cout + c, so permute the Linear weight columns once here.
    wl_flat = jnp.transpose(wl.reshape(f, cout, p3), (2, 1, 0)).reshape(p3 * cout, f)

    return {
        "w1": block_diag(conv_w2d(params["w1"]), _PACK).astype(jnp.bfloat16),
        "b1": jnp.tile(params["b1"], _PACK).reshape(1, -1).astype(jnp.float32),
        "w2": block_diag(conv_w2d(params["w2"]), _PACK).astype(jnp.bfloat16),
        "b2": jnp.tile(params["b2"], _PACK).reshape(1, -1).astype(jnp.float32),
        "w3": block_diag(conv_w2d(params["w3"]), p3).astype(jnp.bfloat16),
        "b3": jnp.tile(params["b3"], p3).reshape(1, -1).astype(jnp.float32),
        "wl": wl_flat.astype(jnp.bfloat16),
        "bl": params["bl"].reshape(1, -1).astype(jnp.float32),
        "gamma": params["gamma"].reshape(1, -1).astype(jnp.float32),
        "beta": params["beta"].reshape(1, -1).astype(jnp.float32),
    }


def init_params(key, input_dims, features_dim):
    c, h, w = input_dims
    h1, w1 = (h - 8) // 4 + 1, (w - 8) // 4 + 1
    h2, w2 = (h1 - 4) // 2 + 1, (w1 - 4) // 2 + 1
    h3, w3 = h2 - 3 + 1, w2 - 3 + 1
    n_flatten = 32 * h3 * w3

    ks = jax.random.split(key, 8)
    p = {
        "w1": jax.random.normal(ks[0], (32, c, 8, 8), jnp.float32) * 0.05,
        "b1": jax.random.normal(ks[1], (32,), jnp.float32) * 0.01,
        "w2": jax.random.normal(ks[2], (32, 32, 4, 4), jnp.float32) * 0.05,
        "b2": jax.random.normal(ks[3], (32,), jnp.float32) * 0.01,
        "w3": jax.random.normal(ks[4], (32, 32, 3, 3), jnp.float32) * 0.05,
        "b3": jax.random.normal(ks[5], (32,), jnp.float32) * 0.01,
        "wl": jax.random.normal(ks[6], (features_dim, n_flatten), jnp.float32) * 0.05,
        "bl": jax.random.normal(ks[7], (features_dim,), jnp.float32) * 0.01,
        "gamma": jnp.ones((features_dim,), jnp.float32),
        "beta": jnp.zeros((features_dim,), jnp.float32),
    }
    return p, n_flatten


if __name__ == "__main__":
    # batch=2, channels=4, spatial 44x44 -> 10x10 -> 4x4 -> 2x2, n_flatten=128.
    input_dims = (4, 44, 44)
    features_dim = 128
    batch = 2

    key = jax.random.PRNGKey(0)
    k_x, k_p = jax.random.split(key)
    x = jax.random.normal(k_x, (batch,) + input_dims, jnp.float32)
    params, _ = init_params(k_p, input_dims, features_dim)

    prep = prepare_params(params)            # one-time weight repack, outside jit
    fwd = jax.jit(light_cnn_forward)
    out = jax.block_until_ready(fwd(x, prep))

    assert out.shape == (batch, features_dim), out.shape
    assert out.dtype == jnp.float32
    assert bool(jnp.all(jnp.isfinite(out)))
    print("KERNEL_OK")
</pallas_src>

<mosaic_0001>
module attributes {stable_mosaic.version = 11 : i64} {
  func.func @_gemm_bias_relu_kernel(%arg0: i32, %arg1: memref<56x1024xbf16, #tpu.memory_space<vmem>>, %arg2: memref<1024x128xbf16, #tpu.memory_space<vmem>>, %arg3: memref<1x128xf32, #tpu.memory_space<vmem>>, %arg4: memref<56x128xbf16, #tpu.memory_space<vmem>>) attributes {dimension_semantics = [#tpu.dimension_semantics<parallel>], iteration_bounds = array<i64: 1>, scalar_prefetch = 0 : i64, scratch_operands = 0 : i64, tpu.core_type = #tpu.core_type<tc>, window_params = [{transform_indices = @transform_0, window_bounds = array<i64: 56, 1024>}, {pipeline_mode = #tpu.pipeline_mode<synchronous>, transform_indices = @transform_1, window_bounds = array<i64: 1024, 128>}, {pipeline_mode = #tpu.pipeline_mode<synchronous>, transform_indices = @transform_2, window_bounds = array<i64: 1, 128>}, {transform_indices = @transform_3, window_bounds = array<i64: 56, 128>}]} {
    %c0 = arith.constant 0 : index
    %c0_0 = arith.constant 0 : index
    %0 = vector.load %arg1[%c0, %c0_0] : memref<56x1024xbf16, #tpu.memory_space<vmem>>, vector<56x1024xbf16>
    %c0_1 = arith.constant 0 : index
    %c0_2 = arith.constant 0 : index
    %1 = vector.load %arg2[%c0_1, %c0_2] : memref<1024x128xbf16, #tpu.memory_space<vmem>>, vector<1024x128xbf16>
    %cst = arith.constant dense<0.000000e+00> : vector<56x128xf32>
    %2 = tpu.matmul %0, %1, %cst {dimension_numbers = #tpu.dot_dimension_numbers<[1], [0], [0], [1], [0, 0, 1, 1], [], []>} : vector<56x1024xbf16>, vector<1024x128xbf16>, vector<56x128xf32> -> vector<56x128xf32>
    %c0_3 = arith.constant 0 : index
    %c0_4 = arith.constant 0 : index
    %3 = vector.load %arg3[%c0_3, %c0_4] : memref<1x128xf32, #tpu.memory_space<vmem>>, vector<1x128xf32>
    %4 = vector.broadcast %3 : vector<1x128xf32> to vector<56x128xf32>
    %5 = arith.addf %2, %4 : vector<56x128xf32>
    %cst_5 = arith.constant 0.000000e+00 : f32
    %6 = vector.broadcast %cst_5 : f32 to vector<56x128xf32>
    %7 = arith.maximumf %5, %6 : vector<56x128xf32>
    %8 = arith.truncf %7 : vector<56x128xf32> to vector<56x128xbf16>
    %c0_6 = arith.constant 0 : index
    %c0_7 = arith.constant 0 : index
    %9 = vector.load %arg4[%c0_6, %c0_7] : memref<56x128xbf16, #tpu.memory_space<vmem>>, vector<56x128xbf16>
    tpu.vector_store %arg4[%c0_6, %c0_7], %8 {strides = array<i32>} : memref<56x128xbf16, #tpu.memory_space<vmem>>, vector<56x128xbf16>,
    return
  }
  func.func @transform_0(%arg0: i32) -> (i32, i32) {
    %c0_i32 = arith.constant 0 : i32
    %c0_i32_0 = arith.constant 0 : i32
    return %arg0, %c0_i32 : i32, i32
  }
  func.func @transform_1(%arg0: i32) -> (i32, i32) {
    %c0_i32 = arith.constant 0 : i32
    %c0_i32_0 = arith.constant 0 : i32
    %c0_i32_1 = arith.constant 0 : i32
    return %c0_i32, %c0_i32_0 : i32, i32
  }
  func.func @transform_2(%arg0: i32) -> (i32, i32) {
    %c0_i32 = arith.constant 0 : i32
    %c0_i32_0 = arith.constant 0 : i32
    %c0_i32_1 = arith.constant 0 : i32
    return %c0_i32, %c0_i32_0 : i32, i32
  }
  func.func @transform_3(%arg0: i32) -> (i32, i32) {
    %c0_i32 = arith.constant 0 : i32
    %c0_i32_0 = arith.constant 0 : i32
    return %arg0, %c0_i32 : i32, i32
  }
}

module attributes {stable_mosaic.version = 11 : i64} {
  func.func @_gemm_bias_relu_kernel(%arg0: i32, %arg1: memref<8x2048xbf16, #tpu.memory_space<vmem>>, %arg2: memref<2048x128xbf16, #tpu.memory_space<vmem>>, %arg3: memref<1x128xf32, #tpu.memory_space<vmem>>, %arg4: memref<8x128xbf16, #tpu.memory_space<vmem>>) attributes {dimension_semantics = [#tpu.dimension_semantics<parallel>], iteration_bounds = array<i64: 1>, scalar_prefetch = 0 : i64, scratch_operands = 0 : i64, tpu.core_type = #tpu.core_type<tc>, window_params = [{transform_indices = @transform_0, window_bounds = array<i64: 8, 2048>}, {pipeline_mode = #tpu.pipeline_mode<synchronous>, transform_indices = @transform_1, window_bounds = array<i64: 2048, 128>}, {pipeline_mode = #tpu.pipeline_mode<synchronous>, transform_indices = @transform_2, window_bounds = array<i64: 1, 128>}, {transform_indices = @transform_3, window_bounds = array<i64: 8, 128>}]} {
    %c0 = arith.constant 0 : index
    %c0_0 = arith.constant 0 : index
    %0 = vector.load %arg1[%c0, %c0_0] : memref<8x2048xbf16, #tpu.memory_space<vmem>>, vector<8x2048xbf16>
    %c0_1 = arith.constant 0 : index
    %c0_2 = arith.constant 0 : index
    %1 = vector.load %arg2[%c0_1, %c0_2] : memref<2048x128xbf16, #tpu.memory_space<vmem>>, vector<2048x128xbf16>
    %cst = arith.constant dense<0.000000e+00> : vector<8x128xf32>
    %2 = tpu.matmul %0, %1, %cst {dimension_numbers = #tpu.dot_dimension_numbers<[1], [0], [0], [1], [0, 0, 1, 1], [], []>} : vector<8x2048xbf16>, vector<2048x128xbf16>, vector<8x128xf32> -> vector<8x128xf32>
    %c0_3 = arith.constant 0 : index
    %c0_4 = arith.constant 0 : index
    %3 = vector.load %arg3[%c0_3, %c0_4] : memref<1x128xf32, #tpu.memory_space<vmem>>, vector<1x128xf32>
    %4 = vector.broadcast %3 : vector<1x128xf32> to vector<8x128xf32>
    %5 = arith.addf %2, %4 : vector<8x128xf32>
    %cst_5 = arith.constant 0.000000e+00 : f32
    %6 = vector.broadcast %cst_5 : f32 to vector<8x128xf32>
    %7 = arith.maximumf %5, %6 : vector<8x128xf32>
    %8 = arith.truncf %7 : vector<8x128xf32> to vector<8x128xbf16>
    %c0_6 = arith.constant 0 : index
    %c0_7 = arith.constant 0 : index
    %9 = vector.load %arg4[%c0_6, %c0_7] : memref<8x128xbf16, #tpu.memory_space<vmem>>, vector<8x128xbf16>
    tpu.vector_store %arg4[%c0_6, %c0_7], %8 {strides = array<i32>} : memref<8x128xbf16, #tpu.memory_space<vmem>>, vector<8x128xbf16>,
    return
  }
  func.func @transform_0(%arg0: i32) -> (i32, i32) {
    %c0_i32 = arith.constant 0 : i32
    %c0_i32_0 = arith.constant 0 : i32
    return %arg0, %c0_i32 : i32, i32
  }
  func.func @transform_1(%arg0: i32) -> (i32, i32) {
    %c0_i32 = arith.constant 0 : i32
    %c0_i32_0 = arith.constant 0 : i32
    %c0_i32_1 = arith.constant 0 : i32
    return %c0_i32, %c0_i32_0 : i32, i32
  }
  func.func @transform_2(%arg0: i32) -> (i32, i32) {
    %c0_i32 = arith.constant 0 : i32
    %c0_i32_0 = arith.constant 0 : i32
    %c0_i32_1 = arith.constant 0 : i32
    return %c0_i32, %c0_i32_0 : i32, i32
  }
  func.func @transform_3(%arg0: i32) -> (i32, i32) {
    %c0_i32 = arith.constant 0 : i32
    %c0_i32_0 = arith.constant 0 : i32
    return %arg0, %c0_i32 : i32, i32
  }
}

module attributes {stable_mosaic.version = 11 : i64} {
  func.func @_head_kernel(%arg0: i32, %arg1: memref<1x1x1152xbf16, #tpu.memory_space<vmem>>, %arg2: memref<1152x128xbf16, #tpu.memory_space<vmem>>, %arg3: memref<1x128xf32, #tpu.memory_space<vmem>>, %arg4: memref<128x128xbf16, #tpu.memory_space<vmem>>, %arg5: memref<1x128xf32, #tpu.memory_space<vmem>>, %arg6: memref<1x128xf32, #tpu.memory_space<vmem>>, %arg7: memref<1x128xf32, #tpu.memory_space<vmem>>, %arg8: memref<1x1x128xf32, #tpu.memory_space<vmem>>) attributes {dimension_semantics = [#tpu.dimension_semantics<parallel>], iteration_bounds = array<i64: 2>, scalar_prefetch = 0 : i64, scratch_operands = 0 : i64, tpu.core_type = #tpu.core_type<tc>, window_params = [{transform_indices = @transform_0, window_bounds = array<i64: 1, 1, 1152>}, {pipeline_mode = #tpu.pipeline_mode<synchronous>, transform_indices = @transform_1, window_bounds = array<i64: 1152, 128>}, {pipeline_mode = #tpu.pipeline_mode<synchronous>, transform_indices = @transform_2, window_bounds = array<i64: 1, 128>}, {pipeline_mode = #tpu.pipeline_mode<synchronous>, transform_indices = @transform_3, window_bounds = array<i64: 128, 128>}, {pipeline_mode = #tpu.pipeline_mode<synchronous>, transform_indices = @transform_4, window_bounds = array<i64: 1, 128>}, {pipeline_mode = #tpu.pipeline_mode<synchronous>, transform_indices = @transform_5, window_bounds = array<i64: 1, 128>}, {pipeline_mode = #tpu.pipeline_mode<synchronous>, transform_indices = @transform_6, window_bounds = array<i64: 1, 128>}, {transform_indices = @transform_7, window_bounds = array<i64: 1, 1, 128>}]} {
    %c0 = arith.constant 0 : index
    %c0_0 = arith.constant 0 : index
    %c0_1 = arith.constant 0 : index
    %0 = vector.load %arg1[%c0, %c0_0, %c0_1] : memref<1x1x1152xbf16, #tpu.memory_space<vmem>>, vector<1x1x1152xbf16>
    %1 = vector.shape_cast %0 : vector<1x1x1152xbf16> to vector<1x1152xbf16>
    %c0_2 = arith.constant 0 : index
    %c0_3 = arith.constant 0 : index
    %2 = vector.load %arg2[%c0_2, %c0_3] : memref<1152x128xbf16, #tpu.memory_space<vmem>>, vector<1152x128xbf16>
    %cst = arith.constant dense<0.000000e+00> : vector<1x128xf32>
    %3 = tpu.matmul %1, %2, %cst {dimension_numbers = #tpu.dot_dimension_numbers<[1], [0], [0], [1], [0, 0, 1, 1], [], []>} : vector<1x1152xbf16>, vector<1152x128xbf16>, vector<1x128xf32> -> vector<1x128xf32>
    %c0_4 = arith.constant 0 : index
    %c0_5 = arith.constant 0 : index
    %4 = vector.load %arg3[%c0_4, %c0_5] : memref<1x128xf32, #tpu.memory_space<vmem>>, vector<1x128xf32>
    %5 = arith.addf %3, %4 : vector<1x128xf32>
    %cst_6 = arith.constant 0.000000e+00 : f32
    %6 = vector.broadcast %cst_6 : f32 to vector<1x128xf32>
    %7 = arith.maximumf %5, %6 : vector<1x128xf32>
    %8 = arith.truncf %7 : vector<1x128xf32> to vector<1x128xbf16>
    %c0_7 = arith.constant 0 : index
    %c0_8 = arith.constant 0 : index
    %9 = vector.load %arg4[%c0_7, %c0_8] : memref<128x128xbf16, #tpu.memory_space<vmem>>, vector<128x128xbf16>
    %cst_9 = arith.constant dense<0.000000e+00> : vector<1x128xf32>
    %10 = tpu.matmul %8, %9, %cst_9 {dimension_numbers = #tpu.dot_dimension_numbers<[1], [0], [0], [1], [0, 0, 1, 1], [], []>} : vector<1x128xbf16>, vector<128x128xbf16>, vector<1x128xf32> -> vector<1x128xf32>
    %c0_10 = arith.constant 0 : index
    %c0_11 = arith.constant 0 : index
    %11 = vector.load %arg5[%c0_10, %c0_11] : memref<1x128xf32, #tpu.memory_space<vmem>>, vector<1x128xf32>
    %12 = arith.addf %10, %11 : vector<1x128xf32>
    %cst_12 = arith.constant 0.000000e+00 : f32
    %13 = vector.broadcast %cst_12 : f32 to vector<1x128xf32>
    %14 = arith.maximumf %12, %13 : vector<1x128xf32>
    %cst_13 = arith.constant dense<0.000000e+00> : vector<1xf32>
    %15 = vector.multi_reduction <add>, %14, %cst_13 [1] : vector<1x128xf32> to vector<1xf32>
    %16 = vector.shape_cast %15 : vector<1xf32> to vector<1x1xf32>
    %cst_14 = arith.constant 1.280000e+02 : f32
    %17 = vector.broadcast %cst_14 : f32 to vector<1x1xf32>
    %18 = arith.divf %16, %17 : vector<1x1xf32>
    %19 = vector.broadcast %18 : vector<1x1xf32> to vector<1x128xf32>
    %20 = arith.subf %14, %19 : vector<1x128xf32>
    %21 = arith.mulf %20, %20 : vector<1x128xf32>
    %cst_15 = arith.constant dense<0.000000e+00> : vector<1xf32>
    %22 = vector.multi_reduction <add>, %21, %cst_15 [1] : vector<1x128xf32> to vector<1xf32>
    %23 = vector.shape_cast %22 : vector<1xf32> to vector<1x1xf32>
    %cst_16 = arith.constant 1.280000e+02 : f32
    %24 = vector.broadcast %cst_16 : f32 to vector<1x1xf32>
    %25 = arith.divf %23, %24 : vector<1x1xf32>
    %26 = vector.broadcast %18 : vector<1x1xf32> to vector<1x128xf32>
    %27 = arith.subf %14, %26 : vector<1x128xf32>
    %cst_17 = arith.constant 9.99999974E-6 : f32
    %28 = vector.broadcast %cst_17 : f32 to vector<1x1xf32>
    %29 = arith.addf %25, %28 : vector<1x1xf32>
    %30 = math.rsqrt %29 : vector<1x1xf32>
    %31 = vector.broadcast %30 : vector<1x1xf32> to vector<1x128xf32>
    %32 = arith.mulf %27, %31 : vector<1x128xf32>
    %c0_18 = arith.constant 0 : index
    %c0_19 = arith.constant 0 : index
    %33 = vector.load %arg6[%c0_18, %c0_19] : memref<1x128xf32, #tpu.memory_space<vmem>>, vector<1x128xf32>
    %34 = arith.mulf %32, %33 : vector<1x128xf32>
    %c0_20 = arith.constant 0 : index
    %c0_21 = arith.constant 0 : index
    %35 = vector.load %arg7[%c0_20, %c0_21] : memref<1x128xf32, #tpu.memory_space<vmem>>, vector<1x128xf32>
    %36 = arith.addf %34, %35 : vector<1x128xf32>
    %c0_22 = arith.constant 0 : index
    %c0_23 = arith.constant 0 : index
    %c0_24 = arith.constant 0 : index
    %37 = vector.load %arg8[%c0_22, %c0_23, %c0_24] : memref<1x1x128xf32, #tpu.memory_space<vmem>>, vector<1x1x128xf32>
    %38 = vector.shape_cast %37 : vector<1x1x128xf32> to vector<1x128xf32>
    %39 = vector.shape_cast %36 : vector<1x128xf32> to vector<1x1x128xf32>
    tpu.vector_store %arg8[%c0_22, %c0_23, %c0_24], %39 {strides = array<i32>} : memref<1x1x128xf32, #tpu.memory_space<vmem>>, vector<1x1x128xf32>,
    return
  }
  func.func @transform_0(%arg0: i32) -> (i32, i32, i32) {
    %c0_i32 = arith.constant 0 : i32
    %c0_i32_0 = arith.constant 0 : i32
    %c0_i32_1 = arith.constant 0 : i32
    return %arg0, %c0_i32, %c0_i32_0 : i32, i32, i32
  }
  func.func @transform_1(%arg0: i32) -> (i32, i32) {
    %c0_i32 = arith.constant 0 : i32
    %c0_i32_0 = arith.constant 0 : i32
    %c0_i32_1 = arith.constant 0 : i32
    return %c0_i32, %c0_i32_0 : i32, i32
  }
  func.func @transform_2(%arg0: i32) -> (i32, i32) {
    %c0_i32 = arith.constant 0 : i32
    %c0_i32_0 = arith.constant 0 : i32
    %c0_i32_1 = arith.constant 0 : i32
    return %c0_i32, %c0_i32_0 : i32, i32
  }
  func.func @transform_3(%arg0: i32) -> (i32, i32) {
    %c0_i32 = arith.constant 0 : i32
    %c0_i32_0 = arith.constant 0 : i32
    %c0_i32_1 = arith.constant 0 : i32
    return %c0_i32, %c0_i32_0 : i32, i32
  }
  func.func @transform_4(%arg0: i32) -> (i32, i32) {
    %c0_i32 = arith.constant 0 : i32
    %c0_i32_0 = arith.constant 0 : i32
    %c0_i32_1 = arith.constant 0 : i32
    return %c0_i32, %c0_i32_0 : i32, i32
  }
  func.func @transform_5(%arg0: i32) -> (i32, i32) {
    %c0_i32 = arith.constant 0 : i32
    %c0_i32_0 = arith.constant 0 : i32
    %c0_i32_1 = arith.constant 0 : i32
    return %c0_i32, %c0_i32_0 : i32, i32
  }
  func.func @transform_6(%arg0: i32) -> (i32, i32) {
    %c0_i32 = arith.constant 0 : i32
    %c0_i32_0 = arith.constant 0 : i32
    %c0_i32_1 = arith.constant 0 : i32
    return %c0_i32, %c0_i32_0 : i32, i32
  }
  func.func @transform_7(%arg0: i32) -> (i32, i32, i32) {
    %c0_i32 = arith.constant 0 : i32
    %c0_i32_0 = arith.constant 0 : i32
    %c0_i32_1 = arith.constant 0 : i32
    return %arg0, %c0_i32, %c0_i32_0 : i32, i32, i32
  }
}

</mosaic_0001>

<llo_original>
// kernel: light_cnn_forward.3
$region0: #{light_cnn_forward.3}
  #allocation0 [shape = 'u32[]', space=smem, size = 0x4, offset = 0x4, fixed_abs, tag = 'smem constant byte address 0x4 - core index']
  #allocation1 [shape = 'u32[144,128]{1,0:T(1,128)}', space=vmem, size = 0x12000, scoped, tag = 'internal scratch']
  %s0 = inlined_call_operand.vmem [shape: bf16[56,1024], index: 0, kind: input, shape index: {}]
  %s1 = inlined_call_operand.vmem [shape: bf16[1024,128], index: 1, kind: input, shape index: {}]
  %s2 = inlined_call_operand.vmem [shape: f32[1,128], index: 2, kind: input, shape index: {}]
  %s3 = inlined_call_operand.vmem [shape: bf16[56,128], index: 3, kind: output, shape index: {}]
  %s4 = sld [smem:[#allocation0]]
  $region22: #{light_cnn_forward.3} parent=0
    _
  %s6 = ssub.s32 1, %s4
  %s7 = scalar_select 0, %s6, %s4
  // Predicated region
  $region2: #{light_cnn_forward.3} parent=0 // pred_check
    _
  $region3: #{light_cnn_forward.3} parent=0 // pred_check_branch
    %9 = sbr.rel (0) target = $region5
  $region4: #{light_cnn_forward.3} parent=0 // pred_region
    _
  $region5: #{light_cnn_forward.3} parent=0 // pred_fallthru
    _
  // Predicated region
  $region6: #{light_cnn_forward.3} parent=0 // pred_check
    _
  $region7: #{light_cnn_forward.3} parent=0 // pred_check_branch
    %11 = sbr.rel (0) target = $region9
  $region8: #{light_cnn_forward.3} parent=0 // pred_region
    _
  $region9: #{light_cnn_forward.3} parent=0 // pred_fallthru
    _
  // Predicated region
  $region10: #{light_cnn_forward.3} parent=0 // pred_check
    _
  $region11: #{light_cnn_forward.3} parent=0 // pred_check_branch
    %13 = sbr.rel (0) target = $region13
  $region12: #{light_cnn_forward.3} parent=0 // pred_region
    _
  $region13: #{light_cnn_forward.3} parent=0 // pred_fallthru
    _
  %v15 = vld [vmem:[%s0] sm:$0xff]
  %v16 = vld [vmem:[%s0 + $0x8] sm:$0xff]
  %v17 = vld [vmem:[%s0 + $0x10] sm:$0xff]
  %v18 = vld [vmem:[%s0 + $0x18] sm:$0xff]
  %v19 = vld [vmem:[%s0 + $0x20] sm:$0xff]
  %v20 = vld [vmem:[%s0 + $0x28] sm:$0xff]
  %v21 = vld [vmem:[%s0 + $0x30] sm:$0xff]
  %v22 = vld [vmem:[%s0 + $0x38] sm:$0xff]
  %v23 = vld [vmem:[%s0 + $0x40] sm:$0xff]
  %v24 = vld [vmem:[%s0 + $0x48] sm:$0xff]
  %v25 = vld [vmem:[%s0 + $0x50] sm:$0xff]
  %v26 = vld [vmem:[%s0 + $0x58] sm:$0xff]
  %v27 = vld [vmem:[%s0 + $0x60] sm:$0xff]
  %v28 = vld [vmem:[%s0 + $0x68] sm:$0xff]
  %v29 = vld [vmem:[%s0 + $0x70] sm:$0xff]
  %v30 = vld [vmem:[%s0 + $0x78] sm:$0xff]
  %v31 = vld [vmem:[%s0 + $0x80] sm:$0xff]
  %v32 = vld [vmem:[%s0 + $0x88] sm:$0xff]
  %v33 = vld [vmem:[%s0 + $0x90] sm:$0xff]
  %v34 = vld [vmem:[%s0 + $0x98] sm:$0xff]
  %v35 = vld [vmem:[%s0 + $0xa0] sm:$0xff]
  %v36 = vld [vmem:[%s0 + $0xa8] sm:$0xff]
  %v37 = vld [vmem:[%s0 + $0xb0] sm:$0xff]
  %v38 = vld [vmem:[%s0 + $0xb8] sm:$0xff]
  %v39 = vld [vmem:[%s0 + $0xc0] sm:$0xff]
  %v40 = vld [vmem:[%s0 + $0xc8] sm:$0xff]
  %v41 = vld [vmem:[%s0 + $0xd0] sm:$0xff]
  %v42 = vld [vmem:[%s0 + $0xd8] sm:$0xff]
  %v43 = vld [vmem:[%s1] sm:$0xf]
  %v44 = vld [vmem:[%s1 + $0x4] sm:$0xf]
  %v45 = vld [vmem:[%s1 + $0x8] sm:$0xf]
  %v46 = vld [vmem:[%s1 + $0xc] sm:$0xf]
  %v47 = vld [vmem:[%s1 + $0x10] sm:$0xf]
  %v48 = vld [vmem:[%s1 + $0x14] sm:$0xf]
  %v49 = vld [vmem:[%s1 + $0x18] sm:$0xf]
  %v50 = vld [vmem:[%s1 + $0x1c] sm:$0xf]
  %v51 = vld [vmem:[%s1 + $0x20] sm:$0xf]
  %v52 = vld [vmem:[%s1 + $0x24] sm:$0xf]
  %v53 = vld [vmem:[%s1 + $0x28] sm:$0xf]
  %v54 = vld [vmem:[%s1 + $0x2c] sm:$0xf]
  %v55 = vld [vmem:[%s1 + $0x30] sm:$0xf]
  %v56 = vld [vmem:[%s1 + $0x34] sm:$0xf]
  %v57 = vld [vmem:[%s1 + $0x38] sm:$0xf]
  %v58 = vld [vmem:[%s1 + $0x3c] sm:$0xf]
  %v59 = vld [vmem:[%s1 + $0x40] sm:$0xf]
  %v60 = vld [vmem:[%s1 + $0x44] sm:$0xf]
  %v61 = vld [vmem:[%s1 + $0x48] sm:$0xf]
  %v62 = vld [vmem:[%s1 + $0x4c] sm:$0xf]
  %v63 = vld [vmem:[%s1 + $0x50] sm:$0xf]
  %v64 = vld [vmem:[%s1 + $0x54] sm:$0xf]
  %v65 = vld [vmem:[%s1 + $0x58] sm:$0xf]
  %v66 = vld [vmem:[%s1 + $0x5c] sm:$0xf]
  %v67 = vld [vmem:[%s1 + $0x60] sm:$0xf]
  %v68 = vld [vmem:[%s1 + $0x64] sm:$0xf]
  %v69 = vld [vmem:[%s1 + $0x68] sm:$0xf]
  %v70 = vld [vmem:[%s1 + $0x6c] sm:$0xf]
  %v71 = vld [vmem:[%s1 + $0x70] sm:$0xf]
  %v72 = vld [vmem:[%s1 + $0x74] sm:$0xf]
  %v73 = vld [vmem:[%s1 + $0x78] sm:$0xf]
  %v74 = vld [vmem:[%s1 + $0x7c] sm:$0xf]
  %v75 = vld [vmem:[%s1 + $0x80] sm:$0xf]
  %v76 = vld [vmem:[%s1 + $0x84] sm:$0xf]
  %v77 = vld [vmem:[%s1 + $0x88] sm:$0xf]
  %v78 = vld [vmem:[%s1 + $0x8c] sm:$0xf]
  %v79 = vld [vmem:[%s1 + $0x90] sm:$0xf]
  %v80 = vld [vmem:[%s1 + $0x94] sm:$0xf]
  %v81 = vld [vmem:[%s1 + $0x98] sm:$0xf]
  %v82 = vld [vmem:[%s1 + $0x9c] sm:$0xf]
  %v83 = vld [vmem:[%s1 + $0xa0] sm:$0xf]
  %v84 = vld [vmem:[%s1 + $0xa4] sm:$0xf]
  %v85 = vld [vmem:[%s1 + $0xa8] sm:$0xf]
  %v86 = vld [vmem:[%s1 + $0xac] sm:$0xf]
  %v87 = vld [vmem:[%s1 + $0xb0] sm:$0xf]
  %v88 = vld [vmem:[%s1 + $0xb4] sm:$0xf]
  %v89 = vld [vmem:[%s1 + $0xb8] sm:$0xf]
  %v90 = vld [vmem:[%s1 + $0xbc] sm:$0xf]
  %v91 = vld [vmem:[%s1 + $0xc0] sm:$0xf]
  %v92 = vld [vmem:[%s1 + $0xc4] sm:$0xf]
  %v93 = vld [vmem:[%s1 + $0xc8] sm:$0xf]
  %v94 = vld [vmem:[%s1 + $0xcc] sm:$0xf]
  %v95 = vld [vmem:[%s1 + $0xd0] sm:$0xf]
  %v96 = vld [vmem:[%s1 + $0xd4] sm:$0xf]
  %v97 = vld [vmem:[%s1 + $0xd8] sm:$0xf]
  %v98 = vld [vmem:[%s1 + $0xdc] sm:$0xf]
  %v99 = vld [vmem:[%s1 + $0xe0] sm:$0xf]
  %v100 = vld [vmem:[%s1 + $0xe4] sm:$0xf]
  %v101 = vld [vmem:[%s1 + $0xe8] sm:$0xf]
  %v102 = vld [vmem:[%s1 + $0xec] sm:$0xf]
  %v103 = vld [vmem:[%s1 + $0xf0] sm:$0xf]
  %v104 = vld [vmem:[%s1 + $0xf4] sm:$0xf]
  %v105 = vld [vmem:[%s1 + $0xf8] sm:$0xf]
  %v106 = vld [vmem:[%s1 + $0xfc] sm:$0xf]
  %v107 = vld [vmem:[%s1 + $0x100] sm:$0xf]
  %v108 = vld [vmem:[%s1 + $0x104] sm:$0xf]
  %v109 = vld [vmem:[%s1 + $0x108] sm:$0xf]
  %v110 = vld [vmem:[%s1 + $0x10c] sm:$0xf]
  %v111 = vld [vmem:[%s1 + $0x110] sm:$0xf]
  %v112 = vld [vmem:[%s1 + $0x114] sm:$0xf]
  %v113 = vld [vmem:[%s1 + $0x118] sm:$0xf]
  %v114 = vld [vmem:[%s1 + $0x11c] sm:$0xf]
  %v115 = vld [vmem:[%s1 + $0x120] sm:$0xf]
  %v116 = vld [vmem:[%s1 + $0x124] sm:$0xf]
  %v117 = vld [vmem:[%s1 + $0x128] sm:$0xf]
  %v118 = vld [vmem:[%s1 + $0x12c] sm:$0xf]
  %v119 = vld [vmem:[%s1 + $0x130] sm:$0xf]
  %v120 = vld [vmem:[%s1 + $0x134] sm:$0xf]
  %v121 = vld [vmem:[%s1 + $0x138] sm:$0xf]
  %v122 = vld [vmem:[%s1 + $0x13c] sm:$0xf]
  %v123 = vld [vmem:[%s1 + $0x140] sm:$0xf]
  %v124 = vld [vmem:[%s1 + $0x144] sm:$0xf]
  %v125 = vld [vmem:[%s1 + $0x148] sm:$0xf]
  %v126 = vld [vmem:[%s1 + $0x14c] sm:$0xf]
  %v127 = vld [vmem:[%s1 + $0x150] sm:$0xf]
  %v128 = vld [vmem:[%s1 + $0x154] sm:$0xf]
  %v129 = vld [vmem:[%s1 + $0x158] sm:$0xf]
  %v130 = vld [vmem:[%s1 + $0x15c] sm:$0xf]
  %v131 = vld [vmem:[%s1 + $0x160] sm:$0xf]
  %v132 = vld [vmem:[%s1 + $0x164] sm:$0xf]
  %v133 = vld [vmem:[%s1 + $0x168] sm:$0xf]
  %v134 = vld [vmem:[%s1 + $0x16c] sm:$0xf]
  %v135 = vld [vmem:[%s1 + $0x170] sm:$0xf]
  %v136 = vld [vmem:[%s1 + $0x174] sm:$0xf]
  %v137 = vld [vmem:[%s1 + $0x178] sm:$0xf]
  %v138 = vld [vmem:[%s1 + $0x17c] sm:$0xf]
  %v139 = vld [vmem:[%s1 + $0x180] sm:$0xf]
  %v140 = vld [vmem:[%s1 + $0x184] sm:$0xf]
  %v141 = vld [vmem:[%s1 + $0x188] sm:$0xf]
  %v142 = vld [vmem:[%s1 + $0x18c] sm:$0xf]
  %v143 = vld [vmem:[%s1 + $0x190] sm:$0xf]
  %v144 = vld [vmem:[%s1 + $0x194] sm:$0xf]
  %v145 = vld [vmem:[%s1 + $0x198] sm:$0xf]
  %v146 = vld [vmem:[%s1 + $0x19c] sm:$0xf]
  %v147 = vld [vmem:[%s1 + $0x1a0] sm:$0xf]
  %v148 = vld [vmem:[%s1 + $0x1a4] sm:$0xf]
  %v149 = vld [vmem:[%s1 + $0x1a8] sm:$0xf]
  %v150 = vld [vmem:[%s1 + $0x1ac] sm:$0xf]
  %v151 = vld [vmem:[%s1 + $0x1b0] sm:$0xf]
  %v152 = vld [vmem:[%s1 + $0x1b4] sm:$0xf]
  %v153 = vld [vmem:[%s1 + $0x1b8] sm:$0xf]
  %v154 = vld [vmem:[%s1 + $0x1bc] sm:$0xf]
  %v155 = vld [vmem:[%s1 + $0x1c0] sm:$0xf]
  %v156 = vld [vmem:[%s1 + $0x1c4] sm:$0xf]
  %v157 = vld [vmem:[%s1 + $0x1c8] sm:$0xf]
  %v158 = vld [vmem:[%s1 + $0x1cc] sm:$0xf]
  %v159 = vld [vmem:[%s1 + $0x1d0] sm:$0xf]
  %v160 = vld [vmem:[%s1 + $0x1d4] sm:$0xf]
  %v161 = vld [vmem:[%s1 + $0x1d8] sm:$0xf]
  %v162 = vld [vmem:[%s1 + $0x1dc] sm:$0xf]
  %v163 = vld [vmem:[%s1 + $0x1e0] sm:$0xf]
  %v164 = vld [vmem:[%s1 + $0x1e4] sm:$0xf]
  %v165 = vld [vmem:[%s1 + $0x1e8] sm:$0xf]
  %v166 = vld [vmem:[%s1 + $0x1ec] sm:$0xf]
  %v167 = vld [vmem:[%s1 + $0x1f0] sm:$0xf]
  %v168 = vld [vmem:[%s1 + $0x1f4] sm:$0xf]
  %v169 = vld [vmem:[%s1 + $0x1f8] sm:$0xf]
  %v170 = vld [vmem:[%s1 + $0x1fc] sm:$0xf]
  %v171 = vld [vmem:[%s2] sm:$0x1]
  %v173 = vlaneseq
  %v174 = vshrl.u32 %v173, 7
  %v175 = vsub.s32 0, %v174
  %v176 = vrot.slane %v171, %v175
  %v206 = vunpack.c.l.b16 %v15
  %v207 = vunpack.c.h.b16 %v15
  %v208 = vunpack.c.l.b16 %v16
  %v209 = vunpack.c.h.b16 %v16
  %v210 = vunpack.c.l.b16 %v17
  %v211 = vunpack.c.h.b16 %v17
  %v212 = vunpack.c.l.b16 %v18
  %v213 = vunpack.c.h.b16 %v18
  %v214 = vunpack.c.l.b16 %v19
  %v215 = vunpack.c.h.b16 %v19
  %v216 = vunpack.c.l.b16 %v20
  %v217 = vunpack.c.h.b16 %v20
  %v218 = vunpack.c.l.b16 %v21
  %v219 = vunpack.c.h.b16 %v21
  %v220 = vunpack.c.l.b16 %v22
  %v221 = vunpack.c.h.b16 %v22
  %v222 = vunpack.c.l.b16 %v23
  %v223 = vunpack.c.h.b16 %v23
  %v224 = vunpack.c.l.b16 %v24
  %v225 = vunpack.c.h.b16 %v24
  %v226 = vunpack.c.l.b16 %v25
  %v227 = vunpack.c.h.b16 %v25
  %v228 = vunpack.c.l.b16 %v26
  %v229 = vunpack.c.h.b16 %v26
  %v230 = vunpack.c.l.b16 %v27
  %v231 = vunpack.c.h.b16 %v27
  %v232 = vunpack.c.l.b16 %v28
  %v233 = vunpack.c.h.b16 %v28
  %v234 = vunpack.c.l.b16 %v29
  %v235 = vunpack.c.h.b16 %v29
  %v236 = vunpack.c.l.b16 %v30
  %v237 = vunpack.c.h.b16 %v30
  %v238 = vunpack.c.l.b16 %v31
  %v239 = vunpack.c.h.b16 %v31
  %v240 = vunpack.c.l.b16 %v32
  %v241 = vunpack.c.h.b16 %v32
  %v242 = vunpack.c.l.b16 %v33
  %v243 = vunpack.c.h.b16 %v33
  %v244 = vunpack.c.l.b16 %v34
  %v245 = vunpack.c.h.b16 %v34
  %v246 = vunpack.c.l.b16 %v35
  %v247 = vunpack.c.h.b16 %v35
  %v248 = vunpack.c.l.b16 %v36
  %v249 = vunpack.c.h.b16 %v36
  %v250 = vunpack.c.l.b16 %v37
  %v251 = vunpack.c.h.b16 %v37
  %v252 = vunpack.c.l.b16 %v38
  %v253 = vunpack.c.h.b16 %v38
  %v254 = vunpack.c.l.b16 %v39
  %v255 = vunpack.c.h.b16 %v39
  %v256 = vunpack.c.l.b16 %v40
  %v257 = vunpack.c.h.b16 %v40
  %v258 = vunpack.c.l.b16 %v41
  %v259 = vunpack.c.h.b16 %v41
  %v260 = vunpack.c.l.b16 %v42
  %v261 = vunpack.c.h.b16 %v42
  %v262 = vpack.c.b16 %v214, %v206
  %v263 = vpack.c.b16 %v215, %v207
  %v264 = vpack.c.b16 %v216, %v208
  %v265 = vpack.c.b16 %v217, %v209
  %v266 = vpack.c.b16 %v218, %v210
  %v267 = vpack.c.b16 %v219, %v211
  %v268 = vpack.c.b16 %v220, %v212
  %v269 = vpack.c.b16 %v221, %v213
  %v270 = vpack.c.b16 %v230, %v222
  %v271 = vpack.c.b16 %v231, %v223
  %v272 = vpack.c.b16 %v232, %v224
  %v273 = vpack.c.b16 %v233, %v225
  %v274 = vpack.c.b16 %v234, %v226
  %v275 = vpack.c.b16 %v235, %v227
  %v276 = vpack.c.b16 %v236, %v228
  %v277 = vpack.c.b16 %v237, %v229
  %v278 = vpack.c.b16 %v246, %v238
  %v279 = vpack.c.b16 %v247, %v239
  %v280 = vpack.c.b16 %v248, %v240
  %v281 = vpack.c.b16 %v249, %v241
  %v282 = vpack.c.b16 %v250, %v242
  %v283 = vpack.c.b16 %v251, %v243
  %v284 = vpack.c.b16 %v252, %v244
  %v285 = vpack.c.b16 %v253, %v245
  %v286 = vpack.c.b16 %v254, %v254
  %v287 = vpack.c.b16 %v255, %v255
  %v288 = vpack.c.b16 %v256, %v256
  %v289 = vpack.c.b16 %v257, %v257
  %v290 = vpack.c.b16 %v258, %v258
  %v291 = vpack.c.b16 %v259, %v259
  %v292 = vpack.c.b16 %v260, %v260
  %v293 = vpack.c.b16 %v261, %v261
  %v454 = vunpack.c.l.b16 %v43
  %v455 = vunpack.c.l.b16 %v44
  %v456 = vunpack.c.l.b16 %v45
  %v457 = vunpack.c.l.b16 %v46
  %v458 = vunpack.c.l.b16 %v47
  %v459 = vunpack.c.l.b16 %v48
  %v460 = vunpack.c.l.b16 %v49
  %v461 = vunpack.c.l.b16 %v50
  %v462 = vunpack.c.l.b16 %v51
  %v463 = vunpack.c.l.b16 %v52
  %v464 = vunpack.c.l.b16 %v53
  %v465 = vunpack.c.l.b16 %v54
  %v466 = vunpack.c.l.b16 %v55
  %v467 = vunpack.c.l.b16 %v56
  %v468 = vunpack.c.l.b16 %v57
  %v469 = vunpack.c.l.b16 %v58
  %v470 = vunpack.c.l.b16 %v59
  %v471 = vunpack.c.l.b16 %v60
  %v472 = vunpack.c.l.b16 %v61
  %v473 = vunpack.c.l.b16 %v62
  %v474 = vunpack.c.l.b16 %v63
  %v475 = vunpack.c.l.b16 %v64
  %v476 = vunpack.c.l.b16 %v65
  %v477 = vunpack.c.l.b16 %v66
  %v478 = vunpack.c.l.b16 %v67
  %v479 = vunpack.c.l.b16 %v68
  %v480 = vunpack.c.l.b16 %v69
  %v481 = vunpack.c.l.b16 %v70
  %v482 = vunpack.c.l.b16 %v71
  %v483 = vunpack.c.l.b16 %v72
  %v484 = vunpack.c.l.b16 %v73
  %v485 = vunpack.c.l.b16 %v74
  %v486 = vunpack.c.l.b16 %v75
  %v487 = vunpack.c.l.b16 %v76
  %v488 = vunpack.c.l.b16 %v77
  %v489 = vunpack.c.l.b16 %v78
  %v490 = vunpack.c.l.b16 %v79
  %v491 = vunpack.c.l.b16 %v80
  %v492 = vunpack.c.l.b16 %v81
  %v493 = vunpack.c.l.b16 %v82
  %v494 = vunpack.c.l.b16 %v83
  %v495 = vunpack.c.l.b16 %v84
  %v496 = vunpack.c.l.b16 %v85
  %v497 = vunpack.c.l.b16 %v86
  %v498 = vunpack.c.l.b16 %v87
  %v499 = vunpack.c.l.b16 %v88
  %v500 = vunpack.c.l.b16 %v89
  %v501 = vunpack.c.l.b16 %v90
  %v502 = vunpack.c.l.b16 %v91
  %v503 = vunpack.c.l.b16 %v92
  %v504 = vunpack.c.l.b16 %v93
  %v505 = vunpack.c.l.b16 %v94
  %v506 = vunpack.c.l.b16 %v95
  %v507 = vunpack.c.l.b16 %v96
  %v508 = vunpack.c.l.b16 %v97
  %v509 = vunpack.c.l.b16 %v98
  %v510 = vunpack.c.l.b16 %v99
  %v511 = vunpack.c.l.b16 %v100
  %v512 = vunpack.c.l.b16 %v101
  %v513 = vunpack.c.l.b16 %v102
  %v514 = vunpack.c.l.b16 %v103
  %v515 = vunpack.c.l.b16 %v104
  %v516 = vunpack.c.l.b16 %v105
  %v517 = vunpack.c.l.b16 %v106
  %v518 = vunpack.c.l.b16 %v107
  %v519 = vunpack.c.l.b16 %v108
  %v520 = vunpack.c.l.b16 %v109
  %v521 = vunpack.c.l.b16 %v110
  %v522 = vunpack.c.l.b16 %v111
  %v523 = vunpack.c.l.b16 %v112
  %v524 = vunpack.c.l.b16 %v113
  %v525 = vunpack.c.l.b16 %v114
  %v526 = vunpack.c.l.b16 %v115
  %v527 = vunpack.c.l.b16 %v116
  %v528 = vunpack.c.l.b16 %v117
  %v529 = vunpack.c.l.b16 %v118
  %v530 = vunpack.c.l.b16 %v119
  %v531 = vunpack.c.l.b16 %v120
  %v532 = vunpack.c.l.b16 %v121
  %v533 = vunpack.c.l.b16 %v122
  %v534 = vunpack.c.l.b16 %v123
  %v535 = vunpack.c.l.b16 %v124
  %v536 = vunpack.c.l.b16 %v125
  %v537 = vunpack.c.l.b16 %v126
  %v538 = vunpack.c.l.b16 %v127
  %v539 = vunpack.c.l.b16 %v128
  %v540 = vunpack.c.l.b16 %v129
  %v541 = vunpack.c.l.b16 %v130
  %v542 = vunpack.c.l.b16 %v131
  %v543 = vunpack.c.l.b16 %v132
  %v544 = vunpack.c.l.b16 %v133
  %v545 = vunpack.c.l.b16 %v134
  %v546 = vunpack.c.l.b16 %v135
  %v547 = vunpack.c.l.b16 %v136
  %v548 = vunpack.c.l.b16 %v137
  %v549 = vunpack.c.l.b16 %v138
  %v550 = vunpack.c.l.b16 %v139
  %v551 = vunpack.c.l.b16 %v140
  %v552 = vunpack.c.l.b16 %v141
  %v553 = vunpack.c.l.b16 %v142
  %v554 = vunpack.c.l.b16 %v143
  %v555 = vunpack.c.l.b16 %v144
  %v556 = vunpack.c.l.b16 %v145
  %v557 = vunpack.c.l.b16 %v146
  %v558 = vunpack.c.l.b16 %v147
  %v559 = vunpack.c.l.b16 %v148
  %v560 = vunpack.c.l.b16 %v149
  %v561 = vunpack.c.l.b16 %v150
  %v562 = vunpack.c.l.b16 %v151
  %v563 = vunpack.c.l.b16 %v152
  %v564 = vunpack.c.l.b16 %v153
  %v565 = vunpack.c.l.b16 %v154
  %v566 = vunpack.c.l.b16 %v155
  %v567 = vunpack.c.l.b16 %v156
  %v568 = vunpack.c.l.b16 %v157
  %v569 = vunpack.c.l.b16 %v158
  %v570 = vunpack.c.l.b16 %v159
  %v571 = vunpack.c.l.b16 %v160
  %v572 = vunpack.c.l.b16 %v161
  %v573 = vunpack.c.l.b16 %v162
  %v574 = vunpack.c.l.b16 %v163
  %v575 = vunpack.c.l.b16 %v164
  %v576 = vunpack.c.l.b16 %v165
  %v577 = vunpack.c.l.b16 %v166
  %v578 = vunpack.c.l.b16 %v167
  %v579 = vunpack.c.l.b16 %v168
  %v580 = vunpack.c.l.b16 %v169
  %v581 = vunpack.c.l.b16 %v170
  %v582 = vpack.c.b16 %v455, %v454
  %v583 = vpack.c.b16 %v457, %v456
  %v584 = vpack.c.b16 %v459, %v458
  %v585 = vpack.c.b16 %v461, %v460
  %v586 = vpack.c.b16 %v463, %v462
  %v587 = vpack.c.b16 %v465, %v464
  %v588 = vpack.c.b16 %v467, %v466
  %v589 = vpack.c.b16 %v469, %v468
  %v590 = vpack.c.b16 %v471, %v470
  %v591 = vpack.c.b16 %v473, %v472
  %v592 = vpack.c.b16 %v475, %v474
  %v593 = vpack.c.b16 %v477, %v476
  %v594 = vpack.c.b16 %v479, %v478
  %v595 = vpack.c.b16 %v481, %v480
  %v596 = vpack.c.b16 %v483, %v482
  %v597 = vpack.c.b16 %v485, %v484
  %v598 = vpack.c.b16 %v487, %v486
  %v599 = vpack.c.b16 %v489, %v488
  %v600 = vpack.c.b16 %v491, %v490
  %v601 = vpack.c.b16 %v493, %v492
  %v602 = vpack.c.b16 %v495, %v494
  %v603 = vpack.c.b16 %v497, %v496
  %v604 = vpack.c.b16 %v499, %v498
  %v605 = vpack.c.b16 %v501, %v500
  %v606 = vpack.c.b16 %v503, %v502
  %v607 = vpack.c.b16 %v505, %v504
  %v608 = vpack.c.b16 %v507, %v506
  %v609 = vpack.c.b16 %v509, %v508
  %v610 = vpack.c.b16 %v511, %v510
  %v611 = vpack.c.b16 %v513, %v512
  %v612 = vpack.c.b16 %v515, %v514
  %v613 = vpack.c.b16 %v517, %v516
  %v614 = vpack.c.b16 %v519, %v518
  %v615 = vpack.c.b16 %v521, %v520
  %v616 = vpack.c.b16 %v523, %v522
  %v617 = vpack.c.b16 %v525, %v524
  %v618 = vpack.c.b16 %v527, %v526
  %v619 = vpack.c.b16 %v529, %v528
  %v620 = vpack.c.b16 %v531, %v530
  %v621 = vpack.c.b16 %v533, %v532
  %v622 = vpack.c.b16 %v535, %v534
  %v623 = vpack.c.b16 %v537, %v536
  %v624 = vpack.c.b16 %v539, %v538
  %v625 = vpack.c.b16 %v541, %v540
  %v626 = vpack.c.b16 %v543, %v542
  %v627 = vpack.c.b16 %v545, %v544
  %v628 = vpack.c.b16 %v547, %v546
  %v629 = vpack.c.b16 %v549, %v548
  %v630 = vpack.c.b16 %v551, %v550
  %v631 = vpack.c.b16 %v553, %v552
  %v632 = vpack.c.b16 %v555, %v554
  %v633 = vpack.c.b16 %v557, %v556
  %v634 = vpack.c.b16 %v559, %v558
  %v635 = vpack.c.b16 %v561, %v560
  %v636 = vpack.c.b16 %v563, %v562
  %v637 = vpack.c.b16 %v565, %v564
  %v638 = vpack.c.b16 %v567, %v566
  %v639 = vpack.c.b16 %v569, %v568
  %v640 = vpack.c.b16 %v571, %v570
  %v641 = vpack.c.b16 %v573, %v572
  %v642 = vpack.c.b16 %v575, %v574
  %v643 = vpack.c.b16 %v577, %v576
  %v644 = vpack.c.b16 %v579, %v578
  %v645 = vpack.c.b16 %v581, %v580
  %710 = vmatprep.subr.bf16.mxu0 0
  %711 = vmatpush1.bf16.msra.mxu0 %v582
  %712 = vmatprep.subr.bf16.mxu0 0
  %713 = vmatpush1.bf16.msra.mxu0 %v583
  %714 = vmatprep.subr.bf16.mxu0 0
  %715 = vmatpush1.bf16.msra.mxu0 %v584
  %716 = vmatprep.subr.bf16.mxu0 0
  %717 = vmatpush1.bf16.msra.mxu0 %v585
  %718 = vmatprep.subr.bf16.mxu0 0
  %719 = vmatpush1.bf16.msra.mxu0 %v586
  %720 = vmatprep.subr.bf16.mxu0 0
  %721 = vmatpush1.bf16.msra.mxu0 %v587
  %722 = vmatprep.subr.bf16.mxu0 0
  %723 = vmatpush1.bf16.msra.mxu0 %v588
  %724 = vmatprep.subr.bf16.mxu0 0
  %725 = vmatpush1.bf16.msra.mxu0 %v589
  %726 = vmatprep.subr.bf16.mxu0 0
  %727 = vmatpush1.bf16.msra.mxu0 %v590
  %728 = vmatprep.subr.bf16.mxu0 0
  %729 = vmatpush1.bf16.msra.mxu0 %v591
  %730 = vmatprep.subr.bf16.mxu0 0
  %731 = vmatpush1.bf16.msra.mxu0 %v592
  %732 = vmatprep.subr.bf16.mxu0 0
  %733 = vmatpush1.bf16.msra.mxu0 %v593
  %734 = vmatprep.subr.bf16.mxu0 0
  %735 = vmatpush1.bf16.msra.mxu0 %v594
  %736 = vmatprep.subr.bf16.mxu0 0
  %737 = vmatpush1.bf16.msra.mxu0 %v595
  %738 = vmatprep.subr.bf16.mxu0 0
  %739 = vmatpush1.bf16.msra.mxu0 %v596
  %740 = vmatprep.subr.bf16.mxu0 0
  %741 = vmatpush1.bf16.msra.mxu0 %v597
  %742 = vmatprep.mubr.bf16.mxu0 %v263
  %743 = vmatmul.mubr.bf16.gmra.mrb[0].mxu0 %v262
  %v744 = vpop.f32.mrb[0].mxu0
  %v745 = vadd.f32 %v176, %v744
  %v746 = vpop.f32.mrb[0].mxu0
  %v747 = vpop.f32.mrb[0].mxu0
  %v748 = vadd.f32 %v176, %v747
  %v749 = vpop.f32.mrb[0].mxu0
  %750 = vmatprep.mubr.bf16.mxu0 %v271
  %751 = vmatmul.mubr.bf16.gmra.mrb[0].mxu0 %v270
  %v752 = vpop.f32.mrb[0].mxu0
  %v753 = vadd.f32 %v176, %v752
  %v754 = vpop.f32.mrb[0].mxu0
  %v755 = vpop.f32.mrb[0].mxu0
  %v756 = vadd.f32 %v176, %v755
  %v757 = vpop.f32.mrb[0].mxu0
  %758 = vmatprep.mubr.bf16.mxu0 %v279
  %759 = vmatmul.mubr.bf16.gmra.mrb[0].mxu0 %v278
  %v760 = vpop.f32.mrb[0].mxu0
  %v761 = vadd.f32 %v176, %v760
  %v762 = vpop.f32.mrb[0].mxu0
  %v763 = vpop.f32.mrb[0].mxu0
  %v764 = vadd.f32 %v176, %v763
  %v765 = vpop.f32.mrb[0].mxu0
  %766 = vmatprep.mubr.bf16.mxu0 %v287
  %767 = vmatmul.mubr.bf16.gmra.mrb[0].mxu0 %v286
  %v768 = vpop.f32.mrb[0].mxu0
  %v769 = vadd.f32 %v176, %v768
  %v770 = vpop.f32.mrb[0].mxu0
  %v771 = vpop.f32.mrb[0].mxu0
  %v772 = vpop.f32.mrb[0].mxu0
  %773 = vdwg.mxu0
  %774 = vmatprep.subr.bf16.mxu0 0
  %775 = vmatpush1.bf16.msra.mxu0 %v598
  %776 = vmatprep.subr.bf16.mxu0 0
  %777 = vmatpush1.bf16.msra.mxu0 %v599
  %778 = vmatprep.subr.bf16.mxu0 0
  %779 = vmatpush1.bf16.msra.mxu0 %v600
  %780 = vmatprep.subr.bf16.mxu0 0
  %781 = vmatpush1.bf16.msra.mxu0 %v601
  %782 = vmatprep.subr.bf16.mxu0 0
  %783 = vmatpush1.bf16.msra.mxu0 %v602
  %784 = vmatprep.subr.bf16.mxu0 0
  %785 = vmatpush1.bf16.msra.mxu0 %v603
  %786 = vmatprep.subr.bf16.mxu0 0
  %787 = vmatpush1.bf16.msra.mxu0 %v604
  %788 = vmatprep.subr.bf16.mxu0 0
  %789 = vmatpush1.bf16.msra.mxu0 %v605
  %790 = vmatprep.subr.bf16.mxu0 0
  %791 = vmatpush1.bf16.msra.mxu0 %v606
  %792 = vmatprep.subr.bf16.mxu0 0
  %793 = vmatpush1.bf16.msra.mxu0 %v607
  %794 = vmatprep.subr.bf16.mxu0 0
  %795 = vmatpush1.bf16.msra.mxu0 %v608
  %796 = vmatprep.subr.bf16.mxu0 0
  %797 = vmatpush1.bf16.msra.mxu0 %v609
  %798 = vmatprep.subr.bf16.mxu0 0
  %799 = vmatpush1.bf16.msra.mxu0 %v610
  %800 = vmatprep.subr.bf16.mxu0 0
  %801 = vmatpush1.bf16.msra.mxu0 %v611
  %802 = vmatprep.subr.bf16.mxu0 0
  %803 = vmatpush1.bf16.msra.mxu0 %v612
  %804 = vmatprep.subr.bf16.mxu0 0
  %805 = vmatpush1.bf16.msra.mxu0 %v613
  %806 = vmatprep.mubr.bf16.mxu0 %v265
  %807 = vmatmul.mubr.bf16.gmra.mrb[0].mxu0 %v264
  %v808 = vpop.f32.mrb[0].mxu0
  %v809 = vadd.f32 %v745, %v808
  %v810 = vpop.f32.mrb[0].mxu0
  %v811 = vpop.f32.mrb[0].mxu0
  %v812 = vadd.f32 %v748, %v811
  %v813 = vpop.f32.mrb[0].mxu0
  %814 = vmatprep.mubr.bf16.mxu0 %v273
  %815 = vmatmul.mubr.bf16.gmra.mrb[0].mxu0 %v272
  %v816 = vpop.f32.mrb[0].mxu0
  %v817 = vadd.f32 %v753, %v816
  %v818 = vpop.f32.mrb[0].mxu0
  %v819 = vpop.f32.mrb[0].mxu0
  %v820 = vadd.f32 %v756, %v819
  %v821 = vpop.f32.mrb[0].mxu0
  %822 = vmatprep.mubr.bf16.mxu0 %v281
  %823 = vmatmul.mubr.bf16.gmra.mrb[0].mxu0 %v280
  %v824 = vpop.f32.mrb[0].mxu0
  %v825 = vadd.f32 %v761, %v824
  %v826 = vpop.f32.mrb[0].mxu0
  %v827 = vpop.f32.mrb[0].mxu0
  %v828 = vadd.f32 %v764, %v827
  %v829 = vpop.f32.mrb[0].mxu0
  %830 = vmatprep.mubr.bf16.mxu0 %v289
  %831 = vmatmul.mubr.bf16.gmra.mrb[0].mxu0 %v288
  %v832 = vpop.f32.mrb[0].mxu0
  %v833 = vadd.f32 %v769, %v832
  %v834 = vpop.f32.mrb[0].mxu0
  %v835 = vpop.f32.mrb[0].mxu0
  %v836 = vpop.f32.mrb[0].mxu0
  %837 = vdwg.mxu0
  %838 = vmatprep.subr.bf16.mxu0 0
  %839 = vmatpush1.bf16.msra.mxu0 %v614
  %840 = vmatprep.subr.bf16.mxu0 0
  %841 = vmatpush1.bf16.msra.mxu0 %v615
  %842 = vmatprep.subr.bf16.mxu0 0
  %843 = vmatpush1.bf16.msra.mxu0 %v616
  %844 = vmatprep.subr.bf16.mxu0 0
  %845 = vmatpush1.bf16.msra.mxu0 %v617
  %846 = vmatprep.subr.bf16.mxu0 0
  %847 = vmatpush1.bf16.msra.mxu0 %v618
  %848 = vmatprep.subr.bf16.mxu0 0
  %849 = vmatpush1.bf16.msra.mxu0 %v619
  %850 = vmatprep.subr.bf16.mxu0 0
  %851 = vmatpush1.bf16.msra.mxu0 %v620
  %852 = vmatprep.subr.bf16.mxu0 0
  %853 = vmatpush1.bf16.msra.mxu0 %v621
  %854 = vmatprep.subr.bf16.mxu0 0
  %855 = vmatpush1.bf16.msra.mxu0 %v622
  %856 = vmatprep.subr.bf16.mxu0 0
  %857 = vmatpush1.bf16.msra.mxu0 %v623
  %858 = vmatprep.subr.bf16.mxu0 0
  %859 = vmatpush1.bf16.msra.mxu0 %v624
  %860 = vmatprep.subr.bf16.mxu0 0
  %861 = vmatpush1.bf16.msra.mxu0 %v625
  %862 = vmatprep.subr.bf16.mxu0 0
  %863 = vmatpush1.bf16.msra.mxu0 %v626
  %864 = vmatprep.subr.bf16.mxu0 0
  %865 = vmatpush1.bf16.msra.mxu0 %v627
  %866 = vmatprep.subr.bf16.mxu0 0
  %867 = vmatpush1.bf16.msra.mxu0 %v628
  %868 = vmatprep.subr.bf16.mxu0 0
  %869 = vmatpush1.bf16.msra.mxu0 %v629
  %870 = vmatprep.mubr.bf16.mxu0 %v267
  %871 = vmatmul.mubr.bf16.gmra.mrb[0].mxu0 %v266
  %v872 = vpop.f32.mrb[0].mxu0
  %v873 = vadd.f32 %v809, %v872
  %v874 = vpop.f32.mrb[0].mxu0
  %v875 = vpop.f32.mrb[0].mxu0
  %v876 = vadd.f32 %v812, %v875
  %v877 = vpop.f32.mrb[0].mxu0
  %878 = vmatprep.mubr.bf16.mxu0 %v275
  %879 = vmatmul.mubr.bf16.gmra.mrb[0].mxu0 %v274
  %v880 = vpop.f32.mrb[0].mxu0
  %v881 = vadd.f32 %v817, %v880
  %v882 = vpop.f32.mrb[0].mxu0
  %v883 = vpop.f32.mrb[0].mxu0
  %v884 = vadd.f32 %v820, %v883
  %v885 = vpop.f32.mrb[0].mxu0
  %886 = vmatprep.mubr.bf16.mxu0 %v283
  %887 = vmatmul.mubr.bf16.gmra.mrb[0].mxu0 %v282
  %v888 = vpop.f32.mrb[0].mxu0
  %v889 = vadd.f32 %v825, %v888
  %v890 = vpop.f32.mrb[0].mxu0
  %v891 = vpop.f32.mrb[0].mxu0
  %v892 = vadd.f32 %v828, %v891
  %v893 = vpop.f32.mrb[0].mxu0
  %894 = vmatprep.mubr.bf16.mxu0 %v291
  %895 = vmatmul.mubr.bf16.gmra.mrb[0].mxu0 %v290
  %v896 = vpop.f32.mrb[0].mxu0
  %v897 = vadd.f32 %v833, %v896
  %v898 = vpop.f32.mrb[0].mxu0
  %v899 = vpop.f32.mrb[0].mxu0
  %v900 = vpop.f32.mrb[0].mxu0
  %901 = vdwg.mxu0
  %902 = vmatprep.subr.bf16.mxu0 0
  %903 = vmatpush1.bf16.msra.mxu0 %v630
  %904 = vmatprep.subr.bf16.mxu0 0
  %905 = vmatpush1.bf16.msra.mxu0 %v631
  %906 = vmatprep.subr.bf16.mxu0 0
  %907 = vmatpush1.bf16.msra.mxu0 %v632
  %908 = vmatprep.subr.bf16.mxu0 0
  %909 = vmatpush1.bf16.msra.mxu0 %v633
  %910 = vmatprep.subr.bf16.mxu0 0
  %911 = vmatpush1.bf16.msra.mxu0 %v634
  %912 = vmatprep.subr.bf16.mxu0 0
  %913 = vmatpush1.bf16.msra.mxu0 %v635
  %914 = vmatprep.subr.bf16.mxu0 0
  %915 = vmatpush1.bf16.msra.mxu0 %v636
  %916 = vmatprep.subr.bf16.mxu0 0
  %917 = vmatpush1.bf16.msra.mxu0 %v637
  %918 = vmatprep.subr.bf16.mxu0 0
  %919 = vmatpush1.bf16.msra.mxu0 %v638
  %920 = vmatprep.subr.bf16.mxu0 0
  %921 = vmatpush1.bf16.msra.mxu0 %v639
  %922 = vmatprep.subr.bf16.mxu0 0
  %923 = vmatpush1.bf16.msra.mxu0 %v640
  %924 = vmatprep.subr.bf16.mxu0 0
  %925 = vmatpush1.bf16.msra.mxu0 %v641
  %926 = vmatprep.subr.bf16.mxu0 0
  %927 = vmatpush1.bf16.msra.mxu0 %v642
  %928 = vmatprep.subr.bf16.mxu0 0
  %929 = vmatpush1.bf16.msra.mxu0 %v643
  %930 = vmatprep.subr.bf16.mxu0 0
  %931 = vmatpush1.bf16.msra.mxu0 %v644
  %932 = vmatprep.subr.bf16.mxu0 0
  %933 = vmatpush1.bf16.msra.mxu0 %v645
  %934 = vmatprep.mubr.bf16.mxu0 %v269
  %935 = vmatmul.mubr.bf16.gmra.mrb[0].mxu0 %v268
  %v936 = vpop.f32.mrb[0].mxu0
  %v937 = vadd.f32 %v873, %v936
  %v938 = vpop.f32.mrb[0].mxu0
  %v939 = vpop.f32.mrb[0].mxu0
  %v940 = vadd.f32 %v876, %v939
  %v941 = vpop.f32.mrb[0].mxu0
  %942 = vmatprep.mubr.bf16.mxu0 %v277
  %943 = vmatmul.mubr.bf16.gmra.mrb[0].mxu0 %v276
  %v944 = vpop.f32.mrb[0].mxu0
  %v945 = vadd.f32 %v881, %v944
  %v946 = vpop.f32.mrb[0].mxu0
  %v947 = vpop.f32.mrb[0].mxu0
  %v948 = vadd.f32 %v884, %v947
  %v949 = vpop.f32.mrb[0].mxu0
  %950 = vmatprep.mubr.bf16.mxu0 %v285
  %951 = vmatmul.mubr.bf16.gmra.mrb[0].mxu0 %v284
  %v952 = vpop.f32.mrb[0].mxu0
  %v953 = vadd.f32 %v889, %v952
  %v954 = vpop.f32.mrb[0].mxu0
  %v955 = vpop.f32.mrb[0].mxu0
  %v956 = vadd.f32 %v892, %v955
  %v957 = vpop.f32.mrb[0].mxu0
  %958 = vmatprep.mubr.bf16.mxu0 %v293
  %959 = vmatmul.mubr.bf16.gmra.mrb[0].mxu0 %v292
  %v960 = vpop.f32.mrb[0].mxu0
  %v961 = vadd.f32 %v897, %v960
  %v962 = vpop.f32.mrb[0].mxu0
  %v963 = vpop.f32.mrb[0].mxu0
  %v964 = vpop.f32.mrb[0].mxu0
  %965 = vdwg.mxu0
  %v966 = vmax.f32 %v937, 0.0
  %v967 = vmax.f32 %v940, 0.0
  %v968 = vmax.f32 %v945, 0.0
  %v969 = vmax.f32 %v948, 0.0
  %v970 = vmax.f32 %v953, 0.0
  %v971 = vmax.f32 %v956, 0.0
  %v972 = vmax.f32 %v961, 0.0
  %v973 = vpack.c.bf16 %v967, %v966
  %v974 = vpack.c.bf16 %v969, %v968
  %v975 = vpack.c.bf16 %v971, %v970
  %v976 = vpack.c.bf16 %v972, %v972
  %v981 = vunpack.c.l.b16 %v973
  %v982 = vunpack.c.h.b16 %v973
  %v983 = vunpack.c.l.b16 %v974
  %v984 = vunpack.c.h.b16 %v974
  %v985 = vunpack.c.l.b16 %v975
  %v986 = vunpack.c.h.b16 %v975
  %v987 = vunpack.c.l.b16 %v976
  %v988 = vpack.c.b16 %v981, %v981
  %v989 = vpack.c.b16 %v982, %v982
  %v990 = vpack.c.b16 %v983, %v983
  %v991 = vpack.c.b16 %v984, %v984
  %v992 = vpack.c.b16 %v985, %v985
  %v993 = vpack.c.b16 %v986, %v986
  %v994 = vpack.c.b16 %v987, %v987
  %1002 = vst [vmem:[%s3] sm:$0xf] %v988
  %1003 = vst [vmem:[%s3 + $0x4] sm:$0xf] %v989
  %1004 = vst [vmem:[%s3 + $0x8] sm:$0xf] %v990
  %1005 = vst [vmem:[%s3 + $0xc] sm:$0xf] %v991
  %1006 = vst [vmem:[%s3 + $0x10] sm:$0xf] %v992
  %1007 = vst [vmem:[%s3 + $0x14] sm:$0xf] %v993
  %1008 = vst [vmem:[%s3 + $0x18] sm:$0xf] %v994
  // Predicated region
  $region14: #{light_cnn_forward.3} parent=0 // pred_check
    _
  $region15: #{light_cnn_forward.3} parent=0 // pred_check_branch
    %1010 = sbr.rel (0) target = $region17
  $region16: #{light_cnn_forward.3} parent=0 // pred_region
    _
  $region17: #{light_cnn_forward.3} parent=0 // pred_fallthru
    _
  // Predicated region
  $region18: #{light_cnn_forward.3} parent=0 // pred_check
    _
  $region19: #{light_cnn_forward.3} parent=0 // pred_check_branch
    %1012 = sbr.rel (0) target = $region21
  $region20: #{light_cnn_forward.3} parent=0 // pred_region
    _
  $region21: #{light_cnn_forward.3} parent=0 // pred_fallthru
    _

// kernel: light_cnn_forward.4
$region0: #{light_cnn_forward.4}
  #allocation0 [shape = 'u32[]', space=smem, size = 0x4, offset = 0x4, fixed_abs, tag = 'smem constant byte address 0x4 - core index']
  #allocation1 [shape = 'u32[144,128]{1,0:T(1,128)}', space=vmem, size = 0x12000, scoped, tag = 'internal scratch']
  %s0 = inlined_call_operand.vmem [shape: bf16[8,2048], index: 0, kind: input, shape index: {}]
  %s1 = inlined_call_operand.vmem [shape: bf16[2048,128], index: 1, kind: input, shape index: {}]
  %s2 = inlined_call_operand.vmem [shape: f32[1,128], index: 2, kind: input, shape index: {}]
  %s3 = inlined_call_operand.vmem [shape: bf16[8,128], index: 3, kind: output, shape index: {}]
  %s4 = sld [smem:[#allocation0]]
  $region22: #{light_cnn_forward.4} parent=0
    _
  %s6 = ssub.s32 1, %s4
  %s7 = scalar_select 0, %s6, %s4
  // Predicated region
  $region2: #{light_cnn_forward.4} parent=0 // pred_check
    _
  $region3: #{light_cnn_forward.4} parent=0 // pred_check_branch
    %9 = sbr.rel (0) target = $region5
  $region4: #{light_cnn_forward.4} parent=0 // pred_region
    _
  $region5: #{light_cnn_forward.4} parent=0 // pred_fallthru
    _
  // Predicated region
  $region6: #{light_cnn_forward.4} parent=0 // pred_check
    _
  $region7: #{light_cnn_forward.4} parent=0 // pred_check_branch
    %11 = sbr.rel (0) target = $region9
  $region8: #{light_cnn_forward.4} parent=0 // pred_region
    _
  $region9: #{light_cnn_forward.4} parent=0 // pred_fallthru
    _
  // Predicated region
  $region10: #{light_cnn_forward.4} parent=0 // pred_check
    _
  $region11: #{light_cnn_forward.4} parent=0 // pred_check_branch
    %13 = sbr.rel (0) target = $region13
  $region12: #{light_cnn_forward.4} parent=0 // pred_region
    _
  $region13: #{light_cnn_forward.4} parent=0 // pred_fallthru
    _
  %v15 = vld [vmem:[%s0] sm:$0xff]
  %v16 = vld [vmem:[%s0 + $0x8] sm:$0xff]
  %v17 = vld [vmem:[%s0 + $0x10] sm:$0xff]
  %v18 = vld [vmem:[%s0 + $0x18] sm:$0xff]
  %v19 = vld [vmem:[%s0 + $0x20] sm:$0xff]
  %v20 = vld [vmem:[%s0 + $0x28] sm:$0xff]
  %v21 = vld [vmem:[%s0 + $0x30] sm:$0xff]
  %v22 = vld [vmem:[%s0 + $0x38] sm:$0xff]
  %v23 = vld [vmem:[%s1] sm:$0xf]
  %v24 = vld [vmem:[%s1 + $0x4] sm:$0xf]
  %v25 = vld [vmem:[%s1 + $0x8] sm:$0xf]
  %v26 = vld [vmem:[%s1 + $0xc] sm:$0xf]
  %v27 = vld [vmem:[%s1 + $0x10] sm:$0xf]
  %v28 = vld [vmem:[%s1 + $0x14] sm:$0xf]
  %v29 = vld [vmem:[%s1 + $0x18] sm:$0xf]
  %v30 = vld [vmem:[%s1 + $0x1c] sm:$0xf]
  %v31 = vld [vmem:[%s1 + $0x20] sm:$0xf]
  %v32 = vld [vmem:[%s1 + $0x24] sm:$0xf]
  %v33 = vld [vmem:[%s1 + $0x28] sm:$0xf]
  %v34 = vld [vmem:[%s1 + $0x2c] sm:$0xf]
  %v35 = vld [vmem:[%s1 + $0x30] sm:$0xf]
  %v36 = vld [vmem:[%s1 + $0x34] sm:$0xf]
  %v37 = vld [vmem:[%s1 + $0x38] sm:$0xf]
  %v38 = vld [vmem:[%s1 + $0x3c] sm:$0xf]
  %v39 = vld [vmem:[%s1 + $0x40] sm:$0xf]
  %v40 = vld [vmem:[%s1 + $0x44] sm:$0xf]
  %v41 = vld [vmem:[%s1 + $0x48] sm:$0xf]
  %v42 = vld [vmem:[%s1 + $0x4c] sm:$0xf]
  %v43 = vld [vmem:[%s1 + $0x50] sm:$0xf]
  %v44 = vld [vmem:[%s1 + $0x54] sm:$0xf]
  %v45 = vld [vmem:[%s1 + $0x58] sm:$0xf]
  %v46 = vld [vmem:[%s1 + $0x5c] sm:$0xf]
  %v47 = vld [vmem:[%s1 + $0x60] sm:$0xf]
  %v48 = vld [vmem:[%s1 + $0x64] sm:$0xf]
  %v49 = vld [vmem:[%s1 + $0x68] sm:$0xf]
  %v50 = vld [vmem:[%s1 + $0x6c] sm:$0xf]
  %v51 = vld [vmem:[%s1 + $0x70] sm:$0xf]
  %v52 = vld [vmem:[%s1 + $0x74] sm:$0xf]
  %v53 = vld [vmem:[%s1 + $0x78] sm:$0xf]
  %v54 = vld [vmem:[%s1 + $0x7c] sm:$0xf]
  %v55 = vld [vmem:[%s1 + $0x80] sm:$0xf]
  %v56 = vld [vmem:[%s1 + $0x84] sm:$0xf]
  %v57 = vld [vmem:[%s1 + $0x88] sm:$0xf]
  %v58 = vld [vmem:[%s1 + $0x8c] sm:$0xf]
  %v59 = vld [vmem:[%s1 + $0x90] sm:$0xf]
  %v60 = vld [vmem:[%s1 + $0x94] sm:$0xf]
  %v61 = vld [vmem:[%s1 + $0x98] sm:$0xf]
  %v62 = vld [vmem:[%s1 + $0x9c] sm:$0xf]
  %v63 = vld [vmem:[%s1 + $0xa0] sm:$0xf]
  %v64 = vld [vmem:[%s1 + $0xa4] sm:$0xf]
  %v65 = vld [vmem:[%s1 + $0xa8] sm:$0xf]
  %v66 = vld [vmem:[%s1 + $0xac] sm:$0xf]
  %v67 = vld [vmem:[%s1 + $0xb0] sm:$0xf]
  %v68 = vld [vmem:[%s1 + $0xb4] sm:$0xf]
  %v69 = vld [vmem:[%s1 + $0xb8] sm:$0xf]
  %v70 = vld [vmem:[%s1 + $0xbc] sm:$0xf]
  %v71 = vld [vmem:[%s1 + $0xc0] sm:$0xf]
  %v72 = vld [vmem:[%s1 + $0xc4] sm:$0xf]
  %v73 = vld [vmem:[%s1 + $0xc8] sm:$0xf]
  %v74 = vld [vmem:[%s1 + $0xcc] sm:$0xf]
  %v75 = vld [vmem:[%s1 + $0xd0] sm:$0xf]
  %v76 = vld [vmem:[%s1 + $0xd4] sm:$0xf]
  %v77 = vld [vmem:[%s1 + $0xd8] sm:$0xf]
  %v78 = vld [vmem:[%s1 + $0xdc] sm:$0xf]
  %v79 = vld [vmem:[%s1 + $0xe0] sm:$0xf]
  %v80 = vld [vmem:[%s1 + $0xe4] sm:$0xf]
  %v81 = vld [vmem:[%s1 + $0xe8] sm:$0xf]
  %v82 = vld [vmem:[%s1 + $0xec] sm:$0xf]
  %v83 = vld [vmem:[%s1 + $0xf0] sm:$0xf]
  %v84 = vld [vmem:[%s1 + $0xf4] sm:$0xf]
  %v85 = vld [vmem:[%s1 + $0xf8] sm:$0xf]
  %v86 = vld [vmem:[%s1 + $0xfc] sm:$0xf]
  %v87 = vld [vmem:[%s1 + $0x100] sm:$0xf]
  %v88 = vld [vmem:[%s1 + $0x104] sm:$0xf]
  %v89 = vld [vmem:[%s1 + $0x108] sm:$0xf]
  %v90 = vld [vmem:[%s1 + $0x10c] sm:$0xf]
  %v91 = vld [vmem:[%s1 + $0x110] sm:$0xf]
  %v92 = vld [vmem:[%s1 + $0x114] sm:$0xf]
  %v93 = vld [vmem:[%s1 + $0x118] sm:$0xf]
  %v94 = vld [vmem:[%s1 + $0x11c] sm:$0xf]
  %v95 = vld [vmem:[%s1 + $0x120] sm:$0xf]
  %v96 = vld [vmem:[%s1 + $0x124] sm:$0xf]
  %v97 = vld [vmem:[%s1 + $0x128] sm:$0xf]
  %v98 = vld [vmem:[%s1 + $0x12c] sm:$0xf]
  %v99 = vld [vmem:[%s1 + $0x130] sm:$0xf]
  %v100 = vld [vmem:[%s1 + $0x134] sm:$0xf]
  %v101 = vld [vmem:[%s1 + $0x138] sm:$0xf]
  %v102 = vld [vmem:[%s1 + $0x13c] sm:$0xf]
  %v103 = vld [vmem:[%s1 + $0x140] sm:$0xf]
  %v104 = vld [vmem:[%s1 + $0x144] sm:$0xf]
  %v105 = vld [vmem:[%s1 + $0x148] sm:$0xf]
  %v106 = vld [vmem:[%s1 + $0x14c] sm:$0xf]
  %v107 = vld [vmem:[%s1 + $0x150] sm:$0xf]
  %v108 = vld [vmem:[%s1 + $0x154] sm:$0xf]
  %v109 = vld [vmem:[%s1 + $0x158] sm:$0xf]
  %v110 = vld [vmem:[%s1 + $0x15c] sm:$0xf]
  %v111 = vld [vmem:[%s1 + $0x160] sm:$0xf]
  %v112 = vld [vmem:[%s1 + $0x164] sm:$0xf]
  %v113 = vld [vmem:[%s1 + $0x168] sm:$0xf]
  %v114 = vld [vmem:[%s1 + $0x16c] sm:$0xf]
  %v115 = vld [vmem:[%s1 + $0x170] sm:$0xf]
  %v116 = vld [vmem:[%s1 + $0x174] sm:$0xf]
  %v117 = vld [vmem:[%s1 + $0x178] sm:$0xf]
  %v118 = vld [vmem:[%s1 + $0x17c] sm:$0xf]
  %v119 = vld [vmem:[%s1 + $0x180] sm:$0xf]
  %v120 = vld [vmem:[%s1 + $0x184] sm:$0xf]
  %v121 = vld [vmem:[%s1 + $0x188] sm:$0xf]
  %v122 = vld [vmem:[%s1 + $0x18c] sm:$0xf]
  %v123 = vld [vmem:[%s1 + $0x190] sm:$0xf]
  %v124 = vld [vmem:[%s1 + $0x194] sm:$0xf]
  %v125 = vld [vmem:[%s1 + $0x198] sm:$0xf]
  %v126 = vld [vmem:[%s1 + $0x19c] sm:$0xf]
  %v127 = vld [vmem:[%s1 + $0x1a0] sm:$0xf]
  %v128 = vld [vmem:[%s1 + $0x1a4] sm:$0xf]
  %v129 = vld [vmem:[%s1 + $0x1a8] sm:$0xf]
  %v130 = vld [vmem:[%s1 + $0x1ac] sm:$0xf]
  %v131 = vld [vmem:[%s1 + $0x1b0] sm:$0xf]
  %v132 = vld [vmem:[%s1 + $0x1b4] sm:$0xf]
  %v133 = vld [vmem:[%s1 + $0x1b8] sm:$0xf]
  %v134 = vld [vmem:[%s1 + $0x1bc] sm:$0xf]
  %v135 = vld [vmem:[%s1 + $0x1c0] sm:$0xf]
  %v136 = vld [vmem:[%s1 + $0x1c4] sm:$0xf]
  %v137 = vld [vmem:[%s1 + $0x1c8] sm:$0xf]
  %v138 = vld [vmem:[%s1 + $0x1cc] sm:$0xf]
  %v139 = vld [vmem:[%s1 + $0x1d0] sm:$0xf]
  %v140 = vld [vmem:[%s1 + $0x1d4] sm:$0xf]
  %v141 = vld [vmem:[%s1 + $0x1d8] sm:$0xf]
  %v142 = vld [vmem:[%s1 + $0x1dc] sm:$0xf]
  %v143 = vld [vmem:[%s1 + $0x1e0] sm:$0xf]
  %v144 = vld [vmem:[%s1 + $0x1e4] sm:$0xf]
  %v145 = vld [vmem:[%s1 + $0x1e8] sm:$0xf]
  %v146 = vld [vmem:[%s1 + $0x1ec] sm:$0xf]
  %v147 = vld [vmem:[%s1 + $0x1f0] sm:$0xf]
  %v148 = vld [vmem:[%s1 + $0x1f4] sm:$0xf]
  %v149 = vld [vmem:[%s1 + $0x1f8] sm:$0xf]
  %v150 = vld [vmem:[%s1 + $0x1fc] sm:$0xf]
  %v151 = vld [vmem:[%s1 + $0x200] sm:$0xf]
  %v152 = vld [vmem:[%s1 + $0x204] sm:$0xf]
  %v153 = vld [vmem:[%s1 + $0x208] sm:$0xf]
  %v154 = vld [vmem:[%s1 + $0x20c] sm:$0xf]
  %v155 = vld [vmem:[%s1 + $0x210] sm:$0xf]
  %v156 = vld [vmem:[%s1 + $0x214] sm:$0xf]
  %v157 = vld [vmem:[%s1 + $0x218] sm:$0xf]
  %v158 = vld [vmem:[%s1 + $0x21c] sm:$0xf]
  %v159 = vld [vmem:[%s1 + $0x220] sm:$0xf]
  %v160 = vld [vmem:[%s1 + $0x224] sm:$0xf]
  %v161 = vld [vmem:[%s1 + $0x228] sm:$0xf]
  %v162 = vld [vmem:[%s1 + $0x22c] sm:$0xf]
  %v163 = vld [vmem:[%s1 + $0x230] sm:$0xf]
  %v164 = vld [vmem:[%s1 + $0x234] sm:$0xf]
  %v165 = vld [vmem:[%s1 + $0x238] sm:$0xf]
  %v166 = vld [vmem:[%s1 + $0x23c] sm:$0xf]
  %v167 = vld [vmem:[%s1 + $0x240] sm:$0xf]
  %v168 = vld [vmem:[%s1 + $0x244] sm:$0xf]
  %v169 = vld [vmem:[%s1 + $0x248] sm:$0xf]
  %v170 = vld [vmem:[%s1 + $0x24c] sm:$0xf]
  %v171 = vld [vmem:[%s1 + $0x250] sm:$0xf]
  %v172 = vld [vmem:[%s1 + $0x254] sm:$0xf]
  %v173 = vld [vmem:[%s1 + $0x258] sm:$0xf]
  %v174 = vld [vmem:[%s1 + $0x25c] sm:$0xf]
  %v175 = vld [vmem:[%s1 + $0x260] sm:$0xf]
  %v176 = vld [vmem:[%s1 + $0x264] sm:$0xf]
  %v177 = vld [vmem:[%s1 + $0x268] sm:$0xf]
  %v178 = vld [vmem:[%s1 + $0x26c] sm:$0xf]
  %v179 = vld [vmem:[%s1 + $0x270] sm:$0xf]
  %v180 = vld [vmem:[%s1 + $0x274] sm:$0xf]
  %v181 = vld [vmem:[%s1 + $0x278] sm:$0xf]
  %v182 = vld [vmem:[%s1 + $0x27c] sm:$0xf]
  %v183 = vld [vmem:[%s1 + $0x280] sm:$0xf]
  %v184 = vld [vmem:[%s1 + $0x284] sm:$0xf]
  %v185 = vld [vmem:[%s1 + $0x288] sm:$0xf]
  %v186 = vld [vmem:[%s1 + $0x28c] sm:$0xf]
  %v187 = vld [vmem:[%s1 + $0x290] sm:$0xf]
  %v188 = vld [vmem:[%s1 + $0x294] sm:$0xf]
  %v189 = vld [vmem:[%s1 + $0x298] sm:$0xf]
  %v190 = vld [vmem:[%s1 + $0x29c] sm:$0xf]
  %v191 = vld [vmem:[%s1 + $0x2a0] sm:$0xf]
  %v192 = vld [vmem:[%s1 + $0x2a4] sm:$0xf]
  %v193 = vld [vmem:[%s1 + $0x2a8] sm:$0xf]
  %v194 = vld [vmem:[%s1 + $0x2ac] sm:$0xf]
  %v195 = vld [vmem:[%s1 + $0x2b0] sm:$0xf]
  %v196 = vld [vmem:[%s1 + $0x2b4] sm:$0xf]
  %v197 = vld [vmem:[%s1 + $0x2b8] sm:$0xf]
  %v198 = vld [vmem:[%s1 + $0x2bc] sm:$0xf]
  %v199 = vld [vmem:[%s1 + $0x2c0] sm:$0xf]
  %v200 = vld [vmem:[%s1 + $0x2c4] sm:$0xf]
  %v201 = vld [vmem:[%s1 + $0x2c8] sm:$0xf]
  %v202 = vld [vmem:[%s1 + $0x2cc] sm:$0xf]
  %v203 = vld [vmem:[%s1 + $0x2d0] sm:$0xf]
  %v204 = vld [vmem:[%s1 + $0x2d4] sm:$0xf]
  %v205 = vld [vmem:[%s1 + $0x2d8] sm:$0xf]
  %v206 = vld [vmem:[%s1 + $0x2dc] sm:$0xf]
  %v207 = vld [vmem:[%s1 + $0x2e0] sm:$0xf]
  %v208 = vld [vmem:[%s1 + $0x2e4] sm:$0xf]
  %v209 = vld [vmem:[%s1 + $0x2e8] sm:$0xf]
  %v210 = vld [vmem:[%s1 + $0x2ec] sm:$0xf]
  %v211 = vld [vmem:[%s1 + $0x2f0] sm:$0xf]
  %v212 = vld [vmem:[%s1 + $0x2f4] sm:$0xf]
  %v213 = vld [vmem:[%s1 + $0x2f8] sm:$0xf]
  %v214 = vld [vmem:[%s1 + $0x2fc] sm:$0xf]
  %v215 = vld [vmem:[%s1 + $0x300] sm:$0xf]
  %v216 = vld [vmem:[%s1 + $0x304] sm:$0xf]
  %v217 = vld [vmem:[%s1 + $0x308] sm:$0xf]
  %v218 = vld [vmem:[%s1 + $0x30c] sm:$0xf]
  %v219 = vld [vmem:[%s1 + $0x310] sm:$0xf]
  %v220 = vld [vmem:[%s1 + $0x314] sm:$0xf]
  %v221 = vld [vmem:[%s1 + $0x318] sm:$0xf]
  %v222 = vld [vmem:[%s1 + $0x31c] sm:$0xf]
  %v223 = vld [vmem:[%s1 + $0x320] sm:$0xf]
  %v224 = vld [vmem:[%s1 + $0x324] sm:$0xf]
  %v225 = vld [vmem:[%s1 + $0x328] sm:$0xf]
  %v226 = vld [vmem:[%s1 + $0x32c] sm:$0xf]
  %v227 = vld [vmem:[%s1 + $0x330] sm:$0xf]
  %v228 = vld [vmem:[%s1 + $0x334] sm:$0xf]
  %v229 = vld [vmem:[%s1 + $0x338] sm:$0xf]
  %v230 = vld [vmem:[%s1 + $0x33c] sm:$0xf]
  %v231 = vld [vmem:[%s1 + $0x340] sm:$0xf]
  %v232 = vld [vmem:[%s1 + $0x344] sm:$0xf]
  %v233 = vld [vmem:[%s1 + $0x348] sm:$0xf]
  %v234 = vld [vmem:[%s1 + $0x34c] sm:$0xf]
  %v235 = vld [vmem:[%s1 + $0x350] sm:$0xf]
  %v236 = vld [vmem:[%s1 + $0x354] sm:$0xf]
  %v237 = vld [vmem:[%s1 + $0x358] sm:$0xf]
  %v238 = vld [vmem:[%s1 + $0x35c] sm:$0xf]
  %v239 = vld [vmem:[%s1 + $0x360] sm:$0xf]
  %v240 = vld [vmem:[%s1 + $0x364] sm:$0xf]
  %v241 = vld [vmem:[%s1 + $0x368] sm:$0xf]
  %v242 = vld [vmem:[%s1 + $0x36c] sm:$0xf]
  %v243 = vld [vmem:[%s1 + $0x370] sm:$0xf]
  %v244 = vld [vmem:[%s1 + $0x374] sm:$0xf]
  %v245 = vld [vmem:[%s1 + $0x378] sm:$0xf]
  %v246 = vld [vmem:[%s1 + $0x37c] sm:$0xf]
  %v247 = vld [vmem:[%s1 + $0x380] sm:$0xf]
  %v248 = vld [vmem:[%s1 + $0x384] sm:$0xf]
  %v249 = vld [vmem:[%s1 + $0x388] sm:$0xf]
  %v250 = vld [vmem:[%s1 + $0x38c] sm:$0xf]
  %v251 = vld [vmem:[%s1 + $0x390] sm:$0xf]
  %v252 = vld [vmem:[%s1 + $0x394] sm:$0xf]
  %v253 = vld [vmem:[%s1 + $0x398] sm:$0xf]
  %v254 = vld [vmem:[%s1 + $0x39c] sm:$0xf]
  %v255 = vld [vmem:[%s1 + $0x3a0] sm:$0xf]
  %v256 = vld [vmem:[%s1 + $0x3a4] sm:$0xf]
  %v257 = vld [vmem:[%s1 + $0x3a8] sm:$0xf]
  %v258 = vld [vmem:[%s1 + $0x3ac] sm:$0xf]
  %v259 = vld [vmem:[%s1 + $0x3b0] sm:$0xf]
  %v260 = vld [vmem:[%s1 + $0x3b4] sm:$0xf]
  %v261 = vld [vmem:[%s1 + $0x3b8] sm:$0xf]
  %v262 = vld [vmem:[%s1 + $0x3bc] sm:$0xf]
  %v263 = vld [vmem:[%s1 + $0x3c0] sm:$0xf]
  %v264 = vld [vmem:[%s1 + $0x3c4] sm:$0xf]
  %v265 = vld [vmem:[%s1 + $0x3c8] sm:$0xf]
  %v266 = vld [vmem:[%s1 + $0x3cc] sm:$0xf]
  %v267 = vld [vmem:[%s1 + $0x3d0] sm:$0xf]
  %v268 = vld [vmem:[%s1 + $0x3d4] sm:$0xf]
  %v269 = vld [vmem:[%s1 + $0x3d8] sm:$0xf]
  %v270 = vld [vmem:[%s1 + $0x3dc] sm:$0xf]
  %v271 = vld [vmem:[%s1 + $0x3e0] sm:$0xf]
  %v272 = vld [vmem:[%s1 + $0x3e4] sm:$0xf]
  %v273 = vld [vmem:[%s1 + $0x3e8] sm:$0xf]
  %v274 = vld [vmem:[%s1 + $0x3ec] sm:$0xf]
  %v275 = vld [vmem:[%s1 + $0x3f0] sm:$0xf]
  %v276 = vld [vmem:[%s1 + $0x3f4] sm:$0xf]
  %v277 = vld [vmem:[%s1 + $0x3f8] sm:$0xf]
  %v278 = vld [vmem:[%s1 + $0x3fc] sm:$0xf]
  %v279 = vld [vmem:[%s2] sm:$0x1]
  %v281 = vlaneseq
  %v282 = vshrl.u32 %v281, 7
  %v283 = vsub.s32 0, %v282
  %v284 = vrot.slane %v279, %v283
  %v294 = vunpack.c.l.b16 %v15
  %v295 = vunpack.c.h.b16 %v15
  %v296 = vunpack.c.l.b16 %v16
  %v297 = vunpack.c.h.b16 %v16
  %v298 = vunpack.c.l.b16 %v17
  %v299 = vunpack.c.h.b16 %v17
  %v300 = vunpack.c.l.b16 %v18
  %v301 = vunpack.c.h.b16 %v18
  %v302 = vunpack.c.l.b16 %v19
  %v303 = vunpack.c.h.b16 %v19
  %v304 = vunpack.c.l.b16 %v20
  %v305 = vunpack.c.h.b16 %v20
  %v306 = vunpack.c.l.b16 %v21
  %v307 = vunpack.c.h.b16 %v21
  %v308 = vunpack.c.l.b16 %v22
  %v309 = vunpack.c.h.b16 %v22
  %v310 = vpack.c.b16 %v294, %v294
  %v311 = vpack.c.b16 %v295, %v295
  %v312 = vpack.c.b16 %v296, %v296
  %v313 = vpack.c.b16 %v297, %v297
  %v314 = vpack.c.b16 %v298, %v298
  %v315 = vpack.c.b16 %v299, %v299
  %v316 = vpack.c.b16 %v300, %v300
  %v317 = vpack.c.b16 %v301, %v301
  %v318 = vpack.c.b16 %v302, %v302
  %v319 = vpack.c.b16 %v303, %v303
  %v320 = vpack.c.b16 %v304, %v304
  %v321 = vpack.c.b16 %v305, %v305
  %v322 = vpack.c.b16 %v306, %v306
  %v323 = vpack.c.b16 %v307, %v307
  %v324 = vpack.c.b16 %v308, %v308
  %v325 = vpack.c.b16 %v309, %v309
  %v598 = vunpack.c.l.b16 %v23
  %v599 = vunpack.c.l.b16 %v24
  %v600 = vunpack.c.l.b16 %v25
  %v601 = vunpack.c.l.b16 %v26
  %v602 = vunpack.c.l.b16 %v27
  %v603 = vunpack.c.l.b16 %v28
  %v604 = vunpack.c.l.b16 %v29
  %v605 = vunpack.c.l.b16 %v30
  %v606 = vunpack.c.l.b16 %v31
  %v607 = vunpack.c.l.b16 %v32
  %v608 = vunpack.c.l.b16 %v33
  %v609 = vunpack.c.l.b16 %v34
  %v610 = vunpack.c.l.b16 %v35
  %v611 = vunpack.c.l.b16 %v36
  %v612 = vunpack.c.l.b16 %v37
  %v613 = vunpack.c.l.b16 %v38
  %v614 = vunpack.c.l.b16 %v39
  %v615 = vunpack.c.l.b16 %v40
  %v616 = vunpack.c.l.b16 %v41
  %v617 = vunpack.c.l.b16 %v42
  %v618 = vunpack.c.l.b16 %v43
  %v619 = vunpack.c.l.b16 %v44
  %v620 = vunpack.c.l.b16 %v45
  %v621 = vunpack.c.l.b16 %v46
  %v622 = vunpack.c.l.b16 %v47
  %v623 = vunpack.c.l.b16 %v48
  %v624 = vunpack.c.l.b16 %v49
  %v625 = vunpack.c.l.b16 %v50
  %v626 = vunpack.c.l.b16 %v51
  %v627 = vunpack.c.l.b16 %v52
  %v628 = vunpack.c.l.b16 %v53
  %v629 = vunpack.c.l.b16 %v54
  %v630 = vunpack.c.l.b16 %v55
  %v631 = vunpack.c.l.b16 %v56
  %v632 = vunpack.c.l.b16 %v57
  %v633 = vunpack.c.l.b16 %v58
  %v634 = vunpack.c.l.b16 %v59
  %v635 = vunpack.c.l.b16 %v60
  %v636 = vunpack.c.l.b16 %v61
  %v637 = vunpack.c.l.b16 %v62
  %v638 = vunpack.c.l.b16 %v63
  %v639 = vunpack.c.l.b16 %v64
  %v640 = vunpack.c.l.b16 %v65
  %v641 = vunpack.c.l.b16 %v66
  %v642 = vunpack.c.l.b16 %v67
  %v643 = vunpack.c.l.b16 %v68
  %v644 = vunpack.c.l.b16 %v69
  %v645 = vunpack.c.l.b16 %v70
  %v646 = vunpack.c.l.b16 %v71
  %v647 = vunpack.c.l.b16 %v72
  %v648 = vunpack.c.l.b16 %v73
  %v649 = vunpack.c.l.b16 %v74
  %v650 = vunpack.c.l.b16 %v75
  %v651 = vunpack.c.l.b16 %v76
  %v652 = vunpack.c.l.b16 %v77
  %v653 = vunpack.c.l.b16 %v78
  %v654 = vunpack.c.l.b16 %v79
  %v655 = vunpack.c.l.b16 %v80
  %v656 = vunpack.c.l.b16 %v81
  %v657 = vunpack.c.l.b16 %v82
  %v658 = vunpack.c.l.b16 %v83
  %v659 = vunpack.c.l.b16 %v84
  %v660 = vunpack.c.l.b16 %v85
  %v661 = vunpack.c.l.b16 %v86
  %v662 = vunpack.c.l.b16 %v87
  %v663 = vunpack.c.l.b16 %v88
  %v664 = vunpack.c.l.b16 %v89
  %v665 = vunpack.c.l.b16 %v90
  %v666 = vunpack.c.l.b16 %v91
  %v667 = vunpack.c.l.b16 %v92
  %v668 = vunpack.c.l.b16 %v93
  %v669 = vunpack.c.l.b16 %v94
  %v670 = vunpack.c.l.b16 %v95
  %v671 = vunpack.c.l.b16 %v96
  %v672 = vunpack.c.l.b16 %v97
  %v673 = vunpack.c.l.b16 %v98
  %v674 = vunpack.c.l.b16 %v99
  %v675 = vunpack.c.l.b16 %v100
  %v676 = vunpack.c.l.b16 %v101
  %v677 = vunpack.c.l.b16 %v102
  %v678 = vunpack.c.l.b16 %v103
  %v679 = vunpack.c.l.b16 %v104
  %v680 = vunpack.c.l.b16 %v105
  %v681 = vunpack.c.l.b16 %v106
  %v682 = vunpack.c.l.b16 %v107
  %v683 = vunpack.c.l.b16 %v108
  %v684 = vunpack.c.l.b16 %v109
  %v685 = vunpack.c.l.b16 %v110
  %v686 = vunpack.c.l.b16 %v111
  %v687 = vunpack.c.l.b16 %v112
  %v688 = vunpack.c.l.b16 %v113
  %v689 = vunpack.c.l.b16 %v114
  %v690 = vunpack.c.l.b16 %v115
  %v691 = vunpack.c.l.b16 %v116
  %v692 = vunpack.c.l.b16 %v117
  %v693 = vunpack.c.l.b16 %v118
  %v694 = vunpack.c.l.b16 %v119
  %v695 = vunpack.c.l.b16 %v120
  %v696 = vunpack.c.l.b16 %v121
  %v697 = vunpack.c.l.b16 %v122
  %v698 = vunpack.c.l.b16 %v123
  %v699 = vunpack.c.l.b16 %v124
  %v700 = vunpack.c.l.b16 %v125
  %v701 = vunpack.c.l.b16 %v126
  %v702 = vunpack.c.l.b16 %v127
  %v703 = vunpack.c.l.b16 %v128
  %v704 = vunpack.c.l.b16 %v129
  %v705 = vunpack.c.l.b16 %v130
  %v706 = vunpack.c.l.b16 %v131
  %v707 = vunpack.c.l.b16 %v132
  %v708 = vunpack.c.l.b16 %v133
  %v709 = vunpack.c.l.b16 %v134
  %v710 = vunpack.c.l.b16 %v135
  %v711 = vunpack.c.l.b16 %v136
  %v712 = vunpack.c.l.b16 %v137
  %v713 = vunpack.c.l.b16 %v138
  %v714 = vunpack.c.l.b16 %v139
  %v715 = vunpack.c.l.b16 %v140
  %v716 = vunpack.c.l.b16 %v141
  %v717 = vunpack.c.l.b16 %v142
  %v718 = vunpack.c.l.b16 %v143
  %v719 = vunpack.c.l.b16 %v144
  %v720 = vunpack.c.l.b16 %v145
  %v721 = vunpack.c.l.b16 %v146
  %v722 = vunpack.c.l.b16 %v147
  %v723 = vunpack.c.l.b16 %v148
  %v724 = vunpack.c.l.b16 %v149
  %v725 = vunpack.c.l.b16 %v150
  %v726 = vunpack.c.l.b16 %v151
  %v727 = vunpack.c.l.b16 %v152
  %v728 = vunpack.c.l.b16 %v153
  %v729 = vunpack.c.l.b16 %v154
  %v730 = vunpack.c.l.b16 %v155
  %v731 = vunpack.c.l.b16 %v156
  %v732 = vunpack.c.l.b16 %v157
  %v733 = vunpack.c.l.b16 %v158
  %v734 = vunpack.c.l.b16 %v159
  %v735 = vunpack.c.l.b16 %v160
  %v736 = vunpack.c.l.b16 %v161
  %v737 = vunpack.c.l.b16 %v162
  %v738 = vunpack.c.l.b16 %v163
  %v739 = vunpack.c.l.b16 %v164
  %v740 = vunpack.c.l.b16 %v165
  %v741 = vunpack.c.l.b16 %v166
  %v742 = vunpack.c.l.b16 %v167
  %v743 = vunpack.c.l.b16 %v168
  %v744 = vunpack.c.l.b16 %v169
  %v745 = vunpack.c.l.b16 %v170
  %v746 = vunpack.c.l.b16 %v171
  %v747 = vunpack.c.l.b16 %v172
  %v748 = vunpack.c.l.b16 %v173
  %v749 = vunpack.c.l.b16 %v174
  %v750 = vunpack.c.l.b16 %v175
  %v751 = vunpack.c.l.b16 %v176
  %v752 = vunpack.c.l.b16 %v177
  %v753 = vunpack.c.l.b16 %v178
  %v754 = vunpack.c.l.b16 %v179
  %v755 = vunpack.c.l.b16 %v180
  %v756 = vunpack.c.l.b16 %v181
  %v757 = vunpack.c.l.b16 %v182
  %v758 = vunpack.c.l.b16 %v183
  %v759 = vunpack.c.l.b16 %v184
  %v760 = vunpack.c.l.b16 %v185
  %v761 = vunpack.c.l.b16 %v186
  %v762 = vunpack.c.l.b16 %v187
  %v763 = vunpack.c.l.b16 %v188
  %v764 = vunpack.c.l.b16 %v189
  %v765 = vunpack.c.l.b16 %v190
  %v766 = vunpack.c.l.b16 %v191
  %v767 = vunpack.c.l.b16 %v192
  %v768 = vunpack.c.l.b16 %v193
  %v769 = vunpack.c.l.b16 %v194
  %v770 = vunpack.c.l.b16 %v195
  %v771 = vunpack.c.l.b16 %v196
  %v772 = vunpack.c.l.b16 %v197
  %v773 = vunpack.c.l.b16 %v198
  %v774 = vunpack.c.l.b16 %v199
  %v775 = vunpack.c.l.b16 %v200
  %v776 = vunpack.c.l.b16 %v201
  %v777 = vunpack.c.l.b16 %v202
  %v778 = vunpack.c.l.b16 %v203
  %v779 = vunpack.c.l.b16 %v204
  %v780 = vunpack.c.l.b16 %v205
  %v781 = vunpack.c.l.b16 %v206
  %v782 = vunpack.c.l.b16 %v207
  %v783 = vunpack.c.l.b16 %v208
  %v784 = vunpack.c.l.b16 %v209
  %v785 = vunpack.c.l.b16 %v210
  %v786 = vunpack.c.l.b16 %v211
  %v787 = vunpack.c.l.b16 %v212
  %v788 = vunpack.c.l.b16 %v213
  %v789 = vunpack.c.l.b16 %v214
  %v790 = vunpack.c.l.b16 %v215
  %v791 = vunpack.c.l.b16 %v216
  %v792 = vunpack.c.l.b16 %v217
  %v793 = vunpack.c.l.b16 %v218
  %v794 = vunpack.c.l.b16 %v219
  %v795 = vunpack.c.l.b16 %v220
  %v796 = vunpack.c.l.b16 %v221
  %v797 = vunpack.c.l.b16 %v222
  %v798 = vunpack.c.l.b16 %v223
  %v799 = vunpack.c.l.b16 %v224
  %v800 = vunpack.c.l.b16 %v225
  %v801 = vunpack.c.l.b16 %v226
  %v802 = vunpack.c.l.b16 %v227
  %v803 = vunpack.c.l.b16 %v228
  %v804 = vunpack.c.l.b16 %v229
  %v805 = vunpack.c.l.b16 %v230
  %v806 = vunpack.c.l.b16 %v231
  %v807 = vunpack.c.l.b16 %v232
  %v808 = vunpack.c.l.b16 %v233
  %v809 = vunpack.c.l.b16 %v234
  %v810 = vunpack.c.l.b16 %v235
  %v811 = vunpack.c.l.b16 %v236
  %v812 = vunpack.c.l.b16 %v237
  %v813 = vunpack.c.l.b16 %v238
  %v814 = vunpack.c.l.b16 %v239
  %v815 = vunpack.c.l.b16 %v240
  %v816 = vunpack.c.l.b16 %v241
  %v817 = vunpack.c.l.b16 %v242
  %v818 = vunpack.c.l.b16 %v243
  %v819 = vunpack.c.l.b16 %v244
  %v820 = vunpack.c.l.b16 %v245
  %v821 = vunpack.c.l.b16 %v246
  %v822 = vunpack.c.l.b16 %v247
  %v823 = vunpack.c.l.b16 %v248
  %v824 = vunpack.c.l.b16 %v249
  %v825 = vunpack.c.l.b16 %v250
  %v826 = vunpack.c.l.b16 %v251
  %v827 = vunpack.c.l.b16 %v252
  %v828 = vunpack.c.l.b16 %v253
  %v829 = vunpack.c.l.b16 %v254
  %v830 = vunpack.c.l.b16 %v255
  %v831 = vunpack.c.l.b16 %v256
  %v832 = vunpack.c.l.b16 %v257
  %v833 = vunpack.c.l.b16 %v258
  %v834 = vunpack.c.l.b16 %v259
  %v835 = vunpack.c.l.b16 %v260
  %v836 = vunpack.c.l.b16 %v261
  %v837 = vunpack.c.l.b16 %v262
  %v838 = vunpack.c.l.b16 %v263
  %v839 = vunpack.c.l.b16 %v264
  %v840 = vunpack.c.l.b16 %v265
  %v841 = vunpack.c.l.b16 %v266
  %v842 = vunpack.c.l.b16 %v267
  %v843 = vunpack.c.l.b16 %v268
  %v844 = vunpack.c.l.b16 %v269
  %v845 = vunpack.c.l.b16 %v270
  %v846 = vunpack.c.l.b16 %v271
  %v847 = vunpack.c.l.b16 %v272
  %v848 = vunpack.c.l.b16 %v273
  %v849 = vunpack.c.l.b16 %v274
  %v850 = vunpack.c.l.b16 %v275
  %v851 = vunpack.c.l.b16 %v276
  %v852 = vunpack.c.l.b16 %v277
  %v853 = vunpack.c.l.b16 %v278
  %v854 = vpack.c.b16 %v599, %v598
  %v855 = vpack.c.b16 %v601, %v600
  %v856 = vpack.c.b16 %v603, %v602
  %v857 = vpack.c.b16 %v605, %v604
  %v858 = vpack.c.b16 %v607, %v606
  %v859 = vpack.c.b16 %v609, %v608
  %v860 = vpack.c.b16 %v611, %v610
  %v861 = vpack.c.b16 %v613, %v612
  %v862 = vpack.c.b16 %v615, %v614
  %v863 = vpack.c.b16 %v617, %v616
  %v864 = vpack.c.b16 %v619, %v618
  %v865 = vpack.c.b16 %v621, %v620
  %v866 = vpack.c.b16 %v623, %v622
  %v867 = vpack.c.b16 %v625, %v624
  %v868 = vpack.c.b16 %v627, %v626
  %v869 = vpack.c.b16 %v629, %v628
  %v870 = vpack.c.b16 %v631, %v630
  %v871 = vpack.c.b16 %v633, %v632
  %v872 = vpack.c.b16 %v635, %v634
  %v873 = vpack.c.b16 %v637, %v636
  %v874 = vpack.c.b16 %v639, %v638
  %v875 = vpack.c.b16 %v641, %v640
  %v876 = vpack.c.b16 %v643, %v642
  %v877 = vpack.c.b16 %v645, %v644
  %v878 = vpack.c.b16 %v647, %v646
  %v879 = vpack.c.b16 %v649, %v648
  %v880 = vpack.c.b16 %v651, %v650
  %v881 = vpack.c.b16 %v653, %v652
  %v882 = vpack.c.b16 %v655, %v654
  %v883 = vpack.c.b16 %v657, %v656
  %v884 = vpack.c.b16 %v659, %v658
  %v885 = vpack.c.b16 %v661, %v660
  %v886 = vpack.c.b16 %v663, %v662
  %v887 = vpack.c.b16 %v665, %v664
  %v888 = vpack.c.b16 %v667, %v666
  %v889 = vpack.c.b16 %v669, %v668
  %v890 = vpack.c.b16 %v671, %v670
  %v891 = vpack.c.b16 %v673, %v672
  %v892 = vpack.c.b16 %v675, %v674
  %v893 = vpack.c.b16 %v677, %v676
  %v894 = vpack.c.b16 %v679, %v678
  %v895 = vpack.c.b16 %v681, %v680
  %v896 = vpack.c.b16 %v683, %v682
  %v897 = vpack.c.b16 %v685, %v684
  %v898 = vpack.c.b16 %v687, %v686
  %v899 = vpack.c.b16 %v689, %v688
  %v900 = vpack.c.b16 %v691, %v690
  %v901 = vpack.c.b16 %v693, %v692
  %v902 = vpack.c.b16 %v695, %v694
  %v903 = vpack.c.b16 %v697, %v696
  %v904 = vpack.c.b16 %v699, %v698
  %v905 = vpack.c.b16 %v701, %v700
  %v906 = vpack.c.b16 %v703, %v702
  %v907 = vpack.c.b16 %v705, %v704
  %v908 = vpack.c.b16 %v707, %v706
  %v909 = vpack.c.b16 %v709, %v708
  %v910 = vpack.c.b16 %v711, %v710
  %v911 = vpack.c.b16 %v713, %v712
  %v912 = vpack.c.b16 %v715, %v714
  %v913 = vpack.c.b16 %v717, %v716
  %v914 = vpack.c.b16 %v719, %v718
  %v915 = vpack.c.b16 %v721, %v720
  %v916 = vpack.c.b16 %v723, %v722
  %v917 = vpack.c.b16 %v725, %v724
  %v918 = vpack.c.b16 %v727, %v726
  %v919 = vpack.c.b16 %v729, %v728
  %v920 = vpack.c.b16 %v731, %v730
  %v921 = vpack.c.b16 %v733, %v732
  %v922 = vpack.c.b16 %v735, %v734
  %v923 = vpack.c.b16 %v737, %v736
  %v924 = vpack.c.b16 %v739, %v738
  %v925 = vpack.c.b16 %v741, %v740
  %v926 = vpack.c.b16 %v743, %v742
  %v927 = vpack.c.b16 %v745, %v744
  %v928 = vpack.c.b16 %v747, %v746
  %v929 = vpack.c.b16 %v749, %v748
  %v930 = vpack.c.b16 %v751, %v750
  %v931 = vpack.c.b16 %v753, %v752
  %v932 = vpack.c.b16 %v755, %v754
  %v933 = vpack.c.b16 %v757, %v756
  %v934 = vpack.c.b16 %v759, %v758
  %v935 = vpack.c.b16 %v761, %v760
  %v936 = vpack.c.b16 %v763, %v762
  %v937 = vpack.c.b16 %v765, %v764
  %v938 = vpack.c.b16 %v767, %v766
  %v939 = vpack.c.b16 %v769, %v768
  %v940 = vpack.c.b16 %v771, %v770
  %v941 = vpack.c.b16 %v773, %v772
  %v942 = vpack.c.b16 %v775, %v774
  %v943 = vpack.c.b16 %v777, %v776
  %v944 = vpack.c.b16 %v779, %v778
  %v945 = vpack.c.b16 %v781, %v780
  %v946 = vpack.c.b16 %v783, %v782
  %v947 = vpack.c.b16 %v785, %v784
  %v948 = vpack.c.b16 %v787, %v786
  %v949 = vpack.c.b16 %v789, %v788
  %v950 = vpack.c.b16 %v791, %v790
  %v951 = vpack.c.b16 %v793, %v792
  %v952 = vpack.c.b16 %v795, %v794
  %v953 = vpack.c.b16 %v797, %v796
  %v954 = vpack.c.b16 %v799, %v798
  %v955 = vpack.c.b16 %v801, %v800
  %v956 = vpack.c.b16 %v803, %v802
  %v957 = vpack.c.b16 %v805, %v804
  %v958 = vpack.c.b16 %v807, %v806
  %v959 = vpack.c.b16 %v809, %v808
  %v960 = vpack.c.b16 %v811, %v810
  %v961 = vpack.c.b16 %v813, %v812
  %v962 = vpack.c.b16 %v815, %v814
  %v963 = vpack.c.b16 %v817, %v816
  %v964 = vpack.c.b16 %v819, %v818
  %v965 = vpack.c.b16 %v821, %v820
  %v966 = vpack.c.b16 %v823, %v822
  %v967 = vpack.c.b16 %v825, %v824
  %v968 = vpack.c.b16 %v827, %v826
  %v969 = vpack.c.b16 %v829, %v828
  %v970 = vpack.c.b16 %v831, %v830
  %v971 = vpack.c.b16 %v833, %v832
  %v972 = vpack.c.b16 %v835, %v834
  %v973 = vpack.c.b16 %v837, %v836
  %v974 = vpack.c.b16 %v839, %v838
  %v975 = vpack.c.b16 %v841, %v840
  %v976 = vpack.c.b16 %v843, %v842
  %v977 = vpack.c.b16 %v845, %v844
  %v978 = vpack.c.b16 %v847, %v846
  %v979 = vpack.c.b16 %v849, %v848
  %v980 = vpack.c.b16 %v851, %v850
  %v981 = vpack.c.b16 %v853, %v852
  %1110 = vmatprep.subr.bf16.mxu0 0
  %1111 = vmatpush1.bf16.msra.mxu0 %v854
  %1112 = vmatprep.subr.bf16.mxu0 0
  %1113 = vmatpush1.bf16.msra.mxu0 %v855
  %1114 = vmatprep.subr.bf16.mxu0 0
  %1115 = vmatpush1.bf16.msra.mxu0 %v856
  %1116 = vmatprep.subr.bf16.mxu0 0
  %1117 = vmatpush1.bf16.msra.mxu0 %v857
  %1118 = vmatprep.subr.bf16.mxu0 0
  %1119 = vmatpush1.bf16.msra.mxu0 %v858
  %1120 = vmatprep.subr.bf16.mxu0 0
  %1121 = vmatpush1.bf16.msra.mxu0 %v859
  %1122 = vmatprep.subr.bf16.mxu0 0
  %1123 = vmatpush1.bf16.msra.mxu0 %v860
  %1124 = vmatprep.subr.bf16.mxu0 0
  %1125 = vmatpush1.bf16.msra.mxu0 %v861
  %1126 = vmatprep.subr.bf16.mxu0 0
  %1127 = vmatpush1.bf16.msra.mxu0 %v862
  %1128 = vmatprep.subr.bf16.mxu0 0
  %1129 = vmatpush1.bf16.msra.mxu0 %v863
  %1130 = vmatprep.subr.bf16.mxu0 0
  %1131 = vmatpush1.bf16.msra.mxu0 %v864
  %1132 = vmatprep.subr.bf16.mxu0 0
  %1133 = vmatpush1.bf16.msra.mxu0 %v865
  %1134 = vmatprep.subr.bf16.mxu0 0
  %1135 = vmatpush1.bf16.msra.mxu0 %v866
  %1136 = vmatprep.subr.bf16.mxu0 0
  %1137 = vmatpush1.bf16.msra.mxu0 %v867
  %1138 = vmatprep.subr.bf16.mxu0 0
  %1139 = vmatpush1.bf16.msra.mxu0 %v868
  %1140 = vmatprep.subr.bf16.mxu0 0
  %1141 = vmatpush1.bf16.msra.mxu0 %v869
  %1142 = vmatprep.mubr.bf16.mxu0 %v311
  %1143 = vmatmul.mubr.bf16.gmra.mrb[0].mxu0 %v310
  %v1144 = vpop.f32.mrb[0].mxu0
  %v1145 = vadd.f32 %v284, %v1144
  %v1146 = vpop.f32.mrb[0].mxu0
  %v1147 = vpop.f32.mrb[0].mxu0
  %v1148 = vpop.f32.mrb[0].mxu0
  %1149 = vdwg.mxu0
  %1150 = vmatprep.subr.bf16.mxu0 0
  %1151 = vmatpush1.bf16.msra.mxu0 %v870
  %1152 = vmatprep.subr.bf16.mxu0 0
  %1153 = vmatpush1.bf16.msra.mxu0 %v871
  %1154 = vmatprep.subr.bf16.mxu0 0
  %1155 = vmatpush1.bf16.msra.mxu0 %v872
  %1156 = vmatprep.subr.bf16.mxu0 0
  %1157 = vmatpush1.bf16.msra.mxu0 %v873
  %1158 = vmatprep.subr.bf16.mxu0 0
  %1159 = vmatpush1.bf16.msra.mxu0 %v874
  %1160 = vmatprep.subr.bf16.mxu0 0
  %1161 = vmatpush1.bf16.msra.mxu0 %v875
  %1162 = vmatprep.subr.bf16.mxu0 0
  %1163 = vmatpush1.bf16.msra.mxu0 %v876
  %1164 = vmatprep.subr.bf16.mxu0 0
  %1165 = vmatpush1.bf16.msra.mxu0 %v877
  %1166 = vmatprep.subr.bf16.mxu0 0
  %1167 = vmatpush1.bf16.msra.mxu0 %v878
  %1168 = vmatprep.subr.bf16.mxu0 0
  %1169 = vmatpush1.bf16.msra.mxu0 %v879
  %1170 = vmatprep.subr.bf16.mxu0 0
  %1171 = vmatpush1.bf16.msra.mxu0 %v880
  %1172 = vmatprep.subr.bf16.mxu0 0
  %1173 = vmatpush1.bf16.msra.mxu0 %v881
  %1174 = vmatprep.subr.bf16.mxu0 0
  %1175 = vmatpush1.bf16.msra.mxu0 %v882
  %1176 = vmatprep.subr.bf16.mxu0 0
  %1177 = vmatpush1.bf16.msra.mxu0 %v883
  %1178 = vmatprep.subr.bf16.mxu0 0
  %1179 = vmatpush1.bf16.msra.mxu0 %v884
  %1180 = vmatprep.subr.bf16.mxu0 0
  %1181 = vmatpush1.bf16.msra.mxu0 %v885
  %1182 = vmatprep.mubr.bf16.mxu0 %v313
  %1183 = vmatmul.mubr.bf16.gmra.mrb[0].mxu0 %v312
  %v1184 = vpop.f32.mrb[0].mxu0
  %v1185 = vadd.f32 %v1145, %v1184
  %v1186 = vpop.f32.mrb[0].mxu0
  %v1187 = vpop.f32.mrb[0].mxu0
  %v1188 = vpop.f32.mrb[0].mxu0
  %1189 = vdwg.mxu0
  %1190 = vmatprep.subr.bf16.mxu0 0
  %1191 = vmatpush1.bf16.msra.mxu0 %v886
  %1192 = vmatprep.subr.bf16.mxu0 0
  %1193 = vmatpush1.bf16.msra.mxu0 %v887
  %1194 = vmatprep.subr.bf16.mxu0 0
  %1195 = vmatpush1.bf16.msra.mxu0 %v888
  %1196 = vmatprep.subr.bf16.mxu0 0
  %1197 = vmatpush1.bf16.msra.mxu0 %v889
  %1198 = vmatprep.subr.bf16.mxu0 0
  %1199 = vmatpush1.bf16.msra.mxu0 %v890
  %1200 = vmatprep.subr.bf16.mxu0 0
  %1201 = vmatpush1.bf16.msra.mxu0 %v891
  %1202 = vmatprep.subr.bf16.mxu0 0
  %1203 = vmatpush1.bf16.msra.mxu0 %v892
  %1204 = vmatprep.subr.bf16.mxu0 0
  %1205 = vmatpush1.bf16.msra.mxu0 %v893
  %1206 = vmatprep.subr.bf16.mxu0 0
  %1207 = vmatpush1.bf16.msra.mxu0 %v894
  %1208 = vmatprep.subr.bf16.mxu0 0
  %1209 = vmatpush1.bf16.msra.mxu0 %v895
  %1210 = vmatprep.subr.bf16.mxu0 0
  %1211 = vmatpush1.bf16.msra.mxu0 %v896
  %1212 = vmatprep.subr.bf16.mxu0 0
  %1213 = vmatpush1.bf16.msra.mxu0 %v897
  %1214 = vmatprep.subr.bf16.mxu0 0
  %1215 = vmatpush1.bf16.msra.mxu0 %v898
  %1216 = vmatprep.subr.bf16.mxu0 0
  %1217 = vmatpush1.bf16.msra.mxu0 %v899
  %1218 = vmatprep.subr.bf16.mxu0 0
  %1219 = vmatpush1.bf16.msra.mxu0 %v900
  %1220 = vmatprep.subr.bf16.mxu0 0
  %1221 = vmatpush1.bf16.msra.mxu0 %v901
  %1222 = vmatprep.mubr.bf16.mxu0 %v315
  %1223 = vmatmul.mubr.bf16.gmra.mrb[0].mxu0 %v314
  %v1224 = vpop.f32.mrb[0].mxu0
  %v1225 = vadd.f32 %v1185, %v1224
  %v1226 = vpop.f32.mrb[0].mxu0
  %v1227 = vpop.f32.mrb[0].mxu0
  %v1228 = vpop.f32.mrb[0].mxu0
  %1229 = vdwg.mxu0
  %1230 = vmatprep.subr.bf16.mxu0 0
  %1231 = vmatpush1.bf16.msra.mxu0 %v902
  %1232 = vmatprep.subr.bf16.mxu0 0
  %1233 = vmatpush1.bf16.msra.mxu0 %v903
  %1234 = vmatprep.subr.bf16.mxu0 0
  %1235 = vmatpush1.bf16.msra.mxu0 %v904
  %1236 = vmatprep.subr.bf16.mxu0 0
  %1237 = vmatpush1.bf16.msra.mxu0 %v905
  %1238 = vmatprep.subr.bf16.mxu0 0
  %1239 = vmatpush1.bf16.msra.mxu0 %v906
  %1240 = vmatprep.subr.bf16.mxu0 0
  %1241 = vmatpush1.bf16.msra.mxu0 %v907
  %1242 = vmatprep.subr.bf16.mxu0 0
  %1243 = vmatpush1.bf16.msra.mxu0 %v908
  %1244 = vmatprep.subr.bf16.mxu0 0
  %1245 = vmatpush1.bf16.msra.mxu0 %v909
  %1246 = vmatprep.subr.bf16.mxu0 0
  %1247 = vmatpush1.bf16.msra.mxu0 %v910
  %1248 = vmatprep.subr.bf16.mxu0 0
  %1249 = vmatpush1.bf16.msra.mxu0 %v911
  %1250 = vmatprep.subr.bf16.mxu0 0
  %1251 = vmatpush1.bf16.msra.mxu0 %v912
  %1252 = vmatprep.subr.bf16.mxu0 0
  %1253 = vmatpush1.bf16.msra.mxu0 %v913
  %1254 = vmatprep.subr.bf16.mxu0 0
  %1255 = vmatpush1.bf16.msra.mxu0 %v914
  %1256 = vmatprep.subr.bf16.mxu0 0
  %1257 = vmatpush1.bf16.msra.mxu0 %v915
  %1258 = vmatprep.subr.bf16.mxu0 0
  %1259 = vmatpush1.bf16.msra.mxu0 %v916
  %1260 = vmatprep.subr.bf16.mxu0 0
  %1261 = vmatpush1.bf16.msra.mxu0 %v917
  %1262 = vmatprep.mubr.bf16.mxu0 %v317
  %1263 = vmatmul.mubr.bf16.gmra.mrb[0].mxu0 %v316
  %v1264 = vpop.f32.mrb[0].mxu0
  %v1265 = vadd.f32 %v1225, %v1264
  %v1266 = vpop.f32.mrb[0].mxu0
  %v1267 = vpop.f32.mrb[0].mxu0
  %v1268 = vpop.f32.mrb[0].mxu0
  %1269 = vdwg.mxu0
  %1270 = vmatprep.subr.bf16.mxu0 0
  %1271 = vmatpush1.bf16.msra.mxu0 %v918
  %1272 = vmatprep.subr.bf16.mxu0 0
  %1273 = vmatpush1.bf16.msra.mxu0 %v919
  %1274 = vmatprep.subr.bf16.mxu0 0
  %1275 = vmatpush1.bf16.msra.mxu0 %v920
  %1276 = vmatprep.subr.bf16.mxu0 0
  %1277 = vmatpush1.bf16.msra.mxu0 %v921
  %1278 = vmatprep.subr.bf16.mxu0 0
  %1279 = vmatpush1.bf16.msra.mxu0 %v922
  %1280 = vmatprep.subr.bf16.mxu0 0
  %1281 = vmatpush1.bf16.msra.mxu0 %v923
  %1282 = vmatprep.subr.bf16.mxu0 0
  %1283 = vmatpush1.bf16.msra.mxu0 %v924
  %1284 = vmatprep.subr.bf16.mxu0 0
  %1285 = vmatpush1.bf16.msra.mxu0 %v925
  %1286 = vmatprep.subr.bf16.mxu0 0
  %1287 = vmatpush1.bf16.msra.mxu0 %v926
  %1288 = vmatprep.subr.bf16.mxu0 0
  %1289 = vmatpush1.bf16.msra.mxu0 %v927
  %1290 = vmatprep.subr.bf16.mxu0 0
  %1291 = vmatpush1.bf16.msra.mxu0 %v928
  %1292 = vmatprep.subr.bf16.mxu0 0
  %1293 = vmatpush1.bf16.msra.mxu0 %v929
  %1294 = vmatprep.subr.bf16.mxu0 0
  %1295 = vmatpush1.bf16.msra.mxu0 %v930
  %1296 = vmatprep.subr.bf16.mxu0 0
  %1297 = vmatpush1.bf16.msra.mxu0 %v931
  %1298 = vmatprep.subr.bf16.mxu0 0
  %1299 = vmatpush1.bf16.msra.mxu0 %v932
  %1300 = vmatprep.subr.bf16.mxu0 0
  %1301 = vmatpush1.bf16.msra.mxu0 %v933
  %1302 = vmatprep.mubr.bf16.mxu0 %v319
  %1303 = vmatmul.mubr.bf16.gmra.mrb[0].mxu0 %v318
  %v1304 = vpop.f32.mrb[0].mxu0
  %v1305 = vadd.f32 %v1265, %v1304
  %v1306 = vpop.f32.mrb[0].mxu0
  %v1307 = vpop.f32.mrb[0].mxu0
  %v1308 = vpop.f32.mrb[0].mxu0
  %1309 = vdwg.mxu0
  %1310 = vmatprep.subr.bf16.mxu0 0
  %1311 = vmatpush1.bf16.msra.mxu0 %v934
  %1312 = vmatprep.subr.bf16.mxu0 0
  %1313 = vmatpush1.bf16.msra.mxu0 %v935
  %1314 = vmatprep.subr.bf16.mxu0 0
  %1315 = vmatpush1.bf16.msra.mxu0 %v936
  %1316 = vmatprep.subr.bf16.mxu0 0
  %1317 = vmatpush1.bf16.msra.mxu0 %v937
  %1318 = vmatprep.subr.bf16.mxu0 0
  %1319 = vmatpush1.bf16.msra.mxu0 %v938
  %1320 = vmatprep.subr.bf16.mxu0 0
  %1321 = vmatpush1.bf16.msra.mxu0 %v939
  %1322 = vmatprep.subr.bf16.mxu0 0
  %1323 = vmatpush1.bf16.msra.mxu0 %v940
  %1324 = vmatprep.subr.bf16.mxu0 0
  %1325 = vmatpush1.bf16.msra.mxu0 %v941
  %1326 = vmatprep.subr.bf16.mxu0 0
  %1327 = vmatpush1.bf16.msra.mxu0 %v942
  %1328 = vmatprep.subr.bf16.mxu0 0
  %1329 = vmatpush1.bf16.msra.mxu0 %v943
  %1330 = vmatprep.subr.bf16.mxu0 0
  %1331 = vmatpush1.bf16.msra.mxu0 %v944
  %1332 = vmatprep.subr.bf16.mxu0 0
  %1333 = vmatpush1.bf16.msra.mxu0 %v945
  %1334 = vmatprep.subr.bf16.mxu0 0
  %1335 = vmatpush1.bf16.msra.mxu0 %v946
  %1336 = vmatprep.subr.bf16.mxu0 0
  %1337 = vmatpush1.bf16.msra.mxu0 %v947
  %1338 = vmatprep.subr.bf16.mxu0 0
  %1339 = vmatpush1.bf16.msra.mxu0 %v948
  %1340 = vmatprep.subr.bf16.mxu0 0
  %1341 = vmatpush1.bf16.msra.mxu0 %v949
  %1342 = vmatprep.mubr.bf16.mxu0 %v321
  %1343 = vmatmul.mubr.bf16.gmra.mrb[0].mxu0 %v320
  %v1344 = vpop.f32.mrb[0].mxu0
  %v1345 = vadd.f32 %v1305, %v1344
  %v1346 = vpop.f32.mrb[0].mxu0
  %v1347 = vpop.f32.mrb[0].mxu0
  %v1348 = vpop.f32.mrb[0].mxu0
  %1349 = vdwg.mxu0
  %1350 = vmatprep.subr.bf16.mxu0 0
  %1351 = vmatpush1.bf16.msra.mxu0 %v950
  %1352 = vmatprep.subr.bf16.mxu0 0
  %1353 = vmatpush1.bf16.msra.mxu0 %v951
  %1354 = vmatprep.subr.bf16.mxu0 0
  %1355 = vmatpush1.bf16.msra.mxu0 %v952
  %1356 = vmatprep.subr.bf16.mxu0 0
  %1357 = vmatpush1.bf16.msra.mxu0 %v953
  %1358 = vmatprep.subr.bf16.mxu0 0
  %1359 = vmatpush1.bf16.msra.mxu0 %v954
  %1360 = vmatprep.subr.bf16.mxu0 0
  %1361 = vmatpush1.bf16.msra.mxu0 %v955
  %1362 = vmatprep.subr.bf16.mxu0 0
  %1363 = vmatpush1.bf16.msra.mxu0 %v956
  %1364 = vmatprep.subr.bf16.mxu0 0
  %1365 = vmatpush1.bf16.msra.mxu0 %v957
  %1366 = vmatprep.subr.bf16.mxu0 0
  %1367 = vmatpush1.bf16.msra.mxu0 %v958
  %1368 = vmatprep.subr.bf16.mxu0 0
  %1369 = vmatpush1.bf16.msra.mxu0 %v959
  %1370 = vmatprep.subr.bf16.mxu0 0
  %1371 = vmatpush1.bf16.msra.mxu0 %v960
  %1372 = vmatprep.subr.bf16.mxu0 0
  %1373 = vmatpush1.bf16.msra.mxu0 %v961
  %1374 = vmatprep.subr.bf16.mxu0 0
  %1375 = vmatpush1.bf16.msra.mxu0 %v962
  %1376 = vmatprep.subr.bf16.mxu0 0
  %1377 = vmatpush1.bf16.msra.mxu0 %v963
  %1378 = vmatprep.subr.bf16.mxu0 0
  %1379 = vmatpush1.bf16.msra.mxu0 %v964
  %1380 = vmatprep.subr.bf16.mxu0 0
  %1381 = vmatpush1.bf16.msra.mxu0 %v965
  %1382 = vmatprep.mubr.bf16.mxu0 %v323
  %1383 = vmatmul.mubr.bf16.gmra.mrb[0].mxu0 %v322
  %v1384 = vpop.f32.mrb[0].mxu0
  %v1385 = vadd.f32 %v1345, %v1384
  %v1386 = vpop.f32.mrb[0].mxu0
  %v1387 = vpop.f32.mrb[0].mxu0
  %v1388 = vpop.f32.mrb[0].mxu0
  %1389 = vdwg.mxu0
  %1390 = vmatprep.subr.bf16.mxu0 0
  %1391 = vmatpush1.bf16.msra.mxu0 %v966
  %1392 = vmatprep.subr.bf16.mxu0 0
  %1393 = vmatpush1.bf16.msra.mxu0 %v967
  %1394 = vmatprep.subr.bf16.mxu0 0
  %1395 = vmatpush1.bf16.msra.mxu0 %v968
  %1396 = vmatprep.subr.bf16.mxu0 0
  %1397 = vmatpush1.bf16.msra.mxu0 %v969
  %1398 = vmatprep.subr.bf16.mxu0 0
  %1399 = vmatpush1.bf16.msra.mxu0 %v970
  %1400 = vmatprep.subr.bf16.mxu0 0
  %1401 = vmatpush1.bf16.msra.mxu0 %v971
  %1402 = vmatprep.subr.bf16.mxu0 0
  %1403 = vmatpush1.bf16.msra.mxu0 %v972
  %1404 = vmatprep.subr.bf16.mxu0 0
  %1405 = vmatpush1.bf16.msra.mxu0 %v973
  %1406 = vmatprep.subr.bf16.mxu0 0
  %1407 = vmatpush1.bf16.msra.mxu0 %v974
  %1408 = vmatprep.subr.bf16.mxu0 0
  %1409 = vmatpush1.bf16.msra.mxu0 %v975
  %1410 = vmatprep.subr.bf16.mxu0 0
  %1411 = vmatpush1.bf16.msra.mxu0 %v976
  %1412 = vmatprep.subr.bf16.mxu0 0
  %1413 = vmatpush1.bf16.msra.mxu0 %v977
  %1414 = vmatprep.subr.bf16.mxu0 0
  %1415 = vmatpush1.bf16.msra.mxu0 %v978
  %1416 = vmatprep.subr.bf16.mxu0 0
  %1417 = vmatpush1.bf16.msra.mxu0 %v979
  %1418 = vmatprep.subr.bf16.mxu0 0
  %1419 = vmatpush1.bf16.msra.mxu0 %v980
  %1420 = vmatprep.subr.bf16.mxu0 0
  %1421 = vmatpush1.bf16.msra.mxu0 %v981
  %1422 = vmatprep.mubr.bf16.mxu0 %v325
  %1423 = vmatmul.mubr.bf16.gmra.mrb[0].mxu0 %v324
  %v1424 = vpop.f32.mrb[0].mxu0
  %v1425 = vadd.f32 %v1385, %v1424
  %v1426 = vpop.f32.mrb[0].mxu0
  %v1427 = vpop.f32.mrb[0].mxu0
  %v1428 = vpop.f32.mrb[0].mxu0
  %1429 = vdwg.mxu0
  %v1430 = vmax.f32 %v1425, 0.0
  %v1431 = vpack.c.bf16 %v1430, %v1430
  %1432 = vst [vmem:[%s3] sm:$0xf] %v1431
  // Predicated region
  $region14: #{light_cnn_forward.4} parent=0 // pred_check
    _
  $region15: #{light_cnn_forward.4} parent=0 // pred_check_branch
    %1434 = sbr.rel (0) target = $region17
  $region16: #{light_cnn_forward.4} parent=0 // pred_region
    _
  $region17: #{light_cnn_forward.4} parent=0 // pred_fallthru
    _
  // Predicated region
  $region18: #{light_cnn_forward.4} parent=0 // pred_check
    _
  $region19: #{light_cnn_forward.4} parent=0 // pred_check_branch
    %1436 = sbr.rel (0) target = $region21
  $region20: #{light_cnn_forward.4} parent=0 // pred_region
    _
  $region21: #{light_cnn_forward.4} parent=0 // pred_fallthru
    _

// kernel: light_cnn_forward.5
$region0: #{light_cnn_forward.5}
  #allocation0 [shape = 'u32[]', space=smem, size = 0x4, offset = 0x4, fixed_abs, tag = 'smem constant byte address 0x4 - core index']
  #allocation1 [shape = 'u32[144,128]{1,0:T(1,128)}', space=vmem, size = 0x12000, scoped, tag = 'internal scratch']
  %s0 = inlined_call_operand.vmem [shape: bf16[2,1,1152], index: 0, kind: input, shape index: {}]
  %s1 = inlined_call_operand.vmem [shape: bf16[1152,128], index: 1, kind: input, shape index: {}]
  %s2 = inlined_call_operand.vmem [shape: f32[1,128], index: 2, kind: input, shape index: {}]
  %s3 = inlined_call_operand.vmem [shape: bf16[128,128], index: 3, kind: input, shape index: {}]
  %s4 = inlined_call_operand.vmem [shape: f32[1,128], index: 4, kind: input, shape index: {}]
  %s5 = inlined_call_operand.vmem [shape: f32[1,128], index: 5, kind: input, shape index: {}]
  %s6 = inlined_call_operand.vmem [shape: f32[1,128], index: 6, kind: input, shape index: {}]
  %s7 = inlined_call_operand.hbm [shape: f32[2,1,128], index: 7, kind: output, shape index: {}]
  %s8 = sld [smem:[#allocation0]]
  $region61: #{light_cnn_forward.5} parent=0
    _
  %s10 = ssub.s32 1, %s8
  %s11 = scalar_select 0, %s10, %s8
  $region1: #{light_cnn_forward.5} parent=0
    #allocation2 [shape = 'u8[1024]{0}', space=vmem, size = 0x400, scoped, tag = 'output window, operand 0']
    #allocation3 [shape = 's32[2]{0}', space=sflag, size = 0x8, scoped, tag = 'scoped memory for light_cnn_forward.5']
    %12 = vsyncpa [#allocation3], 0
    %s13 = scalar_lea.sflag [#allocation3], 1
    %14 = vsyncpa %s13, 0
    loop: start=0, step=1, limit=4
    $region2: #{light_cnn_forward.5} parent=1 // loop_pre_header
      _
    $region3: #{light_cnn_forward.5} parent=1 // loop_header
      %s16 = sphi 0, %s20
      %p17 = scmp.ge.s32.totalorder %s16, 4
      %s26 = sphi 0, %s28
      %s29 = sphi 0, %s26
      %s30 = sphi 0, %s29
      %s46 = sphi 0, %s30
      %s50 = sphi 0, %s50
      %s52 = sphi 0, %s50
      %s53 = sphi 0, %s52
      %s67 = sphi 0, %s53
      %s71 = sphi 0, %s71
      %s73 = sphi 0, %s71
      %s74 = sphi 0, %s73
      %s88 = sphi 0, %s74
      %s92 = sphi 0, %s92
      %s94 = sphi 0, %s92
      %s95 = sphi 0, %s94
      %s109 = sphi 0, %s95
      %s113 = sphi 0, %s113
      %s115 = sphi 0, %s113
      %s116 = sphi 0, %s115
      %s130 = sphi 0, %s116
      %s134 = sphi 0, %s134
      %s136 = sphi 0, %s134
      %s137 = sphi 0, %s136
      %s151 = sphi 0, %s137
      %s155 = sphi 0, %s155
      %s157 = sphi 0, %s155
      %s158 = sphi 0, %s157
      %s172 = sphi 0, %s158
      %s178 = sphi 0, %s180
      %s181 = sphi 0, %s178
      %s182 = sphi 0, %s181
      %s198 = sphi 0, %s182
    $region4: #{light_cnn_forward.5} parent=1 // loop_header_branch
      %19 = sbr.rel (%p17) target = $region8
    $region5: #{light_cnn_forward.5} parent=1 // loop_body
      %s21 = ssub.s32 %s16, 1
      %s22 = ssub.s32 %s16, 2
      %s23 = sadd.s32 %s16, 1
      %s24 = ssub.s32 %s16, %s23
      %p25 = scmp.eq.s32.totalorder %s24, 0
      %s27 = sadd.s32 %s26, 1
      %s28 = scalar_select %p25, %s26, %s27
      %p31 = pneg %p25
      %p32 = scmp.eq.s32.totalorder %s16, 1
      %p33 = por %p31, %p32
      %p34 = scmp.ne.s32.totalorder %s26, %s29
      %p35 = scmp.eq.s32.totalorder %s16, 0
      %p36 = por %p34, %p35
      %p37 = scmp.ne.s32.totalorder %s26, %s29
      %p38 = scmp.eq.s32.totalorder %s21, 1
      %p39 = por %p37, %p38
      %p40 = scmp.ne.s32.totalorder %s29, %s30
      %p41 = scmp.eq.s32.totalorder %s21, 0
      %p42 = por %p40, %p41
      %p43 = scmp.ne.s32.totalorder %s29, %s30
      %p44 = scmp.eq.s32.totalorder %s22, 1
      %p45 = por %p43, %p44
      %p47 = scmp.ne.s32.totalorder %s30, %s46
      %p48 = scmp.eq.s32.totalorder %s22, 0
      %p49 = por %p47, %p48
      %s51 = sadd.s32 %s50, 1
      %p54 = scmp.eq.s32.totalorder %s16, 1
      %p55 = scmp.ne.s32.totalorder %s50, %s52
      %p56 = scmp.eq.s32.totalorder %s16, 0
      %p57 = por %p55, %p56
      %p58 = scmp.ne.s32.totalorder %s50, %s52
      %p59 = scmp.eq.s32.totalorder %s21, 1
      %p60 = por %p58, %p59
      %p61 = scmp.ne.s32.totalorder %s52, %s53
      %p62 = scmp.eq.s32.totalorder %s21, 0
      %p63 = por %p61, %p62
      %p64 = scmp.ne.s32.totalorder %s52, %s53
      %p65 = scmp.eq.s32.totalorder %s22, 1
      %p66 = por %p64, %p65
      %p68 = scmp.ne.s32.totalorder %s53, %s67
      %p69 = scmp.eq.s32.totalorder %s22, 0
      %p70 = por %p68, %p69
      %s72 = sadd.s32 %s71, 1
      %p75 = scmp.eq.s32.totalorder %s16, 1
      %p76 = scmp.ne.s32.totalorder %s71, %s73
      %p77 = scmp.eq.s32.totalorder %s16, 0
      %p78 = por %p76, %p77
      %p79 = scmp.ne.s32.totalorder %s71, %s73
      %p80 = scmp.eq.s32.totalorder %s21, 1
      %p81 = por %p79, %p80
      %p82 = scmp.ne.s32.totalorder %s73, %s74
      %p83 = scmp.eq.s32.totalorder %s21, 0
      %p84 = por %p82, %p83
      %p85 = scmp.ne.s32.totalorder %s73, %s74
      %p86 = scmp.eq.s32.totalorder %s22, 1
      %p87 = por %p85, %p86
      %p89 = scmp.ne.s32.totalorder %s74, %s88
      %p90 = scmp.eq.s32.totalorder %s22, 0
      %p91 = por %p89, %p90
      %s93 = sadd.s32 %s92, 1
      %p96 = scmp.eq.s32.totalorder %s16, 1
      %p97 = scmp.ne.s32.totalorder %s92, %s94
      %p98 = scmp.eq.s32.totalorder %s16, 0
      %p99 = por %p97, %p98
      %p100 = scmp.ne.s32.totalorder %s92, %s94
      %p101 = scmp.eq.s32.totalorder %s21, 1
      %p102 = por %p100, %p101
      %p103 = scmp.ne.s32.totalorder %s94, %s95
      %p104 = scmp.eq.s32.totalorder %s21, 0
      %p105 = por %p103, %p104
      %p106 = scmp.ne.s32.totalorder %s94, %s95
      %p107 = scmp.eq.s32.totalorder %s22, 1
      %p108 = por %p106, %p107
      %p110 = scmp.ne.s32.totalorder %s95, %s109
      %p111 = scmp.eq.s32.totalorder %s22, 0
      %p112 = por %p110, %p111
      %s114 = sadd.s32 %s113, 1
      %p117 = scmp.eq.s32.totalorder %s16, 1
      %p118 = scmp.ne.s32.totalorder %s113, %s115
      %p119 = scmp.eq.s32.totalorder %s16, 0
      %p120 = por %p118, %p119
      %p121 = scmp.ne.s32.totalorder %s113, %s115
      %p122 = scmp.eq.s32.totalorder %s21, 1
      %p123 = por %p121, %p122
      %p124 = scmp.ne.s32.totalorder %s115, %s116
      %p125 = scmp.eq.s32.totalorder %s21, 0
      %p126 = por %p124, %p125
      %p127 = scmp.ne.s32.totalorder %s115, %s116
      %p128 = scmp.eq.s32.totalorder %s22, 1
      %p129 = por %p127, %p128
      %p131 = scmp.ne.s32.totalorder %s116, %s130
      %p132 = scmp.eq.s32.totalorder %s22, 0
      %p133 = por %p131, %p132
      %s135 = sadd.s32 %s134, 1
      %p138 = scmp.eq.s32.totalorder %s16, 1
      %p139 = scmp.ne.s32.totalorder %s134, %s136
      %p140 = scmp.eq.s32.totalorder %s16, 0
      %p141 = por %p139, %p140
      %p142 = scmp.ne.s32.totalorder %s134, %s136
      %p143 = scmp.eq.s32.totalorder %s21, 1
      %p144 = por %p142, %p143
      %p145 = scmp.ne.s32.totalorder %s136, %s137
      %p146 = scmp.eq.s32.totalorder %s21, 0
      %p147 = por %p145, %p146
      %p148 = scmp.ne.s32.totalorder %s136, %s137
      %p149 = scmp.eq.s32.totalorder %s22, 1
      %p150 = por %p148, %p149
      %p152 = scmp.ne.s32.totalorder %s137, %s151
      %p153 = scmp.eq.s32.totalorder %s22, 0
      %p154 = por %p152, %p153
      %s156 = sadd.s32 %s155, 1
      %p159 = scmp.eq.s32.totalorder %s16, 1
      %p160 = scmp.ne.s32.totalorder %s155, %s157
      %p161 = scmp.eq.s32.totalorder %s16, 0
      %p162 = por %p160, %p161
      %p163 = scmp.ne.s32.totalorder %s155, %s157
      %p164 = scmp.eq.s32.totalorder %s21, 1
      %p165 = por %p163, %p164
      %p166 = scmp.ne.s32.totalorder %s157, %s158
      %p167 = scmp.eq.s32.totalorder %s21, 0
      %p168 = por %p166, %p167
      %p169 = scmp.ne.s32.totalorder %s157, %s158
      %p170 = scmp.eq.s32.totalorder %s22, 1
      %p171 = por %p169, %p170
      %p173 = scmp.ne.s32.totalorder %s158, %s172
      %p174 = scmp.eq.s32.totalorder %s22, 0
      %p175 = por %p173, %p174
      %s176 = ssub.s32 %s16, %s23
      %p177 = scmp.eq.s32.totalorder %s176, 0
      %s179 = sadd.s32 %s178, 1
      %s180 = scalar_select %p177, %s178, %s179
      %p183 = pneg %p177
      %p184 = scmp.eq.s32.totalorder %s16, 1
      %p185 = por %p183, %p184
      %p186 = scmp.ne.s32.totalorder %s178, %s181
      %p187 = scmp.eq.s32.totalorder %s16, 0
      %p188 = por %p186, %p187
      %p189 = scmp.ne.s32.totalorder %s178, %s181
      %p190 = scmp.eq.s32.totalorder %s21, 1
      %p191 = por %p189, %p190
      %p192 = scmp.ne.s32.totalorder %s181, %s182
      %p193 = scmp.eq.s32.totalorder %s21, 0
      %p194 = por %p192, %p193
      %p195 = scmp.ne.s32.totalorder %s181, %s182
      %p196 = scmp.eq.s32.totalorder %s22, 1
      %p197 = por %p195, %p196
      %p199 = scmp.ne.s32.totalorder %s182, %s198
      %p200 = scmp.eq.s32.totalorder %s22, 0
      %p201 = por %p199, %p200
      %p202 = scmp.le.s32.totalorder 1, %s16
      %p203 = scmp.lt.s32.totalorder %s16, 3
      %p204 = pnand %p202, %p203
      %p205 = pneg %p204
      // Predicated region
      $region9: #{light_cnn_forward.5} parent=5 // pred_check
        _
      $region10: #{light_cnn_forward.5} parent=5 // pred_check_branch
        %207 = sbr.rel (%p204) target = $region12
      $region11: #{light_cnn_forward.5} parent=5 // pred_region
        %s208 = ssub.s32 %s16, 1
        // Predicated region
        $region13: #{light_cnn_forward.5} parent=11 // pred_check
          %p209 = pneg %p63
        $region14: #{light_cnn_forward.5} parent=11 // pred_check_branch
          %211 = sbr.rel (%p209) target = $region16
        $region15: #{light_cnn_forward.5} parent=11 // pred_region
          _
        $region16: #{light_cnn_forward.5} parent=11 // pred_fallthru
          _
        // Predicated region
        $region17: #{light_cnn_forward.5} parent=11 // pred_check
          %p212 = pneg %p84
        $region18: #{light_cnn_forward.5} parent=11 // pred_check_branch
          %214 = sbr.rel (%p212) target = $region20
        $region19: #{light_cnn_forward.5} parent=11 // pred_region
          _
        $region20: #{light_cnn_forward.5} parent=11 // pred_fallthru
          _
        // Predicated region
        $region21: #{light_cnn_forward.5} parent=11 // pred_check
          %p215 = pneg %p105
        $region22: #{light_cnn_forward.5} parent=11 // pred_check_branch
          %217 = sbr.rel (%p215) target = $region24
        $region23: #{light_cnn_forward.5} parent=11 // pred_region
          _
        $region24: #{light_cnn_forward.5} parent=11 // pred_fallthru
          _
        // Predicated region
        $region25: #{light_cnn_forward.5} parent=11 // pred_check
          %p218 = pneg %p126
        $region26: #{light_cnn_forward.5} parent=11 // pred_check_branch
          %220 = sbr.rel (%p218) target = $region28
        $region27: #{light_cnn_forward.5} parent=11 // pred_region
          _
        $region28: #{light_cnn_forward.5} parent=11 // pred_fallthru
          _
        // Predicated region
        $region29: #{light_cnn_forward.5} parent=11 // pred_check
          %p221 = pneg %p147
        $region30: #{light_cnn_forward.5} parent=11 // pred_check_branch
          %223 = sbr.rel (%p221) target = $region32
        $region31: #{light_cnn_forward.5} parent=11 // pred_region
          _
        $region32: #{light_cnn_forward.5} parent=11 // pred_fallthru
          _
        // Predicated region
        $region33: #{light_cnn_forward.5} parent=11 // pred_check
          %p224 = pneg %p168
        $region34: #{light_cnn_forward.5} parent=11 // pred_check_branch
          %226 = sbr.rel (%p224) target = $region36
        $region35: #{light_cnn_forward.5} parent=11 // pred_region
          _
        $region36: #{light_cnn_forward.5} parent=11 // pred_fallthru
          _
      $region12: #{light_cnn_forward.5} parent=5 // pred_fallthru
        _
      %p227 = scmp.lt.s32.totalorder %s16, 2
      // Predicated region
      $region37: #{light_cnn_forward.5} parent=5 // pred_check
        %p228 = pneg %p227
      $region38: #{light_cnn_forward.5} parent=5 // pred_check_branch
        %230 = sbr.rel (%p228) target = $region40
      $region39: #{light_cnn_forward.5} parent=5 // pred_region
        // Predicated region
        $region41: #{light_cnn_forward.5} parent=39 // pred_check
          %p231 = pneg %p36
        $region42: #{light_cnn_forward.5} parent=39 // pred_check_branch
          %233 = sbr.rel (%p231) target = $region44
        $region43: #{light_cnn_forward.5} parent=39 // pred_region
          %p234 = scmp.lt.s32.totalorder %s16, 1
          %s235 = scalar_select %p234, %s16, 1
          %s236 = smul.addr %s235, 9
          %s237 = scalar_lea.vmem %s0, %s236
        $region44: #{light_cnn_forward.5} parent=39 // pred_fallthru
          _
      $region40: #{light_cnn_forward.5} parent=5 // pred_fallthru
        _
      %p238 = scmp.le.s32.totalorder 1, %s16
      %p239 = scmp.lt.s32.totalorder %s16, 3
      %p240 = pnand %p238, %p239
      %p241 = pneg %p240
      // Predicated region
      $region45: #{light_cnn_forward.5} parent=5 // pred_check
        _
      $region46: #{light_cnn_forward.5} parent=5 // pred_check_branch
        %243 = sbr.rel (%p240) target = $region48
      $region47: #{light_cnn_forward.5} parent=5 // pred_region
        %s244 = ssub.s32 %s16, 1
        %p245 = scmp.lt.s32.totalorder %s21, 1
        %s246 = scalar_select %p245, %s21, 1
        %s247 = smul.addr %s246, 9
        %s248 = scalar_lea.vmem %s0, %s247
        %p249 = pneg %p42
        %p250 = pneg %p39
        %p251 = pneg %p63
        %p252 = pneg %p60
        %p253 = pneg %p84
        %p254 = pneg %p81
        %p255 = pneg %p105
        %p256 = pneg %p102
        %p257 = pneg %p126
        %p258 = pneg %p123
        %p259 = pneg %p147
        %p260 = pneg %p144
        %p261 = pneg %p168
        %p262 = pneg %p165
        %p263 = pneg %p194
        %p264 = pneg %p191
        %s265 = sand.u32 %s181, 1
        %s266 = scalar_lea.sflag [#allocation3], %s265
        %s267 = sand.u32 %s181, 1
        %s268 = scalar_lea.vmem [#allocation2], %s267
        %p269 = scmp.lt.s32.totalorder %s21, 1
        %s270 = scalar_select %p269, %s21, 1
        %s271 = smul.addr %s270, 9
        %s272 = scalar_lea.vmem %s0, %s271
        %v274 = vld [vmem:[%s272] sm:$0xff]
        %v275 = vld [vmem:[%s272 + $0x8] sm:$0x1]
        %v276 = vld [vmem:[%s1] sm:$0xf]
        %v277 = vld [vmem:[%s1 + $0x4] sm:$0xf]
        %v278 = vld [vmem:[%s1 + $0x8] sm:$0xf]
        %v279 = vld [vmem:[%s1 + $0xc] sm:$0xf]
        %v280 = vld [vmem:[%s1 + $0x10] sm:$0xf]
        %v281 = vld [vmem:[%s1 + $0x14] sm:$0xf]
        %v282 = vld [vmem:[%s1 + $0x18] sm:$0xf]
        %v283 = vld [vmem:[%s1 + $0x1c] sm:$0xf]
        %v284 = vld [vmem:[%s1 + $0x20] sm:$0xf]
        %v285 = vld [vmem:[%s1 + $0x24] sm:$0xf]
        %v286 = vld [vmem:[%s1 + $0x28] sm:$0xf]
        %v287 = vld [vmem:[%s1 + $0x2c] sm:$0xf]
        %v288 = vld [vmem:[%s1 + $0x30] sm:$0xf]
        %v289 = vld [vmem:[%s1 + $0x34] sm:$0xf]
        %v290 = vld [vmem:[%s1 + $0x38] sm:$0xf]
        %v291 = vld [vmem:[%s1 + $0x3c] sm:$0xf]
        %v292 = vld [vmem:[%s1 + $0x40] sm:$0xf]
        %v293 = vld [vmem:[%s1 + $0x44] sm:$0xf]
        %v294 = vld [vmem:[%s1 + $0x48] sm:$0xf]
        %v295 = vld [vmem:[%s1 + $0x4c] sm:$0xf]
        %v296 = vld [vmem:[%s1 + $0x50] sm:$0xf]
        %v297 = vld [vmem:[%s1 + $0x54] sm:$0xf]
        %v298 = vld [vmem:[%s1 + $0x58] sm:$0xf]
        %v299 = vld [vmem:[%s1 + $0x5c] sm:$0xf]
        %v300 = vld [vmem:[%s1 + $0x60] sm:$0xf]
        %v301 = vld [vmem:[%s1 + $0x64] sm:$0xf]
        %v302 = vld [vmem:[%s1 + $0x68] sm:$0xf]
        %v303 = vld [vmem:[%s1 + $0x6c] sm:$0xf]
        %v304 = vld [vmem:[%s1 + $0x70] sm:$0xf]
        %v305 = vld [vmem:[%s1 + $0x74] sm:$0xf]
        %v306 = vld [vmem:[%s1 + $0x78] sm:$0xf]
        %v307 = vld [vmem:[%s1 + $0x7c] sm:$0xf]
        %v308 = vld [vmem:[%s1 + $0x80] sm:$0xf]
        %v309 = vld [vmem:[%s1 + $0x84] sm:$0xf]
        %v310 = vld [vmem:[%s1 + $0x88] sm:$0xf]
        %v311 = vld [vmem:[%s1 + $0x8c] sm:$0xf]
        %v312 = vld [vmem:[%s1 + $0x90] sm:$0xf]
        %v313 = vld [vmem:[%s1 + $0x94] sm:$0xf]
        %v314 = vld [vmem:[%s1 + $0x98] sm:$0xf]
        %v315 = vld [vmem:[%s1 + $0x9c] sm:$0xf]
        %v316 = vld [vmem:[%s1 + $0xa0] sm:$0xf]
        %v317 = vld [vmem:[%s1 + $0xa4] sm:$0xf]
        %v318 = vld [vmem:[%s1 + $0xa8] sm:$0xf]
        %v319 = vld [vmem:[%s1 + $0xac] sm:$0xf]
        %v320 = vld [vmem:[%s1 + $0xb0] sm:$0xf]
        %v321 = vld [vmem:[%s1 + $0xb4] sm:$0xf]
        %v322 = vld [vmem:[%s1 + $0xb8] sm:$0xf]
        %v323 = vld [vmem:[%s1 + $0xbc] sm:$0xf]
        %v324 = vld [vmem:[%s1 + $0xc0] sm:$0xf]
        %v325 = vld [vmem:[%s1 + $0xc4] sm:$0xf]
        %v326 = vld [vmem:[%s1 + $0xc8] sm:$0xf]
        %v327 = vld [vmem:[%s1 + $0xcc] sm:$0xf]
        %v328 = vld [vmem:[%s1 + $0xd0] sm:$0xf]
        %v329 = vld [vmem:[%s1 + $0xd4] sm:$0xf]
        %v330 = vld [vmem:[%s1 + $0xd8] sm:$0xf]
        %v331 = vld [vmem:[%s1 + $0xdc] sm:$0xf]
        %v332 = vld [vmem:[%s1 + $0xe0] sm:$0xf]
        %v333 = vld [vmem:[%s1 + $0xe4] sm:$0xf]
        %v334 = vld [vmem:[%s1 + $0xe8] sm:$0xf]
        %v335 = vld [vmem:[%s1 + $0xec] sm:$0xf]
        %v336 = vld [vmem:[%s1 + $0xf0] sm:$0xf]
        %v337 = vld [vmem:[%s1 + $0xf4] sm:$0xf]
        %v338 = vld [vmem:[%s1 + $0xf8] sm:$0xf]
        %v339 = vld [vmem:[%s1 + $0xfc] sm:$0xf]
        %v340 = vld [vmem:[%s1 + $0x100] sm:$0xf]
        %v341 = vld [vmem:[%s1 + $0x104] sm:$0xf]
        %v342 = vld [vmem:[%s1 + $0x108] sm:$0xf]
        %v343 = vld [vmem:[%s1 + $0x10c] sm:$0xf]
        %v344 = vld [vmem:[%s1 + $0x110] sm:$0xf]
        %v345 = vld [vmem:[%s1 + $0x114] sm:$0xf]
        %v346 = vld [vmem:[%s1 + $0x118] sm:$0xf]
        %v347 = vld [vmem:[%s1 + $0x11c] sm:$0xf]
        %v348 = vld [vmem:[%s1 + $0x120] sm:$0xf]
        %v349 = vld [vmem:[%s1 + $0x124] sm:$0xf]
        %v350 = vld [vmem:[%s1 + $0x128] sm:$0xf]
        %v351 = vld [vmem:[%s1 + $0x12c] sm:$0xf]
        %v352 = vld [vmem:[%s1 + $0x130] sm:$0xf]
        %v353 = vld [vmem:[%s1 + $0x134] sm:$0xf]
        %v354 = vld [vmem:[%s1 + $0x138] sm:$0xf]
        %v355 = vld [vmem:[%s1 + $0x13c] sm:$0xf]
        %v356 = vld [vmem:[%s1 + $0x140] sm:$0xf]
        %v357 = vld [vmem:[%s1 + $0x144] sm:$0xf]
        %v358 = vld [vmem:[%s1 + $0x148] sm:$0xf]
        %v359 = vld [vmem:[%s1 + $0x14c] sm:$0xf]
        %v360 = vld [vmem:[%s1 + $0x150] sm:$0xf]
        %v361 = vld [vmem:[%s1 + $0x154] sm:$0xf]
        %v362 = vld [vmem:[%s1 + $0x158] sm:$0xf]
        %v363 = vld [vmem:[%s1 + $0x15c] sm:$0xf]
        %v364 = vld [vmem:[%s1 + $0x160] sm:$0xf]
        %v365 = vld [vmem:[%s1 + $0x164] sm:$0xf]
        %v366 = vld [vmem:[%s1 + $0x168] sm:$0xf]
        %v367 = vld [vmem:[%s1 + $0x16c] sm:$0xf]
        %v368 = vld [vmem:[%s1 + $0x170] sm:$0xf]
        %v369 = vld [vmem:[%s1 + $0x174] sm:$0xf]
        %v370 = vld [vmem:[%s1 + $0x178] sm:$0xf]
        %v371 = vld [vmem:[%s1 + $0x17c] sm:$0xf]
        %v372 = vld [vmem:[%s1 + $0x180] sm:$0xf]
        %v373 = vld [vmem:[%s1 + $0x184] sm:$0xf]
        %v374 = vld [vmem:[%s1 + $0x188] sm:$0xf]
        %v375 = vld [vmem:[%s1 + $0x18c] sm:$0xf]
        %v376 = vld [vmem:[%s1 + $0x190] sm:$0xf]
        %v377 = vld [vmem:[%s1 + $0x194] sm:$0xf]
        %v378 = vld [vmem:[%s1 + $0x198] sm:$0xf]
        %v379 = vld [vmem:[%s1 + $0x19c] sm:$0xf]
        %v380 = vld [vmem:[%s1 + $0x1a0] sm:$0xf]
        %v381 = vld [vmem:[%s1 + $0x1a4] sm:$0xf]
        %v382 = vld [vmem:[%s1 + $0x1a8] sm:$0xf]
        %v383 = vld [vmem:[%s1 + $0x1ac] sm:$0xf]
        %v384 = vld [vmem:[%s1 + $0x1b0] sm:$0xf]
        %v385 = vld [vmem:[%s1 + $0x1b4] sm:$0xf]
        %v386 = vld [vmem:[%s1 + $0x1b8] sm:$0xf]
        %v387 = vld [vmem:[%s1 + $0x1bc] sm:$0xf]
        %v388 = vld [vmem:[%s1 + $0x1c0] sm:$0xf]
        %v389 = vld [vmem:[%s1 + $0x1c4] sm:$0xf]
        %v390 = vld [vmem:[%s1 + $0x1c8] sm:$0xf]
        %v391 = vld [vmem:[%s1 + $0x1cc] sm:$0xf]
        %v392 = vld [vmem:[%s1 + $0x1d0] sm:$0xf]
        %v393 = vld [vmem:[%s1 + $0x1d4] sm:$0xf]
        %v394 = vld [vmem:[%s1 + $0x1d8] sm:$0xf]
        %v395 = vld [vmem:[%s1 + $0x1dc] sm:$0xf]
        %v396 = vld [vmem:[%s1 + $0x1e0] sm:$0xf]
        %v397 = vld [vmem:[%s1 + $0x1e4] sm:$0xf]
        %v398 = vld [vmem:[%s1 + $0x1e8] sm:$0xf]
        %v399 = vld [vmem:[%s1 + $0x1ec] sm:$0xf]
        %v400 = vld [vmem:[%s1 + $0x1f0] sm:$0xf]
        %v401 = vld [vmem:[%s1 + $0x1f4] sm:$0xf]
        %v402 = vld [vmem:[%s1 + $0x1f8] sm:$0xf]
        %v403 = vld [vmem:[%s1 + $0x1fc] sm:$0xf]
        %v404 = vld [vmem:[%s1 + $0x200] sm:$0xf]
        %v405 = vld [vmem:[%s1 + $0x204] sm:$0xf]
        %v406 = vld [vmem:[%s1 + $0x208] sm:$0xf]
        %v407 = vld [vmem:[%s1 + $0x20c] sm:$0xf]
        %v408 = vld [vmem:[%s1 + $0x210] sm:$0xf]
        %v409 = vld [vmem:[%s1 + $0x214] sm:$0xf]
        %v410 = vld [vmem:[%s1 + $0x218] sm:$0xf]
        %v411 = vld [vmem:[%s1 + $0x21c] sm:$0xf]
        %v412 = vld [vmem:[%s1 + $0x220] sm:$0xf]
        %v413 = vld [vmem:[%s1 + $0x224] sm:$0xf]
        %v414 = vld [vmem:[%s1 + $0x228] sm:$0xf]
        %v415 = vld [vmem:[%s1 + $0x22c] sm:$0xf]
        %v416 = vld [vmem:[%s1 + $0x230] sm:$0xf]
        %v417 = vld [vmem:[%s1 + $0x234] sm:$0xf]
        %v418 = vld [vmem:[%s1 + $0x238] sm:$0xf]
        %v419 = vld [vmem:[%s1 + $0x23c] sm:$0xf]
        %v420 = vld [vmem:[%s2] sm:$0x1]
        %v423 = vcombine.high %v274, %v274
        %v425 = vunpack.c.l.s4 1966171168
        %v426 = vunpack.c.0.s8 %v425
        %v427 = vlaneseq
        %v428 = vshrl.u32 %v427, 7
        %v429 = vsub.s32 %v426, %v428
        %v430 = vrot.slane %v274, %v429
        %v432 = vunpack.c.l.s4 1966171168
        %v433 = vunpack.c.0.s8 %v432
        %v434 = vlaneseq
        %v435 = vshrl.u32 %v434, 7
        %v436 = vsub.s32 %v433, %v435
        %v437 = vrot.slane %v423, %v436
        %v438 = vcombine.high %v430, %v430
        %v439 = vcombine.high %v437, %v437
        %v441 = vunpack.c.l.s4 1966171168
        %v442 = vunpack.c.0.s8 %v441
        %v443 = vlaneseq
        %v444 = vshrl.u32 %v443, 7
        %v445 = vsub.s32 %v442, %v444
        %v446 = vrot.slane %v430, %v445
        %v448 = vunpack.c.l.s4 1966171168
        %v449 = vunpack.c.0.s8 %v448
        %v450 = vlaneseq
        %v451 = vshrl.u32 %v450, 7
        %v452 = vsub.s32 %v449, %v451
        %v453 = vrot.slane %v437, %v452
        %v455 = vunpack.c.l.s4 1966171168
        %v456 = vunpack.c.0.s8 %v455
        %v457 = vlaneseq
        %v458 = vshrl.u32 %v457, 7
        %v459 = vsub.s32 %v456, %v458
        %v460 = vrot.slane %v438, %v459
        %v462 = vunpack.c.l.s4 1966171168
        %v463 = vunpack.c.0.s8 %v462
        %v464 = vlaneseq
        %v465 = vshrl.u32 %v464, 7
        %v466 = vsub.s32 %v463, %v465
        %v467 = vrot.slane %v439, %v466
        %v468 = vcombine.high %v446, %v446
        %v469 = vcombine.high %v453, %v453
        %v470 = vcombine.high %v460, %v460
        %v471 = vcombine.high %v467, %v467
        %v473 = vunpack.c.l.s4 1966171168
        %v474 = vunpack.c.0.s8 %v473
        %v475 = vlaneseq
        %v476 = vshrl.u32 %v475, 7
        %v477 = vsub.s32 %v474, %v476
        %v478 = vrot.slane %v275, %v477
        %v480 = vunpack.c.l.s4 1966171168
        %v481 = vunpack.c.0.s8 %v480
        %v482 = vlaneseq
        %v483 = vshrl.u32 %v482, 7
        %v484 = vsub.s32 %v481, %v483
        %v485 = vrot.slane %v478, %v484
        %v639 = vunpack.c.l.b16 %v276
        %v640 = vunpack.c.l.b16 %v277
        %v641 = vunpack.c.l.b16 %v278
        %v642 = vunpack.c.l.b16 %v279
        %v643 = vunpack.c.l.b16 %v280
        %v644 = vunpack.c.l.b16 %v281
        %v645 = vunpack.c.l.b16 %v282
        %v646 = vunpack.c.l.b16 %v283
        %v647 = vunpack.c.l.b16 %v284
        %v648 = vunpack.c.l.b16 %v285
        %v649 = vunpack.c.l.b16 %v286
        %v650 = vunpack.c.l.b16 %v287
        %v651 = vunpack.c.l.b16 %v288
        %v652 = vunpack.c.l.b16 %v289
        %v653 = vunpack.c.l.b16 %v290
        %v654 = vunpack.c.l.b16 %v291
        %v655 = vunpack.c.l.b16 %v292
        %v656 = vunpack.c.l.b16 %v293
        %v657 = vunpack.c.l.b16 %v294
        %v658 = vunpack.c.l.b16 %v295
        %v659 = vunpack.c.l.b16 %v296
        %v660 = vunpack.c.l.b16 %v297
        %v661 = vunpack.c.l.b16 %v298
        %v662 = vunpack.c.l.b16 %v299
        %v663 = vunpack.c.l.b16 %v300
        %v664 = vunpack.c.l.b16 %v301
        %v665 = vunpack.c.l.b16 %v302
        %v666 = vunpack.c.l.b16 %v303
        %v667 = vunpack.c.l.b16 %v304
        %v668 = vunpack.c.l.b16 %v305
        %v669 = vunpack.c.l.b16 %v306
        %v670 = vunpack.c.l.b16 %v307
        %v671 = vunpack.c.l.b16 %v308
        %v672 = vunpack.c.l.b16 %v309
        %v673 = vunpack.c.l.b16 %v310
        %v674 = vunpack.c.l.b16 %v311
        %v675 = vunpack.c.l.b16 %v312
        %v676 = vunpack.c.l.b16 %v313
        %v677 = vunpack.c.l.b16 %v314
        %v678 = vunpack.c.l.b16 %v315
        %v679 = vunpack.c.l.b16 %v316
        %v680 = vunpack.c.l.b16 %v317
        %v681 = vunpack.c.l.b16 %v318
        %v682 = vunpack.c.l.b16 %v319
        %v683 = vunpack.c.l.b16 %v320
        %v684 = vunpack.c.l.b16 %v321
        %v685 = vunpack.c.l.b16 %v322
        %v686 = vunpack.c.l.b16 %v323
        %v687 = vunpack.c.l.b16 %v324
        %v688 = vunpack.c.l.b16 %v325
        %v689 = vunpack.c.l.b16 %v326
        %v690 = vunpack.c.l.b16 %v327
        %v691 = vunpack.c.l.b16 %v328
        %v692 = vunpack.c.l.b16 %v329
        %v693 = vunpack.c.l.b16 %v330
        %v694 = vunpack.c.l.b16 %v331
        %v695 = vunpack.c.l.b16 %v332
        %v696 = vunpack.c.l.b16 %v333
        %v697 = vunpack.c.l.b16 %v334
        %v698 = vunpack.c.l.b16 %v335
        %v699 = vunpack.c.l.b16 %v336
        %v700 = vunpack.c.l.b16 %v337
        %v701 = vunpack.c.l.b16 %v338
        %v702 = vunpack.c.l.b16 %v339
        %v703 = vunpack.c.l.b16 %v340
        %v704 = vunpack.c.l.b16 %v341
        %v705 = vunpack.c.l.b16 %v342
        %v706 = vunpack.c.l.b16 %v343
        %v707 = vunpack.c.l.b16 %v344
        %v708 = vunpack.c.l.b16 %v345
        %v709 = vunpack.c.l.b16 %v346
        %v710 = vunpack.c.l.b16 %v347
        %v711 = vunpack.c.l.b16 %v348
        %v712 = vunpack.c.l.b16 %v349
        %v713 = vunpack.c.l.b16 %v350
        %v714 = vunpack.c.l.b16 %v351
        %v715 = vunpack.c.l.b16 %v352
        %v716 = vunpack.c.l.b16 %v353
        %v717 = vunpack.c.l.b16 %v354
        %v718 = vunpack.c.l.b16 %v355
        %v719 = vunpack.c.l.b16 %v356
        %v720 = vunpack.c.l.b16 %v357
        %v721 = vunpack.c.l.b16 %v358
        %v722 = vunpack.c.l.b16 %v359
        %v723 = vunpack.c.l.b16 %v360
        %v724 = vunpack.c.l.b16 %v361
        %v725 = vunpack.c.l.b16 %v362
        %v726 = vunpack.c.l.b16 %v363
        %v727 = vunpack.c.l.b16 %v364
        %v728 = vunpack.c.l.b16 %v365
        %v729 = vunpack.c.l.b16 %v366
        %v730 = vunpack.c.l.b16 %v367
        %v731 = vunpack.c.l.b16 %v368
        %v732 = vunpack.c.l.b16 %v369
        %v733 = vunpack.c.l.b16 %v370
        %v734 = vunpack.c.l.b16 %v371
        %v735 = vunpack.c.l.b16 %v372
        %v736 = vunpack.c.l.b16 %v373
        %v737 = vunpack.c.l.b16 %v374
        %v738 = vunpack.c.l.b16 %v375
        %v739 = vunpack.c.l.b16 %v376
        %v740 = vunpack.c.l.b16 %v377
        %v741 = vunpack.c.l.b16 %v378
        %v742 = vunpack.c.l.b16 %v379
        %v743 = vunpack.c.l.b16 %v380
        %v744 = vunpack.c.l.b16 %v381
        %v745 = vunpack.c.l.b16 %v382
        %v746 = vunpack.c.l.b16 %v383
        %v747 = vunpack.c.l.b16 %v384
        %v748 = vunpack.c.l.b16 %v385
        %v749 = vunpack.c.l.b16 %v386
        %v750 = vunpack.c.l.b16 %v387
        %v751 = vunpack.c.l.b16 %v388
        %v752 = vunpack.c.l.b16 %v389
        %v753 = vunpack.c.l.b16 %v390
        %v754 = vunpack.c.l.b16 %v391
        %v755 = vunpack.c.l.b16 %v392
        %v756 = vunpack.c.l.b16 %v393
        %v757 = vunpack.c.l.b16 %v394
        %v758 = vunpack.c.l.b16 %v395
        %v759 = vunpack.c.l.b16 %v396
        %v760 = vunpack.c.l.b16 %v397
        %v761 = vunpack.c.l.b16 %v398
        %v762 = vunpack.c.l.b16 %v399
        %v763 = vunpack.c.l.b16 %v400
        %v764 = vunpack.c.l.b16 %v401
        %v765 = vunpack.c.l.b16 %v402
        %v766 = vunpack.c.l.b16 %v403
        %v767 = vunpack.c.l.b16 %v404
        %v768 = vunpack.c.l.b16 %v405
        %v769 = vunpack.c.l.b16 %v406
        %v770 = vunpack.c.l.b16 %v407
        %v771 = vunpack.c.l.b16 %v408
        %v772 = vunpack.c.l.b16 %v409
        %v773 = vunpack.c.l.b16 %v410
        %v774 = vunpack.c.l.b16 %v411
        %v775 = vunpack.c.l.b16 %v412
        %v776 = vunpack.c.l.b16 %v413
        %v777 = vunpack.c.l.b16 %v414
        %v778 = vunpack.c.l.b16 %v415
        %v779 = vunpack.c.l.b16 %v416
        %v780 = vunpack.c.l.b16 %v417
        %v781 = vunpack.c.l.b16 %v418
        %v782 = vunpack.c.l.b16 %v419
        %v783 = vpack.c.b16 %v640, %v639
        %v784 = vpack.c.b16 %v642, %v641
        %v785 = vpack.c.b16 %v644, %v643
        %v786 = vpack.c.b16 %v646, %v645
        %v787 = vpack.c.b16 %v648, %v647
        %v788 = vpack.c.b16 %v650, %v649
        %v789 = vpack.c.b16 %v652, %v651
        %v790 = vpack.c.b16 %v654, %v653
        %v791 = vpack.c.b16 %v656, %v655
        %v792 = vpack.c.b16 %v658, %v657
        %v793 = vpack.c.b16 %v660, %v659
        %v794 = vpack.c.b16 %v662, %v661
        %v795 = vpack.c.b16 %v664, %v663
        %v796 = vpack.c.b16 %v666, %v665
        %v797 = vpack.c.b16 %v668, %v667
        %v798 = vpack.c.b16 %v670, %v669
        %v799 = vpack.c.b16 %v672, %v671
        %v800 = vpack.c.b16 %v674, %v673
        %v801 = vpack.c.b16 %v676, %v675
        %v802 = vpack.c.b16 %v678, %v677
        %v803 = vpack.c.b16 %v680, %v679
        %v804 = vpack.c.b16 %v682, %v681
        %v805 = vpack.c.b16 %v684, %v683
        %v806 = vpack.c.b16 %v686, %v685
        %v807 = vpack.c.b16 %v688, %v687
        %v808 = vpack.c.b16 %v690, %v689
        %v809 = vpack.c.b16 %v692, %v691
        %v810 = vpack.c.b16 %v694, %v693
        %v811 = vpack.c.b16 %v696, %v695
        %v812 = vpack.c.b16 %v698, %v697
        %v813 = vpack.c.b16 %v700, %v699
        %v814 = vpack.c.b16 %v702, %v701
        %v815 = vpack.c.b16 %v704, %v703
        %v816 = vpack.c.b16 %v706, %v705
        %v817 = vpack.c.b16 %v708, %v707
        %v818 = vpack.c.b16 %v710, %v709
        %v819 = vpack.c.b16 %v712, %v711
        %v820 = vpack.c.b16 %v714, %v713
        %v821 = vpack.c.b16 %v716, %v715
        %v822 = vpack.c.b16 %v718, %v717
        %v823 = vpack.c.b16 %v720, %v719
        %v824 = vpack.c.b16 %v722, %v721
        %v825 = vpack.c.b16 %v724, %v723
        %v826 = vpack.c.b16 %v726, %v725
        %v827 = vpack.c.b16 %v728, %v727
        %v828 = vpack.c.b16 %v730, %v729
        %v829 = vpack.c.b16 %v732, %v731
        %v830 = vpack.c.b16 %v734, %v733
        %v831 = vpack.c.b16 %v736, %v735
        %v832 = vpack.c.b16 %v738, %v737
        %v833 = vpack.c.b16 %v740, %v739
        %v834 = vpack.c.b16 %v742, %v741
        %v835 = vpack.c.b16 %v744, %v743
        %v836 = vpack.c.b16 %v746, %v745
        %v837 = vpack.c.b16 %v748, %v747
        %v838 = vpack.c.b16 %v750, %v749
        %v839 = vpack.c.b16 %v752, %v751
        %v840 = vpack.c.b16 %v754, %v753
        %v841 = vpack.c.b16 %v756, %v755
        %v842 = vpack.c.b16 %v758, %v757
        %v843 = vpack.c.b16 %v760, %v759
        %v844 = vpack.c.b16 %v762, %v761
        %v845 = vpack.c.b16 %v764, %v763
        %v846 = vpack.c.b16 %v766, %v765
        %v847 = vpack.c.b16 %v768, %v767
        %v848 = vpack.c.b16 %v770, %v769
        %v849 = vpack.c.b16 %v772, %v771
        %v850 = vpack.c.b16 %v774, %v773
        %v851 = vpack.c.b16 %v776, %v775
        %v852 = vpack.c.b16 %v778, %v777
        %v853 = vpack.c.b16 %v780, %v779
        %v854 = vpack.c.b16 %v782, %v781
        %927 = vmatprep.subr.bf16.mxu0 0
        %928 = vmatpush1.bf16.msra.mxu0 %v783
        %929 = vmatprep.subr.bf16.mxu0 0
        %930 = vmatpush1.bf16.msra.mxu0 %v784
        %931 = vmatprep.subr.bf16.mxu0 0
        %932 = vmatpush1.bf16.msra.mxu0 %v785
        %933 = vmatprep.subr.bf16.mxu0 0
        %934 = vmatpush1.bf16.msra.mxu0 %v786
        %935 = vmatprep.subr.bf16.mxu0 0
        %936 = vmatpush1.bf16.msra.mxu0 %v787
        %937 = vmatprep.subr.bf16.mxu0 0
        %938 = vmatpush1.bf16.msra.mxu0 %v788
        %939 = vmatprep.subr.bf16.mxu0 0
        %940 = vmatpush1.bf16.msra.mxu0 %v789
        %941 = vmatprep.subr.bf16.mxu0 0
        %942 = vmatpush1.bf16.msra.mxu0 %v790
        %943 = vmatprep.subr.bf16.mxu0 0
        %944 = vmatpush1.bf16.msra.mxu0 %v791
        %945 = vmatprep.subr.bf16.mxu0 0
        %946 = vmatpush1.bf16.msra.mxu0 %v792
        %947 = vmatprep.subr.bf16.mxu0 0
        %948 = vmatpush1.bf16.msra.mxu0 %v793
        %949 = vmatprep.subr.bf16.mxu0 0
        %950 = vmatpush1.bf16.msra.mxu0 %v794
        %951 = vmatprep.subr.bf16.mxu0 0
        %952 = vmatpush1.bf16.msra.mxu0 %v795
        %953 = vmatprep.subr.bf16.mxu0 0
        %954 = vmatpush1.bf16.msra.mxu0 %v796
        %955 = vmatprep.subr.bf16.mxu0 0
        %956 = vmatpush1.bf16.msra.mxu0 %v797
        %957 = vmatprep.subr.bf16.mxu0 0
        %958 = vmatpush1.bf16.msra.mxu0 %v798
        %959 = vmatprep.mubr.bf16.mxu0 %v460
        %960 = vmatmul.mubr.bf16.gmra.mrb[0].mxu0 %v446
        %v961 = vpop.f32.mrb[0].mxu0
        %v962 = vadd.f32 %v420, %v961
        %v963 = vpop.f32.mrb[0].mxu0
        %v964 = vpop.f32.mrb[0].mxu0
        %v965 = vpop.f32.mrb[0].mxu0
        %966 = vdwg.mxu0
        %967 = vmatprep.subr.bf16.mxu0 0
        %968 = vmatpush1.bf16.msra.mxu0 %v799
        %969 = vmatprep.subr.bf16.mxu0 0
        %970 = vmatpush1.bf16.msra.mxu0 %v800
        %971 = vmatprep.subr.bf16.mxu0 0
        %972 = vmatpush1.bf16.msra.mxu0 %v801
        %973 = vmatprep.subr.bf16.mxu0 0
        %974 = vmatpush1.bf16.msra.mxu0 %v802
        %975 = vmatprep.subr.bf16.mxu0 0
        %976 = vmatpush1.bf16.msra.mxu0 %v803
        %977 = vmatprep.subr.bf16.mxu0 0
        %978 = vmatpush1.bf16.msra.mxu0 %v804
        %979 = vmatprep.subr.bf16.mxu0 0
        %980 = vmatpush1.bf16.msra.mxu0 %v805
        %981 = vmatprep.subr.bf16.mxu0 0
        %982 = vmatpush1.bf16.msra.mxu0 %v806
        %983 = vmatprep.subr.bf16.mxu0 0
        %984 = vmatpush1.bf16.msra.mxu0 %v807
        %985 = vmatprep.subr.bf16.mxu0 0
        %986 = vmatpush1.bf16.msra.mxu0 %v808
        %987 = vmatprep.subr.bf16.mxu0 0
        %988 = vmatpush1.bf16.msra.mxu0 %v809
        %989 = vmatprep.subr.bf16.mxu0 0
        %990 = vmatpush1.bf16.msra.mxu0 %v810
        %991 = vmatprep.subr.bf16.mxu0 0
        %992 = vmatpush1.bf16.msra.mxu0 %v811
        %993 = vmatprep.subr.bf16.mxu0 0
        %994 = vmatpush1.bf16.msra.mxu0 %v812
        %995 = vmatprep.subr.bf16.mxu0 0
        %996 = vmatpush1.bf16.msra.mxu0 %v813
        %997 = vmatprep.subr.bf16.mxu0 0
        %998 = vmatpush1.bf16.msra.mxu0 %v814
        %999 = vmatprep.mubr.bf16.mxu0 %v470
        %1000 = vmatmul.mubr.bf16.gmra.mrb[0].mxu0 %v468
        %v1001 = vpop.f32.mrb[0].mxu0
        %v1002 = vadd.f32 %v962, %v1001
        %v1003 = vpop.f32.mrb[0].mxu0
        %v1004 = vpop.f32.mrb[0].mxu0
        %v1005 = vpop.f32.mrb[0].mxu0
        %1006 = vdwg.mxu0
        %1007 = vmatprep.subr.bf16.mxu0 0
        %1008 = vmatpush1.bf16.msra.mxu0 %v815
        %1009 = vmatprep.subr.bf16.mxu0 0
        %1010 = vmatpush1.bf16.msra.mxu0 %v816
        %1011 = vmatprep.subr.bf16.mxu0 0
        %1012 = vmatpush1.bf16.msra.mxu0 %v817
        %1013 = vmatprep.subr.bf16.mxu0 0
        %1014 = vmatpush1.bf16.msra.mxu0 %v818
        %1015 = vmatprep.subr.bf16.mxu0 0
        %1016 = vmatpush1.bf16.msra.mxu0 %v819
        %1017 = vmatprep.subr.bf16.mxu0 0
        %1018 = vmatpush1.bf16.msra.mxu0 %v820
        %1019 = vmatprep.subr.bf16.mxu0 0
        %1020 = vmatpush1.bf16.msra.mxu0 %v821
        %1021 = vmatprep.subr.bf16.mxu0 0
        %1022 = vmatpush1.bf16.msra.mxu0 %v822
        %1023 = vmatprep.subr.bf16.mxu0 0
        %1024 = vmatpush1.bf16.msra.mxu0 %v823
        %1025 = vmatprep.subr.bf16.mxu0 0
        %1026 = vmatpush1.bf16.msra.mxu0 %v824
        %1027 = vmatprep.subr.bf16.mxu0 0
        %1028 = vmatpush1.bf16.msra.mxu0 %v825
        %1029 = vmatprep.subr.bf16.mxu0 0
        %1030 = vmatpush1.bf16.msra.mxu0 %v826
        %1031 = vmatprep.subr.bf16.mxu0 0
        %1032 = vmatpush1.bf16.msra.mxu0 %v827
        %1033 = vmatprep.subr.bf16.mxu0 0
        %1034 = vmatpush1.bf16.msra.mxu0 %v828
        %1035 = vmatprep.subr.bf16.mxu0 0
        %1036 = vmatpush1.bf16.msra.mxu0 %v829
        %1037 = vmatprep.subr.bf16.mxu0 0
        %1038 = vmatpush1.bf16.msra.mxu0 %v830
        %1039 = vmatprep.mubr.bf16.mxu0 %v467
        %1040 = vmatmul.mubr.bf16.gmra.mrb[0].mxu0 %v453
        %v1041 = vpop.f32.mrb[0].mxu0
        %v1042 = vadd.f32 %v1002, %v1041
        %v1043 = vpop.f32.mrb[0].mxu0
        %v1044 = vpop.f32.mrb[0].mxu0
        %v1045 = vpop.f32.mrb[0].mxu0
        %1046 = vdwg.mxu0
        %1047 = vmatprep.subr.bf16.mxu0 0
        %1048 = vmatpush1.bf16.msra.mxu0 %v831
        %1049 = vmatprep.subr.bf16.mxu0 0
        %1050 = vmatpush1.bf16.msra.mxu0 %v832
        %1051 = vmatprep.subr.bf16.mxu0 0
        %1052 = vmatpush1.bf16.msra.mxu0 %v833
        %1053 = vmatprep.subr.bf16.mxu0 0
        %1054 = vmatpush1.bf16.msra.mxu0 %v834
        %1055 = vmatprep.subr.bf16.mxu0 0
        %1056 = vmatpush1.bf16.msra.mxu0 %v835
        %1057 = vmatprep.subr.bf16.mxu0 0
        %1058 = vmatpush1.bf16.msra.mxu0 %v836
        %1059 = vmatprep.subr.bf16.mxu0 0
        %1060 = vmatpush1.bf16.msra.mxu0 %v837
        %1061 = vmatprep.subr.bf16.mxu0 0
        %1062 = vmatpush1.bf16.msra.mxu0 %v838
        %1063 = vmatprep.subr.bf16.mxu0 0
        %1064 = vmatpush1.bf16.msra.mxu0 %v839
        %1065 = vmatprep.subr.bf16.mxu0 0
        %1066 = vmatpush1.bf16.msra.mxu0 %v840
        %1067 = vmatprep.subr.bf16.mxu0 0
        %1068 = vmatpush1.bf16.msra.mxu0 %v841
        %1069 = vmatprep.subr.bf16.mxu0 0
        %1070 = vmatpush1.bf16.msra.mxu0 %v842
        %1071 = vmatprep.subr.bf16.mxu0 0
        %1072 = vmatpush1.bf16.msra.mxu0 %v843
        %1073 = vmatprep.subr.bf16.mxu0 0
        %1074 = vmatpush1.bf16.msra.mxu0 %v844
        %1075 = vmatprep.subr.bf16.mxu0 0
        %1076 = vmatpush1.bf16.msra.mxu0 %v845
        %1077 = vmatprep.subr.bf16.mxu0 0
        %1078 = vmatpush1.bf16.msra.mxu0 %v846
        %1079 = vmatprep.mubr.bf16.mxu0 %v471
        %1080 = vmatmul.mubr.bf16.gmra.mrb[0].mxu0 %v469
        %v1081 = vpop.f32.mrb[0].mxu0
        %v1082 = vadd.f32 %v1042, %v1081
        %v1083 = vpop.f32.mrb[0].mxu0
        %v1084 = vpop.f32.mrb[0].mxu0
        %v1085 = vpop.f32.mrb[0].mxu0
        %1086 = vdwg.mxu0
        %1087 = vmatprep.subr.bf16.mxu0 0
        %1088 = vmatpush1.bf16.msra.mxu0 %v847
        %1089 = vmatprep.subr.bf16.mxu0 0
        %1090 = vmatpush1.bf16.msra.mxu0 %v848
        %1091 = vmatprep.subr.bf16.mxu0 0
        %1092 = vmatpush1.bf16.msra.mxu0 %v849
        %1093 = vmatprep.subr.bf16.mxu0 0
        %1094 = vmatpush1.bf16.msra.mxu0 %v850
        %1095 = vmatprep.subr.bf16.mxu0 0
        %1096 = vmatpush1.bf16.msra.mxu0 %v851
        %1097 = vmatprep.subr.bf16.mxu0 0
        %1098 = vmatpush1.bf16.msra.mxu0 %v852
        %1099 = vmatprep.subr.bf16.mxu0 0
        %1100 = vmatpush1.bf16.msra.mxu0 %v853
        %1101 = vmatprep.subr.bf16.mxu0 0
        %1102 = vmatpush1.bf16.msra.mxu0 %v854
        %1103 = vmatprep.subr.bf16.mxu0 0
        %1104 = vmatpush1.bf16.msra.mxu0 0
        %1105 = vmatprep.subr.bf16.mxu0 0
        %1106 = vmatpush1.bf16.msra.mxu0 0
        %1107 = vmatprep.subr.bf16.mxu0 0
        %1108 = vmatpush1.bf16.msra.mxu0 0
        %1109 = vmatprep.subr.bf16.mxu0 0
        %1110 = vmatpush1.bf16.msra.mxu0 0
        %1111 = vmatprep.subr.bf16.mxu0 0
        %1112 = vmatpush1.bf16.msra.mxu0 0
        %1113 = vmatprep.subr.bf16.mxu0 0
        %1114 = vmatpush1.bf16.msra.mxu0 0
        %1115 = vmatprep.subr.bf16.mxu0 0
        %1116 = vmatpush1.bf16.msra.mxu0 0
        %1117 = vmatprep.subr.bf16.mxu0 0
        %1118 = vmatpush1.bf16.msra.mxu0 0
        %1119 = vmatprep.mubr.bf16.mxu0 0
        %1120 = vmatmul.mubr.bf16.gmra.mrb[0].mxu0 %v485
        %v1121 = vpop.f32.mrb[0].mxu0
        %v1122 = vadd.f32 %v1082, %v1121
        %v1123 = vpop.f32.mrb[0].mxu0
        %v1124 = vpop.f32.mrb[0].mxu0
        %v1125 = vpop.f32.mrb[0].mxu0
        %1126 = vdwg.mxu0
        %v1127 = vmax.f32 %v1122, 0.0
        %v1128 = vpack.c.bf16 %v1127, %v1127
        %v1129 = vld [vmem:[%s3] sm:$0xf]
        %v1130 = vld [vmem:[%s3 + $0x4] sm:$0xf]
        %v1131 = vld [vmem:[%s3 + $0x8] sm:$0xf]
        %v1132 = vld [vmem:[%s3 + $0xc] sm:$0xf]
        %v1133 = vld [vmem:[%s3 + $0x10] sm:$0xf]
        %v1134 = vld [vmem:[%s3 + $0x14] sm:$0xf]
        %v1135 = vld [vmem:[%s3 + $0x18] sm:$0xf]
        %v1136 = vld [vmem:[%s3 + $0x1c] sm:$0xf]
        %v1137 = vld [vmem:[%s3 + $0x20] sm:$0xf]
        %v1138 = vld [vmem:[%s3 + $0x24] sm:$0xf]
        %v1139 = vld [vmem:[%s3 + $0x28] sm:$0xf]
        %v1140 = vld [vmem:[%s3 + $0x2c] sm:$0xf]
        %v1141 = vld [vmem:[%s3 + $0x30] sm:$0xf]
        %v1142 = vld [vmem:[%s3 + $0x34] sm:$0xf]
        %v1143 = vld [vmem:[%s3 + $0x38] sm:$0xf]
        %v1144 = vld [vmem:[%s3 + $0x3c] sm:$0xf]
        %v1145 = vld [vmem:[%s4] sm:$0x1]
        %v1162 = vunpack.c.l.b16 %v1129
        %v1163 = vunpack.c.l.b16 %v1130
        %v1164 = vunpack.c.l.b16 %v1131
        %v1165 = vunpack.c.l.b16 %v1132
        %v1166 = vunpack.c.l.b16 %v1133
        %v1167 = vunpack.c.l.b16 %v1134
        %v1168 = vunpack.c.l.b16 %v1135
        %v1169 = vunpack.c.l.b16 %v1136
        %v1170 = vunpack.c.l.b16 %v1137
        %v1171 = vunpack.c.l.b16 %v1138
        %v1172 = vunpack.c.l.b16 %v1139
        %v1173 = vunpack.c.l.b16 %v1140
        %v1174 = vunpack.c.l.b16 %v1141
        %v1175 = vunpack.c.l.b16 %v1142
        %v1176 = vunpack.c.l.b16 %v1143
        %v1177 = vunpack.c.l.b16 %v1144
        %v1178 = vpack.c.b16 %v1163, %v1162
        %v1179 = vpack.c.b16 %v1165, %v1164
        %v1180 = vpack.c.b16 %v1167, %v1166
        %v1181 = vpack.c.b16 %v1169, %v1168
        %v1182 = vpack.c.b16 %v1171, %v1170
        %v1183 = vpack.c.b16 %v1173, %v1172
        %v1184 = vpack.c.b16 %v1175, %v1174
        %v1185 = vpack.c.b16 %v1177, %v1176
        %1194 = vmatprep.subr.bf16.mxu0 0
        %1195 = vmatpush1.bf16.msra.mxu0 %v1178
        %1196 = vmatprep.subr.bf16.mxu0 0
        %1197 = vmatpush1.bf16.msra.mxu0 %v1179
        %1198 = vmatprep.subr.bf16.mxu0 0
        %1199 = vmatpush1.bf16.msra.mxu0 %v1180
        %1200 = vmatprep.subr.bf16.mxu0 0
        %1201 = vmatpush1.bf16.msra.mxu0 %v1181
        %1202 = vmatprep.subr.bf16.mxu0 0
        %1203 = vmatpush1.bf16.msra.mxu0 %v1182
        %1204 = vmatprep.subr.bf16.mxu0 0
        %1205 = vmatpush1.bf16.msra.mxu0 %v1183
        %1206 = vmatprep.subr.bf16.mxu0 0
        %1207 = vmatpush1.bf16.msra.mxu0 %v1184
        %1208 = vmatprep.subr.bf16.mxu0 0
        %1209 = vmatpush1.bf16.msra.mxu0 %v1185
        %1210 = vmatprep.subr.bf16.mxu0 0
        %1211 = vmatpush1.bf16.msra.mxu0 0
        %1212 = vmatprep.subr.bf16.mxu0 0
        %1213 = vmatpush1.bf16.msra.mxu0 0
        %1214 = vmatprep.subr.bf16.mxu0 0
        %1215 = vmatpush1.bf16.msra.mxu0 0
        %1216 = vmatprep.subr.bf16.mxu0 0
        %1217 = vmatpush1.bf16.msra.mxu0 0
        %1218 = vmatprep.subr.bf16.mxu0 0
        %1219 = vmatpush1.bf16.msra.mxu0 0
        %1220 = vmatprep.subr.bf16.mxu0 0
        %1221 = vmatpush1.bf16.msra.mxu0 0
        %1222 = vmatprep.subr.bf16.mxu0 0
        %1223 = vmatpush1.bf16.msra.mxu0 0
        %1224 = vmatprep.subr.bf16.mxu0 0
        %1225 = vmatpush1.bf16.msra.mxu0 0
        %1226 = vmatprep.mubr.bf16.mxu0 0
        %1227 = vmatmul.mubr.bf16.gmra.mrb[0].mxu0 %v1128
        %v1228 = vpop.f32.mrb[0].mxu0
        %v1229 = vadd.f32 %v1145, %v1228
        %v1230 = vpop.f32.mrb[0].mxu0
        %v1231 = vpop.f32.mrb[0].mxu0
        %v1232 = vpop.f32.mrb[0].mxu0
        %1233 = vdwg.mxu0
        %v1234 = vmax.f32 %v1229, 0.0
        %vm1235 = vcmask 1040384
        %v1236 = vsel %vm1235, %v1234, 0.0
        %1237 = vadd.xlane.f32.xlu0 %v1236
        %v1238 = vpop.xlane.xlu0 %1237
        %v1239 = vrcp.pop 128.0
        %v1240 = vmul.f32 %v1238, %v1239
        %v1241 = vsub.f32 %v1234, %v1240
        %v1242 = vmul.f32 %v1241, %v1241
        %v1243 = vsel %vm1235, %v1242, 0.0
        %1244 = vadd.xlane.f32.xlu0 %v1243
        %v1245 = vpop.xlane.xlu0 %1244
        %v1246 = vmul.f32 %v1245, %v1239
        %v1247 = vadd.f32 %v1246, 1e-05
        %v1248 = vrsqrt.pop %v1247
        %v1249 = vmul.f32 %v1241, %v1248
        %v1250 = vld [vmem:[%s5] sm:$0x1]
        %v1251 = vmul.f32 %v1249, %v1250
        %v1252 = vld [vmem:[%s6] sm:$0x1]
        %v1253 = vadd.f32 %v1251, %v1252
        %1254 = vst [vmem:[%s268] sm:$0x1] %v1253
        %s1255 = sand.u32 %s181, 1
        %s1256 = scalar_lea.sflag [#allocation3], %s1255
        %s1257 = sand.u32 %s181, 1
        %s1258 = scalar_lea.vmem [#allocation2], %s1257
        // Predicated region
        $region49: #{light_cnn_forward.5} parent=47 // pred_check
          %p1259 = pneg %p191
        $region50: #{light_cnn_forward.5} parent=47 // pred_check_branch
          %1261 = sbr.rel (%p1259) target = $region52
        $region51: #{light_cnn_forward.5} parent=47 // pred_region
          %s1263 = ssub.s32 16, 16
          %1264 = vsyncadd %s1256, %s1263
          %s1265 = smul.addr %s21, 16
          %s1266 = scalar_lea.hbm %s7, %s1265
          %s1268 = sshll.u32 %s1258, 4
          %s1269 = int_to_ptr.vmem [resolvable:$true] %s1268
          %1271 = dma.vmem_to_hbm [thread:$0]  %s1269, 16, %s1266, %s1256
        $region52: #{light_cnn_forward.5} parent=47 // pred_fallthru
          _
      $region48: #{light_cnn_forward.5} parent=5 // pred_fallthru
        _
      %p1272 = scmp.le.s32.totalorder 2, %s16
      // Predicated region
      $region53: #{light_cnn_forward.5} parent=5 // pred_check
        %p1273 = pneg %p1272
      $region54: #{light_cnn_forward.5} parent=5 // pred_check_branch
        %1275 = sbr.rel (%p1273) target = $region56
      $region55: #{light_cnn_forward.5} parent=5 // pred_region
        %s1276 = ssub.s32 %s16, 2
        // Predicated region
        $region57: #{light_cnn_forward.5} parent=55 // pred_check
          %p1277 = pneg %p197
        $region58: #{light_cnn_forward.5} parent=55 // pred_check_branch
          %1279 = sbr.rel (%p1277) target = $region60
        $region59: #{light_cnn_forward.5} parent=55 // pred_region
          %s1280 = sand.u32 %s182, 1
          %s1281 = scalar_lea.sflag [#allocation3], %s1280
          %s1282 = sand.u32 %s182, 1
          %s1283 = scalar_lea.vmem [#allocation2], %s1282
          %1284 = dma.done %s1281, 16
        $region60: #{light_cnn_forward.5} parent=55 // pred_fallthru
          _
      $region56: #{light_cnn_forward.5} parent=5 // pred_fallthru
        _
    $region6: #{light_cnn_forward.5} parent=1 // loop_footer
      %s20 = sadd.s32 1, %s16
    $region7: #{light_cnn_forward.5} parent=1 // loop_footer_branch
      %15 = sbr.rel target = $region3
    $region8: #{light_cnn_forward.5} parent=1 // loop_exit
      _
    %1285 = vsyncpa [#allocation3], 1
    %s1286 = scalar_lea.sflag [#allocation3], 1
    %1287 = vsyncpa %s1286, 1

</llo_original>
